<compile_context>
chip_gen: v6e
topology: v6e:2x2x1
jax: 0.10.0
libtpu: 0.0.40
codegen_flags: <defaults>
</compile_context>

<pallas_src>
from functools import partial

import jax
import jax.numpy as jnp
from jax.experimental import pallas as pl
from jax.experimental.pallas import tpu as pltpu

# ----- small, tile-friendly config (CustomLLaMAConfig analog) -----
DIM = 128
MULTIPLE_OF = 256          # module default
BATCH = 4
SEQ = 128                  # fold B*S -> 512 rows so the weights are amortized


def _ffn_hidden_dim(dim: int, multiple_of: int) -> int:
    # Mirrors FeedForward.__init__ with the standard hidden_dim = 4 * dim call.
    hidden = 4 * dim
    hidden = int(2 * hidden / 3)
    return multiple_of * ((hidden + multiple_of - 1) // multiple_of)


HIDDEN = _ffn_hidden_dim(DIM, MULTIPLE_OF)  # 512 for DIM=128, multiple_of=256


# ------------------------------------------------------------------
# kernel
# ------------------------------------------------------------------
def ffn_kernel(x_ref, w_gu_ref, w_out_ref, o_ref, *, hidden):
    """Fused SwiGLU FFN for one row-tile.

    x_ref:     (Rb, D)   bf16 activations
    w_gu_ref:  (D, 2*H)  bf16 [gate_proj.T | down_proj.T] fused weight ([in, out] layout)
    w_out_ref: (H, D)    bf16 up_proj.T                    ([in, out] layout)
    o_ref:     (Rb, D)   f32 output
    """
    x = x_ref[...]  # (Rb, D) bf16

    # One MXU push produces gate and up together: (Rb, 2H), f32 accumulation.
    gu = jnp.dot(x, w_gu_ref[...], preferred_element_type=jnp.float32)
    gate_x = gu[:, :hidden]          # gate_proj(x)  (lane-aligned slice, H % 128 == 0)
    up_x = gu[:, hidden:]            # down_proj(x)

    # SwiGLU in f32 (EUP sigmoid + VPU mul); cast to bf16 only at the dot input.
    act = jax.nn.silu(gate_x) * up_x

    # up_proj: (Rb, H) @ (H, D) -> (Rb, D), f32 accumulation.
    o_ref[...] = jnp.dot(
        act.astype(w_out_ref.dtype), w_out_ref[...],
        preferred_element_type=jnp.float32,
    ).astype(o_ref.dtype)


# ------------------------------------------------------------------
# wrappers
# ------------------------------------------------------------------
def prepare_weights(w_gate, w_down, w_up, dtype=jnp.bfloat16):
    """One-time weight prep (outside the hot path): transpose to [in, out] layout,
    fuse gate_proj/down_proj along the output dim, and store in bf16."""
    w_gu = jnp.concatenate(
        [jnp.transpose(w_gate), jnp.transpose(w_down)], axis=1
    ).astype(dtype)                                  # (D, 2H)
    w_out = jnp.transpose(w_up).astype(dtype)        # (H, D)
    return w_gu, w_out


def make_feed_forward(single_buffer_weights: bool = True):
    weight_kwargs = (
        dict(pipeline_mode=pl.Buffered(1)) if single_buffer_weights else {}
    )

    @partial(jax.jit, static_argnames=("block_rows",))
    def feed_forward(x, w_gu, w_out, block_rows: int = 256):
        B, S, D = x.shape
        R = B * S                           # fold batch into rows -> (R, D) slab
        H = w_out.shape[0]

        # Feed activations to the kernel in the weight dtype (bf16): halves DMA bytes.
        x2 = x.reshape(R, D).astype(w_gu.dtype)

        # Row tiling: keep block_rows a multiple of 16 (bf16 sublane packing) and
        # a divisor of R; weights stay resident across all row steps.
        block_rows = min(block_rows, R)
        if R % block_rows:
            block_rows = R
        n_steps = R // block_rows

        flops = 2 * R * D * (2 * H) + 2 * R * H * D
        bytes_accessed = (
            R * D * 2            # x (bf16 in)
            + D * 2 * H * 2      # fused gate|down weight (bf16)
            + H * D * 2          # up_proj weight (bf16)
            + R * D * 4          # f32 output
        )
        cost = pl.CostEstimate(
            flops=flops, transcendentals=R * H, bytes_accessed=bytes_accessed
        )

        out2 = pl.pallas_call(
            partial(ffn_kernel, hidden=H),
            out_shape=jax.ShapeDtypeStruct((R, D), jnp.float32),
            grid=(n_steps,),
            in_specs=[
                # activations: row-tiled
                pl.BlockSpec((block_rows, D), lambda r: (r, 0)),
                # fused gate|down weight: resident (constant block index)
                pl.BlockSpec((D, 2 * H), lambda r: (0, 0), **weight_kwargs),
                # up_proj weight: resident
                pl.BlockSpec((H, D), lambda r: (0, 0), **weight_kwargs),
            ],
            out_specs=pl.BlockSpec((block_rows, D), lambda r: (r, 0)),
            compiler_params=pltpu.CompilerParams(
                # Row tiles are independent -> shard across v7x's two TensorCores.
                dimension_semantics=("parallel",),
            ),
            cost_estimate=cost,
        )(x2, w_gu, w_out)
        return out2.reshape(B, S, D)

    return feed_forward


def feed_forward_ref(x, w_gate, w_down, w_up):
    """Pure-JAX f32 reference matching the PyTorch forward exactly."""
    up_x = x @ w_down.T
    gate_x = x @ w_gate.T
    return (jax.nn.silu(gate_x) * up_x) @ w_up.T


# ------------------------------------------------------------------
# main
# ------------------------------------------------------------------
if __name__ == "__main__":
    # TODO(synk): LoRA branches (w_lora=True) and their dropout are dead code for the
    # default config and are intentionally not emitted.
    key = jax.random.PRNGKey(0)
    kx, kg, kd, ku = jax.random.split(key, 4)
    s = 0.05

    x = jax.random.normal(kx, (BATCH, SEQ, DIM), jnp.float32)
    w_gate = jax.random.normal(kg, (HIDDEN, DIM), jnp.float32) * s   # gate_proj.weight
    w_down = jax.random.normal(kd, (HIDDEN, DIM), jnp.float32) * s   # down_proj.weight
    w_up = jax.random.normal(ku, (DIM, HIDDEN), jnp.float32) * s     # up_proj.weight

    w_gu, w_out = prepare_weights(w_gate, w_down, w_up)

    feed_forward = make_feed_forward(single_buffer_weights=True)
    try:
        out = jax.block_until_ready(feed_forward(x, w_gu, w_out))
    except Exception:
        # Fallback if this JAX version rejects single-buffered (Buffered(1)) weights.
        feed_forward = make_feed_forward(single_buffer_weights=False)
        out = jax.block_until_ready(feed_forward(x, w_gu, w_out))

    ref = feed_forward_ref(x, w_gate, w_down, w_up)
    assert out.shape == (BATCH, SEQ, DIM) and out.dtype == jnp.float32
    # bf16 weights/activations with f32 accumulation -> loosened tolerance vs f32 ref.
    assert jnp.allclose(out, ref, rtol=5e-2, atol=5e-2), float(jnp.max(jnp.abs(out - ref)))
    print("KERNEL_OK")
</pallas_src>

<mosaic_0001>
module attributes {stable_mosaic.version = 11 : i64} {
  func.func @ffn_kernel(%arg0: i32, %arg1: memref<256x128xbf16, #tpu.memory_space<vmem>>, %arg2: memref<128x1024xbf16, #tpu.memory_space<vmem>>, %arg3: memref<512x128xbf16, #tpu.memory_space<vmem>>, %arg4: memref<256x128xf32, #tpu.memory_space<vmem>>) attributes {dimension_semantics = [#tpu.dimension_semantics<parallel>], iteration_bounds = array<i64: 2>, scalar_prefetch = 0 : i64, scratch_operands = 0 : i64, tpu.core_type = #tpu.core_type<tc>, window_params = [{transform_indices = @transform_0, window_bounds = array<i64: 256, 128>}, {pipeline_mode = #tpu.pipeline_mode<synchronous>, transform_indices = @transform_1, window_bounds = array<i64: 128, 1024>}, {pipeline_mode = #tpu.pipeline_mode<synchronous>, transform_indices = @transform_2, window_bounds = array<i64: 512, 128>}, {transform_indices = @transform_3, window_bounds = array<i64: 256, 128>}]} {
    %c0 = arith.constant 0 : index
    %c0_0 = arith.constant 0 : index
    %0 = vector.load %arg1[%c0, %c0_0] : memref<256x128xbf16, #tpu.memory_space<vmem>>, vector<256x128xbf16>
    %c0_1 = arith.constant 0 : index
    %c0_2 = arith.constant 0 : index
    %1 = vector.load %arg2[%c0_1, %c0_2] : memref<128x1024xbf16, #tpu.memory_space<vmem>>, vector<128x1024xbf16>
    %cst = arith.constant dense<0.000000e+00> : vector<256x1024xf32>
    %2 = tpu.matmul %0, %1, %cst {dimension_numbers = #tpu.dot_dimension_numbers<[1], [0], [0], [1], [0, 0, 1, 1], [], []>} : vector<256x128xbf16>, vector<128x1024xbf16>, vector<256x1024xf32> -> vector<256x1024xf32>
    %3 = vector.extract_strided_slice %2 {offsets = [0, 0], sizes = [256, 512], strides = [1, 1]} : vector<256x1024xf32> to vector<256x512xf32>
    %4 = vector.extract_strided_slice %2 {offsets = [0, 512], sizes = [256, 512], strides = [1, 1]} : vector<256x1024xf32> to vector<256x512xf32>
    %5 = arith.negf %3 : vector<256x512xf32>
    %6 = math.exp %5 : vector<256x512xf32>
    %cst_3 = arith.constant 1.000000e+00 : f32
    %7 = vector.broadcast %cst_3 : f32 to vector<256x512xf32>
    %8 = arith.addf %7, %6 : vector<256x512xf32>
    %9 = arith.divf %7, %8 : vector<256x512xf32>
    %10 = arith.mulf %3, %9 : vector<256x512xf32>
    %11 = arith.mulf %10, %4 : vector<256x512xf32>
    %12 = arith.truncf %11 : vector<256x512xf32> to vector<256x512xbf16>
    %c0_4 = arith.constant 0 : index
    %c0_5 = arith.constant 0 : index
    %13 = vector.load %arg3[%c0_4, %c0_5] : memref<512x128xbf16, #tpu.memory_space<vmem>>, vector<512x128xbf16>
    %cst_6 = arith.constant dense<0.000000e+00> : vector<256x128xf32>
    %14 = tpu.matmul %12, %13, %cst_6 {dimension_numbers = #tpu.dot_dimension_numbers<[1], [0], [0], [1], [0, 0, 1, 1], [], []>} : vector<256x512xbf16>, vector<512x128xbf16>, vector<256x128xf32> -> vector<256x128xf32>
    %c0_7 = arith.constant 0 : index
    %c0_8 = arith.constant 0 : index
    %15 = vector.load %arg4[%c0_7, %c0_8] : memref<256x128xf32, #tpu.memory_space<vmem>>, vector<256x128xf32>
    tpu.vector_store %arg4[%c0_7, %c0_8], %14 {strides = array<i32>} : memref<256x128xf32, #tpu.memory_space<vmem>>, vector<256x128xf32>,
    return
  }
  func.func @transform_0(%arg0: i32) -> (i32, i32) {
    %c0_i32 = arith.constant 0 : i32
    %c0_i32_0 = arith.constant 0 : i32
    return %arg0, %c0_i32 : i32, i32
  }
  func.func @transform_1(%arg0: i32) -> (i32, i32) {
    %c0_i32 = arith.constant 0 : i32
    %c0_i32_0 = arith.constant 0 : i32
    %c0_i32_1 = arith.constant 0 : i32
    return %c0_i32, %c0_i32_0 : i32, i32
  }
  func.func @transform_2(%arg0: i32) -> (i32, i32) {
    %c0_i32 = arith.constant 0 : i32
    %c0_i32_0 = arith.constant 0 : i32
    %c0_i32_1 = arith.constant 0 : i32
    return %c0_i32, %c0_i32_0 : i32, i32
  }
  func.func @transform_3(%arg0: i32) -> (i32, i32) {
    %c0_i32 = arith.constant 0 : i32
    %c0_i32_0 = arith.constant 0 : i32
    return %arg0, %c0_i32 : i32, i32
  }
}

module attributes {stable_mosaic.version = 11 : i64} {
  func.func @ffn_kernel(%arg0: i32, %arg1: memref<256x128xbf16, #tpu.memory_space<vmem>>, %arg2: memref<128x1024xbf16, #tpu.memory_space<vmem>>, %arg3: memref<512x128xbf16, #tpu.memory_space<vmem>>, %arg4: memref<256x128xf32, #tpu.memory_space<vmem>>) attributes {dimension_semantics = [#tpu.dimension_semantics<parallel>], iteration_bounds = array<i64: 2>, scalar_prefetch = 0 : i64, scratch_operands = 0 : i64, tpu.core_type = #tpu.core_type<tc>, window_params = [{transform_indices = @transform_0, window_bounds = array<i64: 256, 128>}, {pipeline_mode = #tpu.pipeline_mode<synchronous>, transform_indices = @transform_1, window_bounds = array<i64: 128, 1024>}, {pipeline_mode = #tpu.pipeline_mode<synchronous>, transform_indices = @transform_2, window_bounds = array<i64: 512, 128>}, {transform_indices = @transform_3, window_bounds = array<i64: 256, 128>}]} {
    %c0 = arith.constant 0 : index
    %c0_0 = arith.constant 0 : index
    %0 = vector.load %arg1[%c0, %c0_0] : memref<256x128xbf16, #tpu.memory_space<vmem>>, vector<256x128xbf16>
    %c0_1 = arith.constant 0 : index
    %c0_2 = arith.constant 0 : index
    %1 = vector.load %arg2[%c0_1, %c0_2] : memref<128x1024xbf16, #tpu.memory_space<vmem>>, vector<128x1024xbf16>
    %cst = arith.constant dense<0.000000e+00> : vector<256x1024xf32>
    %2 = tpu.matmul %0, %1, %cst {dimension_numbers = #tpu.dot_dimension_numbers<[1], [0], [0], [1], [0, 0, 1, 1], [], []>} : vector<256x128xbf16>, vector<128x1024xbf16>, vector<256x1024xf32> -> vector<256x1024xf32>
    %3 = vector.extract_strided_slice %2 {offsets = [0, 0], sizes = [256, 512], strides = [1, 1]} : vector<256x1024xf32> to vector<256x512xf32>
    %4 = vector.extract_strided_slice %2 {offsets = [0, 512], sizes = [256, 512], strides = [1, 1]} : vector<256x1024xf32> to vector<256x512xf32>
    %5 = arith.negf %3 : vector<256x512xf32>
    %6 = math.exp %5 : vector<256x512xf32>
    %cst_3 = arith.constant 1.000000e+00 : f32
    %7 = vector.broadcast %cst_3 : f32 to vector<256x512xf32>
    %8 = arith.addf %7, %6 : vector<256x512xf32>
    %9 = arith.divf %7, %8 : vector<256x512xf32>
    %10 = arith.mulf %3, %9 : vector<256x512xf32>
    %11 = arith.mulf %10, %4 : vector<256x512xf32>
    %12 = arith.truncf %11 : vector<256x512xf32> to vector<256x512xbf16>
    %c0_4 = arith.constant 0 : index
    %c0_5 = arith.constant 0 : index
    %13 = vector.load %arg3[%c0_4, %c0_5] : memref<512x128xbf16, #tpu.memory_space<vmem>>, vector<512x128xbf16>
    %cst_6 = arith.constant dense<0.000000e+00> : vector<256x128xf32>
    %14 = tpu.matmul %12, %13, %cst_6 {dimension_numbers = #tpu.dot_dimension_numbers<[1], [0], [0], [1], [0, 0, 1, 1], [], []>} : vector<256x512xbf16>, vector<512x128xbf16>, vector<256x128xf32> -> vector<256x128xf32>
    %c0_7 = arith.constant 0 : index
    %c0_8 = arith.constant 0 : index
    %15 = vector.load %arg4[%c0_7, %c0_8] : memref<256x128xf32, #tpu.memory_space<vmem>>, vector<256x128xf32>
    tpu.vector_store %arg4[%c0_7, %c0_8], %14 {strides = array<i32>} : memref<256x128xf32, #tpu.memory_space<vmem>>, vector<256x128xf32>,
    return
  }
  func.func @transform_0(%arg0: i32) -> (i32, i32) {
    %c0_i32 = arith.constant 0 : i32
    %c0_i32_0 = arith.constant 0 : i32
    return %arg0, %c0_i32 : i32, i32
  }
  func.func @transform_1(%arg0: i32) -> (i32, i32) {
    %c0_i32 = arith.constant 0 : i32
    %c0_i32_0 = arith.constant 0 : i32
    %c0_i32_1 = arith.constant 0 : i32
    return %c0_i32, %c0_i32_0 : i32, i32
  }
  func.func @transform_2(%arg0: i32) -> (i32, i32) {
    %c0_i32 = arith.constant 0 : i32
    %c0_i32_0 = arith.constant 0 : i32
    %c0_i32_1 = arith.constant 0 : i32
    return %c0_i32, %c0_i32_0 : i32, i32
  }
  func.func @transform_3(%arg0: i32) -> (i32, i32) {
    %c0_i32 = arith.constant 0 : i32
    %c0_i32_0 = arith.constant 0 : i32
    return %arg0, %c0_i32 : i32, i32
  }
}

</mosaic_0001>

<llo_original>
// kernel: feed_forward.1
$region0: #{feed_forward.1}
  #allocation0 [shape = 'u32[]', space=smem, size = 0x4, offset = 0x4, fixed_abs, tag = 'smem constant byte address 0x4 - core index']
  #allocation1 [shape = 'u32[144,128]{1,0:T(1,128)}', space=vmem, size = 0x12000, scoped, tag = 'internal scratch']
  %s0 = inlined_call_operand.vmem [shape: bf16[512,128], index: 0, kind: input, shape index: {}]
  %s1 = inlined_call_operand.vmem [shape: bf16[128,1024], index: 1, kind: input, shape index: {}]
  %s2 = inlined_call_operand.vmem [shape: bf16[512,128], index: 2, kind: input, shape index: {}]
  %s3 = inlined_call_operand.hbm [shape: f32[512,128], index: 3, kind: output, shape index: {}]
  %s4 = sld [smem:[#allocation0]]
  $region45: #{feed_forward.1} parent=0
    _
  %s6 = ssub.s32 1, %s4
  %s7 = scalar_select 0, %s6, %s4
  $region1: #{feed_forward.1} parent=0
    #allocation2 [shape = 'u8[262144]{0}', space=vmem, size = 0x40000, scoped, tag = 'output window, operand 0']
    #allocation3 [shape = 's32[2]{0}', space=sflag, size = 0x8, scoped, tag = 'scoped memory for feed_forward.1']
    %8 = vsyncpa [#allocation3], 0
    %s9 = scalar_lea.sflag [#allocation3], 1
    %10 = vsyncpa %s9, 0
    loop: start=0, step=1, limit=4
    $region2: #{feed_forward.1} parent=1 // loop_pre_header
      _
    $region3: #{feed_forward.1} parent=1 // loop_header
      %s12 = sphi 0, %s16
      %p13 = scmp.ge.s32.totalorder %s12, 4
      %s22 = sphi 0, %s24
      %s25 = sphi 0, %s22
      %s26 = sphi 0, %s25
      %s42 = sphi 0, %s26
      %s46 = sphi 0, %s46
      %s48 = sphi 0, %s46
      %s49 = sphi 0, %s48
      %s63 = sphi 0, %s49
      %s67 = sphi 0, %s67
      %s69 = sphi 0, %s67
      %s70 = sphi 0, %s69
      %s84 = sphi 0, %s70
      %s90 = sphi 0, %s92
      %s93 = sphi 0, %s90
      %s94 = sphi 0, %s93
      %s110 = sphi 0, %s94
    $region4: #{feed_forward.1} parent=1 // loop_header_branch
      %15 = sbr.rel (%p13) target = $region8
    $region5: #{feed_forward.1} parent=1 // loop_body
      %s17 = ssub.s32 %s12, 1
      %s18 = ssub.s32 %s12, 2
      %s19 = sadd.s32 %s12, 1
      %s20 = ssub.s32 %s12, %s19
      %p21 = scmp.eq.s32.totalorder %s20, 0
      %s23 = sadd.s32 %s22, 1
      %s24 = scalar_select %p21, %s22, %s23
      %p27 = pneg %p21
      %p28 = scmp.eq.s32.totalorder %s12, 1
      %p29 = por %p27, %p28
      %p30 = scmp.ne.s32.totalorder %s22, %s25
      %p31 = scmp.eq.s32.totalorder %s12, 0
      %p32 = por %p30, %p31
      %p33 = scmp.ne.s32.totalorder %s22, %s25
      %p34 = scmp.eq.s32.totalorder %s17, 1
      %p35 = por %p33, %p34
      %p36 = scmp.ne.s32.totalorder %s25, %s26
      %p37 = scmp.eq.s32.totalorder %s17, 0
      %p38 = por %p36, %p37
      %p39 = scmp.ne.s32.totalorder %s25, %s26
      %p40 = scmp.eq.s32.totalorder %s18, 1
      %p41 = por %p39, %p40
      %p43 = scmp.ne.s32.totalorder %s26, %s42
      %p44 = scmp.eq.s32.totalorder %s18, 0
      %p45 = por %p43, %p44
      %s47 = sadd.s32 %s46, 1
      %p50 = scmp.eq.s32.totalorder %s12, 1
      %p51 = scmp.ne.s32.totalorder %s46, %s48
      %p52 = scmp.eq.s32.totalorder %s12, 0
      %p53 = por %p51, %p52
      %p54 = scmp.ne.s32.totalorder %s46, %s48
      %p55 = scmp.eq.s32.totalorder %s17, 1
      %p56 = por %p54, %p55
      %p57 = scmp.ne.s32.totalorder %s48, %s49
      %p58 = scmp.eq.s32.totalorder %s17, 0
      %p59 = por %p57, %p58
      %p60 = scmp.ne.s32.totalorder %s48, %s49
      %p61 = scmp.eq.s32.totalorder %s18, 1
      %p62 = por %p60, %p61
      %p64 = scmp.ne.s32.totalorder %s49, %s63
      %p65 = scmp.eq.s32.totalorder %s18, 0
      %p66 = por %p64, %p65
      %s68 = sadd.s32 %s67, 1
      %p71 = scmp.eq.s32.totalorder %s12, 1
      %p72 = scmp.ne.s32.totalorder %s67, %s69
      %p73 = scmp.eq.s32.totalorder %s12, 0
      %p74 = por %p72, %p73
      %p75 = scmp.ne.s32.totalorder %s67, %s69
      %p76 = scmp.eq.s32.totalorder %s17, 1
      %p77 = por %p75, %p76
      %p78 = scmp.ne.s32.totalorder %s69, %s70
      %p79 = scmp.eq.s32.totalorder %s17, 0
      %p80 = por %p78, %p79
      %p81 = scmp.ne.s32.totalorder %s69, %s70
      %p82 = scmp.eq.s32.totalorder %s18, 1
      %p83 = por %p81, %p82
      %p85 = scmp.ne.s32.totalorder %s70, %s84
      %p86 = scmp.eq.s32.totalorder %s18, 0
      %p87 = por %p85, %p86
      %s88 = ssub.s32 %s12, %s19
      %p89 = scmp.eq.s32.totalorder %s88, 0
      %s91 = sadd.s32 %s90, 1
      %s92 = scalar_select %p89, %s90, %s91
      %p95 = pneg %p89
      %p96 = scmp.eq.s32.totalorder %s12, 1
      %p97 = por %p95, %p96
      %p98 = scmp.ne.s32.totalorder %s90, %s93
      %p99 = scmp.eq.s32.totalorder %s12, 0
      %p100 = por %p98, %p99
      %p101 = scmp.ne.s32.totalorder %s90, %s93
      %p102 = scmp.eq.s32.totalorder %s17, 1
      %p103 = por %p101, %p102
      %p104 = scmp.ne.s32.totalorder %s93, %s94
      %p105 = scmp.eq.s32.totalorder %s17, 0
      %p106 = por %p104, %p105
      %p107 = scmp.ne.s32.totalorder %s93, %s94
      %p108 = scmp.eq.s32.totalorder %s18, 1
      %p109 = por %p107, %p108
      %p111 = scmp.ne.s32.totalorder %s94, %s110
      %p112 = scmp.eq.s32.totalorder %s18, 0
      %p113 = por %p111, %p112
      %p114 = scmp.le.s32.totalorder 1, %s12
      %p115 = scmp.lt.s32.totalorder %s12, 3
      %p116 = pnand %p114, %p115
      %p117 = pneg %p116
      // Predicated region
      $region9: #{feed_forward.1} parent=5 // pred_check
        _
      $region10: #{feed_forward.1} parent=5 // pred_check_branch
        %119 = sbr.rel (%p116) target = $region12
      $region11: #{feed_forward.1} parent=5 // pred_region
        %s120 = ssub.s32 %s12, 1
        // Predicated region
        $region13: #{feed_forward.1} parent=11 // pred_check
          %p121 = pneg %p59
        $region14: #{feed_forward.1} parent=11 // pred_check_branch
          %123 = sbr.rel (%p121) target = $region16
        $region15: #{feed_forward.1} parent=11 // pred_region
          _
        $region16: #{feed_forward.1} parent=11 // pred_fallthru
          _
        // Predicated region
        $region17: #{feed_forward.1} parent=11 // pred_check
          %p124 = pneg %p80
        $region18: #{feed_forward.1} parent=11 // pred_check_branch
          %126 = sbr.rel (%p124) target = $region20
        $region19: #{feed_forward.1} parent=11 // pred_region
          _
        $region20: #{feed_forward.1} parent=11 // pred_fallthru
          _
      $region12: #{feed_forward.1} parent=5 // pred_fallthru
        _
      %p127 = scmp.lt.s32.totalorder %s12, 2
      // Predicated region
      $region21: #{feed_forward.1} parent=5 // pred_check
        %p128 = pneg %p127
      $region22: #{feed_forward.1} parent=5 // pred_check_branch
        %130 = sbr.rel (%p128) target = $region24
      $region23: #{feed_forward.1} parent=5 // pred_region
        // Predicated region
        $region25: #{feed_forward.1} parent=23 // pred_check
          %p131 = pneg %p32
        $region26: #{feed_forward.1} parent=23 // pred_check_branch
          %133 = sbr.rel (%p131) target = $region28
        $region27: #{feed_forward.1} parent=23 // pred_region
          %s134 = smul.u32 32, %s12
          %p135 = scmp.lt.s32.totalorder %s134, 63
          %s136 = scalar_select %p135, %s134, 63
          %s137 = smul.addr %s136, 4
          %s138 = scalar_lea.vmem %s0, %s137
          %s139 = smul.u32 32, %s12
        $region28: #{feed_forward.1} parent=23 // pred_fallthru
          _
      $region24: #{feed_forward.1} parent=5 // pred_fallthru
        _
      %p140 = scmp.le.s32.totalorder 1, %s12
      %p141 = scmp.lt.s32.totalorder %s12, 3
      %p142 = pnand %p140, %p141
      %p143 = pneg %p142
      // Predicated region
      $region29: #{feed_forward.1} parent=5 // pred_check
        _
      $region30: #{feed_forward.1} parent=5 // pred_check_branch
        %145 = sbr.rel (%p142) target = $region32
      $region31: #{feed_forward.1} parent=5 // pred_region
        %s146 = ssub.s32 %s12, 1
        %s147 = smul.u32 32, %s17
        %p148 = scmp.lt.s32.totalorder %s147, 63
        %s149 = scalar_select %p148, %s147, 63
        %s150 = smul.addr %s149, 4
        %s151 = scalar_lea.vmem %s0, %s150
        %p152 = pneg %p38
        %p153 = pneg %p35
        %p154 = pneg %p59
        %p155 = pneg %p56
        %p156 = pneg %p80
        %p157 = pneg %p77
        %p158 = pneg %p106
        %p159 = pneg %p103
        %s160 = sand.u32 %s93, 1
        %s161 = scalar_lea.sflag [#allocation3], %s160
        %s162 = sand.u32 %s93, 1
        %s163 = smul.addr %s162, 256
        %s164 = scalar_lea.vmem [#allocation2], %s163
        %s165 = smul.u32 32, %s17
        %p166 = scmp.lt.s32.totalorder %s165, 63
        %s167 = scalar_select %p166, %s165, 63
        %s168 = smul.addr %s167, 4
        %s169 = scalar_lea.vmem %s0, %s168
        %s170 = smul.u32 32, %s17
        %s171 = smul.u32 32, %s17
        %v173 = vld [vmem:[%s169] sm:$0xf]
        %v174 = vld [vmem:[%s169 + $0x4] sm:$0xf]
        %v175 = vld [vmem:[%s169 + $0x8] sm:$0xf]
        %v176 = vld [vmem:[%s169 + $0xc] sm:$0xf]
        %v177 = vld [vmem:[%s169 + $0x10] sm:$0xf]
        %v178 = vld [vmem:[%s169 + $0x14] sm:$0xf]
        %v179 = vld [vmem:[%s169 + $0x18] sm:$0xf]
        %v180 = vld [vmem:[%s169 + $0x1c] sm:$0xf]
        %v181 = vld [vmem:[%s169 + $0x20] sm:$0xf]
        %v182 = vld [vmem:[%s169 + $0x24] sm:$0xf]
        %v183 = vld [vmem:[%s169 + $0x28] sm:$0xf]
        %v184 = vld [vmem:[%s169 + $0x2c] sm:$0xf]
        %v185 = vld [vmem:[%s169 + $0x30] sm:$0xf]
        %v186 = vld [vmem:[%s169 + $0x34] sm:$0xf]
        %v187 = vld [vmem:[%s169 + $0x38] sm:$0xf]
        %v188 = vld [vmem:[%s169 + $0x3c] sm:$0xf]
        %v189 = vld [vmem:[%s169 + $0x40] sm:$0xf]
        %v190 = vld [vmem:[%s169 + $0x44] sm:$0xf]
        %v191 = vld [vmem:[%s169 + $0x48] sm:$0xf]
        %v192 = vld [vmem:[%s169 + $0x4c] sm:$0xf]
        %v193 = vld [vmem:[%s169 + $0x50] sm:$0xf]
        %v194 = vld [vmem:[%s169 + $0x54] sm:$0xf]
        %v195 = vld [vmem:[%s169 + $0x58] sm:$0xf]
        %v196 = vld [vmem:[%s169 + $0x5c] sm:$0xf]
        %v197 = vld [vmem:[%s169 + $0x60] sm:$0xf]
        %v198 = vld [vmem:[%s169 + $0x64] sm:$0xf]
        %v199 = vld [vmem:[%s169 + $0x68] sm:$0xf]
        %v200 = vld [vmem:[%s169 + $0x6c] sm:$0xf]
        %v201 = vld [vmem:[%s169 + $0x70] sm:$0xf]
        %v202 = vld [vmem:[%s169 + $0x74] sm:$0xf]
        %v203 = vld [vmem:[%s169 + $0x78] sm:$0xf]
        %v204 = vld [vmem:[%s169 + $0x7c] sm:$0xf]
        %v205 = vld [vmem:[%s1] sm:$0xff]
        %v206 = vld [vmem:[%s1 + $0x8] sm:$0xff]
        %v207 = vld [vmem:[%s1 + $0x10] sm:$0xff]
        %v208 = vld [vmem:[%s1 + $0x18] sm:$0xff]
        %v209 = vld [vmem:[%s1 + $0x20] sm:$0xff]
        %v210 = vld [vmem:[%s1 + $0x28] sm:$0xff]
        %v211 = vld [vmem:[%s1 + $0x30] sm:$0xff]
        %v212 = vld [vmem:[%s1 + $0x38] sm:$0xff]
        %v213 = vld [vmem:[%s1 + $0x40] sm:$0xff]
        %v214 = vld [vmem:[%s1 + $0x48] sm:$0xff]
        %v215 = vld [vmem:[%s1 + $0x50] sm:$0xff]
        %v216 = vld [vmem:[%s1 + $0x58] sm:$0xff]
        %v217 = vld [vmem:[%s1 + $0x60] sm:$0xff]
        %v218 = vld [vmem:[%s1 + $0x68] sm:$0xff]
        %v219 = vld [vmem:[%s1 + $0x70] sm:$0xff]
        %v220 = vld [vmem:[%s1 + $0x78] sm:$0xff]
        %v221 = vld [vmem:[%s1 + $0x80] sm:$0xff]
        %v222 = vld [vmem:[%s1 + $0x88] sm:$0xff]
        %v223 = vld [vmem:[%s1 + $0x90] sm:$0xff]
        %v224 = vld [vmem:[%s1 + $0x98] sm:$0xff]
        %v225 = vld [vmem:[%s1 + $0xa0] sm:$0xff]
        %v226 = vld [vmem:[%s1 + $0xa8] sm:$0xff]
        %v227 = vld [vmem:[%s1 + $0xb0] sm:$0xff]
        %v228 = vld [vmem:[%s1 + $0xb8] sm:$0xff]
        %v229 = vld [vmem:[%s1 + $0xc0] sm:$0xff]
        %v230 = vld [vmem:[%s1 + $0xc8] sm:$0xff]
        %v231 = vld [vmem:[%s1 + $0xd0] sm:$0xff]
        %v232 = vld [vmem:[%s1 + $0xd8] sm:$0xff]
        %v233 = vld [vmem:[%s1 + $0xe0] sm:$0xff]
        %v234 = vld [vmem:[%s1 + $0xe8] sm:$0xff]
        %v235 = vld [vmem:[%s1 + $0xf0] sm:$0xff]
        %v236 = vld [vmem:[%s1 + $0xf8] sm:$0xff]
        %v237 = vld [vmem:[%s1 + $0x100] sm:$0xff]
        %v238 = vld [vmem:[%s1 + $0x108] sm:$0xff]
        %v239 = vld [vmem:[%s1 + $0x110] sm:$0xff]
        %v240 = vld [vmem:[%s1 + $0x118] sm:$0xff]
        %v241 = vld [vmem:[%s1 + $0x120] sm:$0xff]
        %v242 = vld [vmem:[%s1 + $0x128] sm:$0xff]
        %v243 = vld [vmem:[%s1 + $0x130] sm:$0xff]
        %v244 = vld [vmem:[%s1 + $0x138] sm:$0xff]
        %v245 = vld [vmem:[%s1 + $0x140] sm:$0xff]
        %v246 = vld [vmem:[%s1 + $0x148] sm:$0xff]
        %v247 = vld [vmem:[%s1 + $0x150] sm:$0xff]
        %v248 = vld [vmem:[%s1 + $0x158] sm:$0xff]
        %v249 = vld [vmem:[%s1 + $0x160] sm:$0xff]
        %v250 = vld [vmem:[%s1 + $0x168] sm:$0xff]
        %v251 = vld [vmem:[%s1 + $0x170] sm:$0xff]
        %v252 = vld [vmem:[%s1 + $0x178] sm:$0xff]
        %v253 = vld [vmem:[%s1 + $0x180] sm:$0xff]
        %v254 = vld [vmem:[%s1 + $0x188] sm:$0xff]
        %v255 = vld [vmem:[%s1 + $0x190] sm:$0xff]
        %v256 = vld [vmem:[%s1 + $0x198] sm:$0xff]
        %v257 = vld [vmem:[%s1 + $0x1a0] sm:$0xff]
        %v258 = vld [vmem:[%s1 + $0x1a8] sm:$0xff]
        %v259 = vld [vmem:[%s1 + $0x1b0] sm:$0xff]
        %v260 = vld [vmem:[%s1 + $0x1b8] sm:$0xff]
        %v261 = vld [vmem:[%s1 + $0x1c0] sm:$0xff]
        %v262 = vld [vmem:[%s1 + $0x1c8] sm:$0xff]
        %v263 = vld [vmem:[%s1 + $0x1d0] sm:$0xff]
        %v264 = vld [vmem:[%s1 + $0x1d8] sm:$0xff]
        %v265 = vld [vmem:[%s1 + $0x1e0] sm:$0xff]
        %v266 = vld [vmem:[%s1 + $0x1e8] sm:$0xff]
        %v267 = vld [vmem:[%s1 + $0x1f0] sm:$0xff]
        %v268 = vld [vmem:[%s1 + $0x1f8] sm:$0xff]
        %v301 = vunpack.c.l.b16 %v173
        %v302 = vunpack.c.l.b16 %v174
        %v303 = vunpack.c.l.b16 %v175
        %v304 = vunpack.c.l.b16 %v176
        %v305 = vunpack.c.l.b16 %v177
        %v306 = vunpack.c.l.b16 %v178
        %v307 = vunpack.c.l.b16 %v179
        %v308 = vunpack.c.l.b16 %v180
        %v309 = vunpack.c.l.b16 %v181
        %v310 = vunpack.c.l.b16 %v182
        %v311 = vunpack.c.l.b16 %v183
        %v312 = vunpack.c.l.b16 %v184
        %v313 = vunpack.c.l.b16 %v185
        %v314 = vunpack.c.l.b16 %v186
        %v315 = vunpack.c.l.b16 %v187
        %v316 = vunpack.c.l.b16 %v188
        %v317 = vunpack.c.l.b16 %v189
        %v318 = vunpack.c.l.b16 %v190
        %v319 = vunpack.c.l.b16 %v191
        %v320 = vunpack.c.l.b16 %v192
        %v321 = vunpack.c.l.b16 %v193
        %v322 = vunpack.c.l.b16 %v194
        %v323 = vunpack.c.l.b16 %v195
        %v324 = vunpack.c.l.b16 %v196
        %v325 = vunpack.c.l.b16 %v197
        %v326 = vunpack.c.l.b16 %v198
        %v327 = vunpack.c.l.b16 %v199
        %v328 = vunpack.c.l.b16 %v200
        %v329 = vunpack.c.l.b16 %v201
        %v330 = vunpack.c.l.b16 %v202
        %v331 = vunpack.c.l.b16 %v203
        %v332 = vunpack.c.l.b16 %v204
        %v333 = vpack.c.b16 %v302, %v301
        %v334 = vpack.c.b16 %v304, %v303
        %v335 = vpack.c.b16 %v306, %v305
        %v336 = vpack.c.b16 %v308, %v307
        %v337 = vpack.c.b16 %v310, %v309
        %v338 = vpack.c.b16 %v312, %v311
        %v339 = vpack.c.b16 %v314, %v313
        %v340 = vpack.c.b16 %v316, %v315
        %v341 = vpack.c.b16 %v318, %v317
        %v342 = vpack.c.b16 %v320, %v319
        %v343 = vpack.c.b16 %v322, %v321
        %v344 = vpack.c.b16 %v324, %v323
        %v345 = vpack.c.b16 %v326, %v325
        %v346 = vpack.c.b16 %v328, %v327
        %v347 = vpack.c.b16 %v330, %v329
        %v348 = vpack.c.b16 %v332, %v331
        %v429 = vunpack.c.l.b16 %v205
        %v430 = vunpack.c.h.b16 %v205
        %v431 = vunpack.c.l.b16 %v206
        %v432 = vunpack.c.h.b16 %v206
        %v433 = vunpack.c.l.b16 %v207
        %v434 = vunpack.c.h.b16 %v207
        %v435 = vunpack.c.l.b16 %v208
        %v436 = vunpack.c.h.b16 %v208
        %v437 = vunpack.c.l.b16 %v209
        %v438 = vunpack.c.h.b16 %v209
        %v439 = vunpack.c.l.b16 %v210
        %v440 = vunpack.c.h.b16 %v210
        %v441 = vunpack.c.l.b16 %v211
        %v442 = vunpack.c.h.b16 %v211
        %v443 = vunpack.c.l.b16 %v212
        %v444 = vunpack.c.h.b16 %v212
        %v445 = vunpack.c.l.b16 %v213
        %v446 = vunpack.c.h.b16 %v213
        %v447 = vunpack.c.l.b16 %v214
        %v448 = vunpack.c.h.b16 %v214
        %v449 = vunpack.c.l.b16 %v215
        %v450 = vunpack.c.h.b16 %v215
        %v451 = vunpack.c.l.b16 %v216
        %v452 = vunpack.c.h.b16 %v216
        %v453 = vunpack.c.l.b16 %v217
        %v454 = vunpack.c.h.b16 %v217
        %v455 = vunpack.c.l.b16 %v218
        %v456 = vunpack.c.h.b16 %v218
        %v457 = vunpack.c.l.b16 %v219
        %v458 = vunpack.c.h.b16 %v219
        %v459 = vunpack.c.l.b16 %v220
        %v460 = vunpack.c.h.b16 %v220
        %v461 = vunpack.c.l.b16 %v221
        %v462 = vunpack.c.h.b16 %v221
        %v463 = vunpack.c.l.b16 %v222
        %v464 = vunpack.c.h.b16 %v222
        %v465 = vunpack.c.l.b16 %v223
        %v466 = vunpack.c.h.b16 %v223
        %v467 = vunpack.c.l.b16 %v224
        %v468 = vunpack.c.h.b16 %v224
        %v469 = vunpack.c.l.b16 %v225
        %v470 = vunpack.c.h.b16 %v225
        %v471 = vunpack.c.l.b16 %v226
        %v472 = vunpack.c.h.b16 %v226
        %v473 = vunpack.c.l.b16 %v227
        %v474 = vunpack.c.h.b16 %v227
        %v475 = vunpack.c.l.b16 %v228
        %v476 = vunpack.c.h.b16 %v228
        %v477 = vunpack.c.l.b16 %v229
        %v478 = vunpack.c.h.b16 %v229
        %v479 = vunpack.c.l.b16 %v230
        %v480 = vunpack.c.h.b16 %v230
        %v481 = vunpack.c.l.b16 %v231
        %v482 = vunpack.c.h.b16 %v231
        %v483 = vunpack.c.l.b16 %v232
        %v484 = vunpack.c.h.b16 %v232
        %v485 = vunpack.c.l.b16 %v233
        %v486 = vunpack.c.h.b16 %v233
        %v487 = vunpack.c.l.b16 %v234
        %v488 = vunpack.c.h.b16 %v234
        %v489 = vunpack.c.l.b16 %v235
        %v490 = vunpack.c.h.b16 %v235
        %v491 = vunpack.c.l.b16 %v236
        %v492 = vunpack.c.h.b16 %v236
        %v493 = vunpack.c.l.b16 %v237
        %v494 = vunpack.c.h.b16 %v237
        %v495 = vunpack.c.l.b16 %v238
        %v496 = vunpack.c.h.b16 %v238
        %v497 = vunpack.c.l.b16 %v239
        %v498 = vunpack.c.h.b16 %v239
        %v499 = vunpack.c.l.b16 %v240
        %v500 = vunpack.c.h.b16 %v240
        %v501 = vunpack.c.l.b16 %v241
        %v502 = vunpack.c.h.b16 %v241
        %v503 = vunpack.c.l.b16 %v242
        %v504 = vunpack.c.h.b16 %v242
        %v505 = vunpack.c.l.b16 %v243
        %v506 = vunpack.c.h.b16 %v243
        %v507 = vunpack.c.l.b16 %v244
        %v508 = vunpack.c.h.b16 %v244
        %v509 = vunpack.c.l.b16 %v245
        %v510 = vunpack.c.h.b16 %v245
        %v511 = vunpack.c.l.b16 %v246
        %v512 = vunpack.c.h.b16 %v246
        %v513 = vunpack.c.l.b16 %v247
        %v514 = vunpack.c.h.b16 %v247
        %v515 = vunpack.c.l.b16 %v248
        %v516 = vunpack.c.h.b16 %v248
        %v517 = vunpack.c.l.b16 %v249
        %v518 = vunpack.c.h.b16 %v249
        %v519 = vunpack.c.l.b16 %v250
        %v520 = vunpack.c.h.b16 %v250
        %v521 = vunpack.c.l.b16 %v251
        %v522 = vunpack.c.h.b16 %v251
        %v523 = vunpack.c.l.b16 %v252
        %v524 = vunpack.c.h.b16 %v252
        %v525 = vunpack.c.l.b16 %v253
        %v526 = vunpack.c.h.b16 %v253
        %v527 = vunpack.c.l.b16 %v254
        %v528 = vunpack.c.h.b16 %v254
        %v529 = vunpack.c.l.b16 %v255
        %v530 = vunpack.c.h.b16 %v255
        %v531 = vunpack.c.l.b16 %v256
        %v532 = vunpack.c.h.b16 %v256
        %v533 = vunpack.c.l.b16 %v257
        %v534 = vunpack.c.h.b16 %v257
        %v535 = vunpack.c.l.b16 %v258
        %v536 = vunpack.c.h.b16 %v258
        %v537 = vunpack.c.l.b16 %v259
        %v538 = vunpack.c.h.b16 %v259
        %v539 = vunpack.c.l.b16 %v260
        %v540 = vunpack.c.h.b16 %v260
        %v541 = vunpack.c.l.b16 %v261
        %v542 = vunpack.c.h.b16 %v261
        %v543 = vunpack.c.l.b16 %v262
        %v544 = vunpack.c.h.b16 %v262
        %v545 = vunpack.c.l.b16 %v263
        %v546 = vunpack.c.h.b16 %v263
        %v547 = vunpack.c.l.b16 %v264
        %v548 = vunpack.c.h.b16 %v264
        %v549 = vunpack.c.l.b16 %v265
        %v550 = vunpack.c.h.b16 %v265
        %v551 = vunpack.c.l.b16 %v266
        %v552 = vunpack.c.h.b16 %v266
        %v553 = vunpack.c.l.b16 %v267
        %v554 = vunpack.c.h.b16 %v267
        %v555 = vunpack.c.l.b16 %v268
        %v556 = vunpack.c.h.b16 %v268
        %v557 = vpack.c.b16 %v437, %v429
        %v558 = vpack.c.b16 %v438, %v430
        %v559 = vpack.c.b16 %v439, %v431
        %v560 = vpack.c.b16 %v440, %v432
        %v561 = vpack.c.b16 %v441, %v433
        %v562 = vpack.c.b16 %v442, %v434
        %v563 = vpack.c.b16 %v443, %v435
        %v564 = vpack.c.b16 %v444, %v436
        %v565 = vpack.c.b16 %v453, %v445
        %v566 = vpack.c.b16 %v454, %v446
        %v567 = vpack.c.b16 %v455, %v447
        %v568 = vpack.c.b16 %v456, %v448
        %v569 = vpack.c.b16 %v457, %v449
        %v570 = vpack.c.b16 %v458, %v450
        %v571 = vpack.c.b16 %v459, %v451
        %v572 = vpack.c.b16 %v460, %v452
        %v573 = vpack.c.b16 %v469, %v461
        %v574 = vpack.c.b16 %v470, %v462
        %v575 = vpack.c.b16 %v471, %v463
        %v576 = vpack.c.b16 %v472, %v464
        %v577 = vpack.c.b16 %v473, %v465
        %v578 = vpack.c.b16 %v474, %v466
        %v579 = vpack.c.b16 %v475, %v467
        %v580 = vpack.c.b16 %v476, %v468
        %v581 = vpack.c.b16 %v485, %v477
        %v582 = vpack.c.b16 %v486, %v478
        %v583 = vpack.c.b16 %v487, %v479
        %v584 = vpack.c.b16 %v488, %v480
        %v585 = vpack.c.b16 %v489, %v481
        %v586 = vpack.c.b16 %v490, %v482
        %v587 = vpack.c.b16 %v491, %v483
        %v588 = vpack.c.b16 %v492, %v484
        %v589 = vpack.c.b16 %v501, %v493
        %v590 = vpack.c.b16 %v502, %v494
        %v591 = vpack.c.b16 %v503, %v495
        %v592 = vpack.c.b16 %v504, %v496
        %v593 = vpack.c.b16 %v505, %v497
        %v594 = vpack.c.b16 %v506, %v498
        %v595 = vpack.c.b16 %v507, %v499
        %v596 = vpack.c.b16 %v508, %v500
        %v597 = vpack.c.b16 %v517, %v509
        %v598 = vpack.c.b16 %v518, %v510
        %v599 = vpack.c.b16 %v519, %v511
        %v600 = vpack.c.b16 %v520, %v512
        %v601 = vpack.c.b16 %v521, %v513
        %v602 = vpack.c.b16 %v522, %v514
        %v603 = vpack.c.b16 %v523, %v515
        %v604 = vpack.c.b16 %v524, %v516
        %v605 = vpack.c.b16 %v533, %v525
        %v606 = vpack.c.b16 %v534, %v526
        %v607 = vpack.c.b16 %v535, %v527
        %v608 = vpack.c.b16 %v536, %v528
        %v609 = vpack.c.b16 %v537, %v529
        %v610 = vpack.c.b16 %v538, %v530
        %v611 = vpack.c.b16 %v539, %v531
        %v612 = vpack.c.b16 %v540, %v532
        %v613 = vpack.c.b16 %v549, %v541
        %v614 = vpack.c.b16 %v550, %v542
        %v615 = vpack.c.b16 %v551, %v543
        %v616 = vpack.c.b16 %v552, %v544
        %v617 = vpack.c.b16 %v553, %v545
        %v618 = vpack.c.b16 %v554, %v546
        %v619 = vpack.c.b16 %v555, %v547
        %v620 = vpack.c.b16 %v556, %v548
        %685 = vmatprep.subr.bf16.mxu0 %v614
        %686 = vmatpush1.bf16.msra.mxu0 %v613
        %687 = vmatprep.subr.bf16.mxu0 %v606
        %688 = vmatpush1.bf16.msra.mxu0 %v605
        %689 = vmatprep.subr.bf16.mxu0 %v598
        %690 = vmatpush1.bf16.msra.mxu0 %v597
        %691 = vmatprep.subr.bf16.mxu0 %v590
        %692 = vmatpush1.bf16.msra.mxu0 %v589
        %693 = vmatprep.subr.bf16.mxu0 %v582
        %694 = vmatpush1.bf16.msra.mxu0 %v581
        %695 = vmatprep.subr.bf16.mxu0 %v574
        %696 = vmatpush1.bf16.msra.mxu0 %v573
        %697 = vmatprep.subr.bf16.mxu0 %v566
        %698 = vmatpush1.bf16.msra.mxu0 %v565
        %699 = vmatprep.subr.bf16.mxu0 %v558
        %700 = vmatpush1.bf16.msra.mxu0 %v557
        %701 = vmatprep.subr.bf16.mxu0 0
        %702 = vmatpush2.bf16.msra.mxu0 0
        %703 = vmatprep.subr.bf16.mxu0 0
        %704 = vmatpush2.bf16.msra.mxu0 0
        %705 = vmatprep.subr.bf16.mxu0 0
        %706 = vmatpush2.bf16.msra.mxu0 0
        %707 = vmatprep.subr.bf16.mxu0 0
        %708 = vmatpush2.bf16.msra.mxu0 0
        %709 = vmatprep.subr.bf16.mxu0 0
        %710 = vmatpush2.bf16.msra.mxu0 0
        %711 = vmatprep.subr.bf16.mxu0 0
        %712 = vmatpush2.bf16.msra.mxu0 0
        %713 = vmatprep.subr.bf16.mxu0 0
        %714 = vmatpush2.bf16.msra.mxu0 0
        %715 = vmatprep.subr.bf16.mxu0 0
        %716 = vmatpush2.bf16.msra.mxu0 0
        %717 = vmatprep.mubr.bf16.mxu0 0
        %718 = vmatmul.mubr.bf16.gmra.mxu0 %v333
        %v719 = vpop.f32.mrf.mxu0
        %v720 = vadd.f32 0.0, %v719
        %v721 = vpop.f32.mrf.mxu0
        %v722 = vadd.f32 0.0, %v721
        %v723 = vpop.f32.mrf.mxu0
        %v724 = vadd.f32 0.0, %v723
        %v725 = vpop.f32.mrf.mxu0
        %v726 = vadd.f32 0.0, %v725
        %727 = vmatprep.mubr.bf16.mxu0 0
        %728 = vmatmul.mubr.bf16.gmra.mxu0 %v334
        %v729 = vpop.f32.mrf.mxu0
        %v730 = vadd.f32 0.0, %v729
        %v731 = vpop.f32.mrf.mxu0
        %v732 = vadd.f32 0.0, %v731
        %v733 = vpop.f32.mrf.mxu0
        %v734 = vadd.f32 0.0, %v733
        %v735 = vpop.f32.mrf.mxu0
        %v736 = vadd.f32 0.0, %v735
        %737 = vmatprep.mubr.bf16.mxu0 0
        %738 = vmatmul.mubr.bf16.gmra.mxu0 %v335
        %v739 = vpop.f32.mrf.mxu0
        %v740 = vadd.f32 0.0, %v739
        %v741 = vpop.f32.mrf.mxu0
        %v742 = vadd.f32 0.0, %v741
        %v743 = vpop.f32.mrf.mxu0
        %v744 = vadd.f32 0.0, %v743
        %v745 = vpop.f32.mrf.mxu0
        %v746 = vadd.f32 0.0, %v745
        %747 = vmatprep.mubr.bf16.mxu0 0
        %748 = vmatmul.mubr.bf16.gmra.mxu0 %v336
        %v749 = vpop.f32.mrf.mxu0
        %v750 = vadd.f32 0.0, %v749
        %v751 = vpop.f32.mrf.mxu0
        %v752 = vadd.f32 0.0, %v751
        %v753 = vpop.f32.mrf.mxu0
        %v754 = vadd.f32 0.0, %v753
        %v755 = vpop.f32.mrf.mxu0
        %v756 = vadd.f32 0.0, %v755
        %757 = vmatprep.mubr.bf16.mxu0 0
        %758 = vmatmul.mubr.bf16.gmra.mxu0 %v337
        %v759 = vpop.f32.mrf.mxu0
        %v760 = vadd.f32 0.0, %v759
        %v761 = vpop.f32.mrf.mxu0
        %v762 = vadd.f32 0.0, %v761
        %v763 = vpop.f32.mrf.mxu0
        %v764 = vadd.f32 0.0, %v763
        %v765 = vpop.f32.mrf.mxu0
        %v766 = vadd.f32 0.0, %v765
        %767 = vmatprep.mubr.bf16.mxu0 0
        %768 = vmatmul.mubr.bf16.gmra.mxu0 %v338
        %v769 = vpop.f32.mrf.mxu0
        %v770 = vadd.f32 0.0, %v769
        %v771 = vpop.f32.mrf.mxu0
        %v772 = vadd.f32 0.0, %v771
        %v773 = vpop.f32.mrf.mxu0
        %v774 = vadd.f32 0.0, %v773
        %v775 = vpop.f32.mrf.mxu0
        %v776 = vadd.f32 0.0, %v775
        %777 = vmatprep.mubr.bf16.mxu0 0
        %778 = vmatmul.mubr.bf16.gmra.mxu0 %v339
        %v779 = vpop.f32.mrf.mxu0
        %v780 = vadd.f32 0.0, %v779
        %v781 = vpop.f32.mrf.mxu0
        %v782 = vadd.f32 0.0, %v781
        %v783 = vpop.f32.mrf.mxu0
        %v784 = vadd.f32 0.0, %v783
        %v785 = vpop.f32.mrf.mxu0
        %v786 = vadd.f32 0.0, %v785
        %787 = vmatprep.mubr.bf16.mxu0 0
        %788 = vmatmul.mubr.bf16.gmra.mxu0 %v340
        %v789 = vpop.f32.mrf.mxu0
        %v790 = vadd.f32 0.0, %v789
        %v791 = vpop.f32.mrf.mxu0
        %v792 = vadd.f32 0.0, %v791
        %v793 = vpop.f32.mrf.mxu0
        %v794 = vadd.f32 0.0, %v793
        %v795 = vpop.f32.mrf.mxu0
        %v796 = vadd.f32 0.0, %v795
        %797 = vmatprep.mubr.bf16.mxu0 0
        %798 = vmatmul.mubr.bf16.gmra.mxu0 %v341
        %v799 = vpop.f32.mrf.mxu0
        %v800 = vadd.f32 0.0, %v799
        %v801 = vpop.f32.mrf.mxu0
        %v802 = vadd.f32 0.0, %v801
        %v803 = vpop.f32.mrf.mxu0
        %v804 = vadd.f32 0.0, %v803
        %v805 = vpop.f32.mrf.mxu0
        %v806 = vadd.f32 0.0, %v805
        %807 = vmatprep.mubr.bf16.mxu0 0
        %808 = vmatmul.mubr.bf16.gmra.mxu0 %v342
        %v809 = vpop.f32.mrf.mxu0
        %v810 = vadd.f32 0.0, %v809
        %v811 = vpop.f32.mrf.mxu0
        %v812 = vadd.f32 0.0, %v811
        %v813 = vpop.f32.mrf.mxu0
        %v814 = vadd.f32 0.0, %v813
        %v815 = vpop.f32.mrf.mxu0
        %v816 = vadd.f32 0.0, %v815
        %817 = vmatprep.mubr.bf16.mxu0 0
        %818 = vmatmul.mubr.bf16.gmra.mxu0 %v343
        %v819 = vpop.f32.mrf.mxu0
        %v820 = vadd.f32 0.0, %v819
        %v821 = vpop.f32.mrf.mxu0
        %v822 = vadd.f32 0.0, %v821
        %v823 = vpop.f32.mrf.mxu0
        %v824 = vadd.f32 0.0, %v823
        %v825 = vpop.f32.mrf.mxu0
        %v826 = vadd.f32 0.0, %v825
        %827 = vmatprep.mubr.bf16.mxu0 0
        %828 = vmatmul.mubr.bf16.gmra.mxu0 %v344
        %v829 = vpop.f32.mrf.mxu0
        %v830 = vadd.f32 0.0, %v829
        %v831 = vpop.f32.mrf.mxu0
        %v832 = vadd.f32 0.0, %v831
        %v833 = vpop.f32.mrf.mxu0
        %v834 = vadd.f32 0.0, %v833
        %v835 = vpop.f32.mrf.mxu0
        %v836 = vadd.f32 0.0, %v835
        %837 = vmatprep.mubr.bf16.mxu0 0
        %838 = vmatmul.mubr.bf16.gmra.mxu0 %v345
        %v839 = vpop.f32.mrf.mxu0
        %v840 = vadd.f32 0.0, %v839
        %v841 = vpop.f32.mrf.mxu0
        %v842 = vadd.f32 0.0, %v841
        %v843 = vpop.f32.mrf.mxu0
        %v844 = vadd.f32 0.0, %v843
        %v845 = vpop.f32.mrf.mxu0
        %v846 = vadd.f32 0.0, %v845
        %847 = vmatprep.mubr.bf16.mxu0 0
        %848 = vmatmul.mubr.bf16.gmra.mxu0 %v346
        %v849 = vpop.f32.mrf.mxu0
        %v850 = vadd.f32 0.0, %v849
        %v851 = vpop.f32.mrf.mxu0
        %v852 = vadd.f32 0.0, %v851
        %v853 = vpop.f32.mrf.mxu0
        %v854 = vadd.f32 0.0, %v853
        %v855 = vpop.f32.mrf.mxu0
        %v856 = vadd.f32 0.0, %v855
        %857 = vmatprep.mubr.bf16.mxu0 0
        %858 = vmatmul.mubr.bf16.gmra.mxu0 %v347
        %v859 = vpop.f32.mrf.mxu0
        %v860 = vadd.f32 0.0, %v859
        %v861 = vpop.f32.mrf.mxu0
        %v862 = vadd.f32 0.0, %v861
        %v863 = vpop.f32.mrf.mxu0
        %v864 = vadd.f32 0.0, %v863
        %v865 = vpop.f32.mrf.mxu0
        %v866 = vadd.f32 0.0, %v865
        %867 = vmatprep.mubr.bf16.mxu0 0
        %868 = vmatmul.mubr.bf16.gmra.mxu0 %v348
        %v869 = vpop.f32.mrf.mxu0
        %v870 = vadd.f32 0.0, %v869
        %v871 = vpop.f32.mrf.mxu0
        %v872 = vadd.f32 0.0, %v871
        %v873 = vpop.f32.mrf.mxu0
        %v874 = vadd.f32 0.0, %v873
        %v875 = vpop.f32.mrf.mxu0
        %v876 = vadd.f32 0.0, %v875
        %877 = vdwg.mxu0
        %878 = vmatprep.subr.bf16.mxu0 %v616
        %879 = vmatpush1.bf16.msra.mxu0 %v615
        %880 = vmatprep.subr.bf16.mxu0 %v608
        %881 = vmatpush1.bf16.msra.mxu0 %v607
        %882 = vmatprep.subr.bf16.mxu0 %v600
        %883 = vmatpush1.bf16.msra.mxu0 %v599
        %884 = vmatprep.subr.bf16.mxu0 %v592
        %885 = vmatpush1.bf16.msra.mxu0 %v591
        %886 = vmatprep.subr.bf16.mxu0 %v584
        %887 = vmatpush1.bf16.msra.mxu0 %v583
        %888 = vmatprep.subr.bf16.mxu0 %v576
        %889 = vmatpush1.bf16.msra.mxu0 %v575
        %890 = vmatprep.subr.bf16.mxu0 %v568
        %891 = vmatpush1.bf16.msra.mxu0 %v567
        %892 = vmatprep.subr.bf16.mxu0 %v560
        %893 = vmatpush1.bf16.msra.mxu0 %v559
        %894 = vmatprep.subr.bf16.mxu0 0
        %895 = vmatpush2.bf16.msra.mxu0 0
        %896 = vmatprep.subr.bf16.mxu0 0
        %897 = vmatpush2.bf16.msra.mxu0 0
        %898 = vmatprep.subr.bf16.mxu0 0
        %899 = vmatpush2.bf16.msra.mxu0 0
        %900 = vmatprep.subr.bf16.mxu0 0
        %901 = vmatpush2.bf16.msra.mxu0 0
        %902 = vmatprep.subr.bf16.mxu0 0
        %903 = vmatpush2.bf16.msra.mxu0 0
        %904 = vmatprep.subr.bf16.mxu0 0
        %905 = vmatpush2.bf16.msra.mxu0 0
        %906 = vmatprep.subr.bf16.mxu0 0
        %907 = vmatpush2.bf16.msra.mxu0 0
        %908 = vmatprep.subr.bf16.mxu0 0
        %909 = vmatpush2.bf16.msra.mxu0 0
        %910 = vmatprep.mubr.bf16.mxu0 0
        %911 = vmatmul.mubr.bf16.gmra.mxu0 %v333
        %v912 = vpop.f32.mrf.mxu0
        %v913 = vadd.f32 0.0, %v912
        %v914 = vpop.f32.mrf.mxu0
        %v915 = vadd.f32 0.0, %v914
        %v916 = vpop.f32.mrf.mxu0
        %v917 = vadd.f32 0.0, %v916
        %v918 = vpop.f32.mrf.mxu0
        %v919 = vadd.f32 0.0, %v918
        %920 = vmatprep.mubr.bf16.mxu0 0
        %921 = vmatmul.mubr.bf16.gmra.mxu0 %v334
        %v922 = vpop.f32.mrf.mxu0
        %v923 = vadd.f32 0.0, %v922
        %v924 = vpop.f32.mrf.mxu0
        %v925 = vadd.f32 0.0, %v924
        %v926 = vpop.f32.mrf.mxu0
        %v927 = vadd.f32 0.0, %v926
        %v928 = vpop.f32.mrf.mxu0
        %v929 = vadd.f32 0.0, %v928
        %930 = vmatprep.mubr.bf16.mxu0 0
        %931 = vmatmul.mubr.bf16.gmra.mxu0 %v335
        %v932 = vpop.f32.mrf.mxu0
        %v933 = vadd.f32 0.0, %v932
        %v934 = vpop.f32.mrf.mxu0
        %v935 = vadd.f32 0.0, %v934
        %v936 = vpop.f32.mrf.mxu0
        %v937 = vadd.f32 0.0, %v936
        %v938 = vpop.f32.mrf.mxu0
        %v939 = vadd.f32 0.0, %v938
        %940 = vmatprep.mubr.bf16.mxu0 0
        %941 = vmatmul.mubr.bf16.gmra.mxu0 %v336
        %v942 = vpop.f32.mrf.mxu0
        %v943 = vadd.f32 0.0, %v942
        %v944 = vpop.f32.mrf.mxu0
        %v945 = vadd.f32 0.0, %v944
        %v946 = vpop.f32.mrf.mxu0
        %v947 = vadd.f32 0.0, %v946
        %v948 = vpop.f32.mrf.mxu0
        %v949 = vadd.f32 0.0, %v948
        %950 = vmatprep.mubr.bf16.mxu0 0
        %951 = vmatmul.mubr.bf16.gmra.mxu0 %v337
        %v952 = vpop.f32.mrf.mxu0
        %v953 = vadd.f32 0.0, %v952
        %v954 = vpop.f32.mrf.mxu0
        %v955 = vadd.f32 0.0, %v954
        %v956 = vpop.f32.mrf.mxu0
        %v957 = vadd.f32 0.0, %v956
        %v958 = vpop.f32.mrf.mxu0
        %v959 = vadd.f32 0.0, %v958
        %960 = vmatprep.mubr.bf16.mxu0 0
        %961 = vmatmul.mubr.bf16.gmra.mxu0 %v338
        %v962 = vpop.f32.mrf.mxu0
        %v963 = vadd.f32 0.0, %v962
        %v964 = vpop.f32.mrf.mxu0
        %v965 = vadd.f32 0.0, %v964
        %v966 = vpop.f32.mrf.mxu0
        %v967 = vadd.f32 0.0, %v966
        %v968 = vpop.f32.mrf.mxu0
        %v969 = vadd.f32 0.0, %v968
        %970 = vmatprep.mubr.bf16.mxu0 0
        %971 = vmatmul.mubr.bf16.gmra.mxu0 %v339
        %v972 = vpop.f32.mrf.mxu0
        %v973 = vadd.f32 0.0, %v972
        %v974 = vpop.f32.mrf.mxu0
        %v975 = vadd.f32 0.0, %v974
        %v976 = vpop.f32.mrf.mxu0
        %v977 = vadd.f32 0.0, %v976
        %v978 = vpop.f32.mrf.mxu0
        %v979 = vadd.f32 0.0, %v978
        %980 = vmatprep.mubr.bf16.mxu0 0
        %981 = vmatmul.mubr.bf16.gmra.mxu0 %v340
        %v982 = vpop.f32.mrf.mxu0
        %v983 = vadd.f32 0.0, %v982
        %v984 = vpop.f32.mrf.mxu0
        %v985 = vadd.f32 0.0, %v984
        %v986 = vpop.f32.mrf.mxu0
        %v987 = vadd.f32 0.0, %v986
        %v988 = vpop.f32.mrf.mxu0
        %v989 = vadd.f32 0.0, %v988
        %990 = vmatprep.mubr.bf16.mxu0 0
        %991 = vmatmul.mubr.bf16.gmra.mxu0 %v341
        %v992 = vpop.f32.mrf.mxu0
        %v993 = vadd.f32 0.0, %v992
        %v994 = vpop.f32.mrf.mxu0
        %v995 = vadd.f32 0.0, %v994
        %v996 = vpop.f32.mrf.mxu0
        %v997 = vadd.f32 0.0, %v996
        %v998 = vpop.f32.mrf.mxu0
        %v999 = vadd.f32 0.0, %v998
        %1000 = vmatprep.mubr.bf16.mxu0 0
        %1001 = vmatmul.mubr.bf16.gmra.mxu0 %v342
        %v1002 = vpop.f32.mrf.mxu0
        %v1003 = vadd.f32 0.0, %v1002
        %v1004 = vpop.f32.mrf.mxu0
        %v1005 = vadd.f32 0.0, %v1004
        %v1006 = vpop.f32.mrf.mxu0
        %v1007 = vadd.f32 0.0, %v1006
        %v1008 = vpop.f32.mrf.mxu0
        %v1009 = vadd.f32 0.0, %v1008
        %1010 = vmatprep.mubr.bf16.mxu0 0
        %1011 = vmatmul.mubr.bf16.gmra.mxu0 %v343
        %v1012 = vpop.f32.mrf.mxu0
        %v1013 = vadd.f32 0.0, %v1012
        %v1014 = vpop.f32.mrf.mxu0
        %v1015 = vadd.f32 0.0, %v1014
        %v1016 = vpop.f32.mrf.mxu0
        %v1017 = vadd.f32 0.0, %v1016
        %v1018 = vpop.f32.mrf.mxu0
        %v1019 = vadd.f32 0.0, %v1018
        %1020 = vmatprep.mubr.bf16.mxu0 0
        %1021 = vmatmul.mubr.bf16.gmra.mxu0 %v344
        %v1022 = vpop.f32.mrf.mxu0
        %v1023 = vadd.f32 0.0, %v1022
        %v1024 = vpop.f32.mrf.mxu0
        %v1025 = vadd.f32 0.0, %v1024
        %v1026 = vpop.f32.mrf.mxu0
        %v1027 = vadd.f32 0.0, %v1026
        %v1028 = vpop.f32.mrf.mxu0
        %v1029 = vadd.f32 0.0, %v1028
        %1030 = vmatprep.mubr.bf16.mxu0 0
        %1031 = vmatmul.mubr.bf16.gmra.mxu0 %v345
        %v1032 = vpop.f32.mrf.mxu0
        %v1033 = vadd.f32 0.0, %v1032
        %v1034 = vpop.f32.mrf.mxu0
        %v1035 = vadd.f32 0.0, %v1034
        %v1036 = vpop.f32.mrf.mxu0
        %v1037 = vadd.f32 0.0, %v1036
        %v1038 = vpop.f32.mrf.mxu0
        %v1039 = vadd.f32 0.0, %v1038
        %1040 = vmatprep.mubr.bf16.mxu0 0
        %1041 = vmatmul.mubr.bf16.gmra.mxu0 %v346
        %v1042 = vpop.f32.mrf.mxu0
        %v1043 = vadd.f32 0.0, %v1042
        %v1044 = vpop.f32.mrf.mxu0
        %v1045 = vadd.f32 0.0, %v1044
        %v1046 = vpop.f32.mrf.mxu0
        %v1047 = vadd.f32 0.0, %v1046
        %v1048 = vpop.f32.mrf.mxu0
        %v1049 = vadd.f32 0.0, %v1048
        %1050 = vmatprep.mubr.bf16.mxu0 0
        %1051 = vmatmul.mubr.bf16.gmra.mxu0 %v347
        %v1052 = vpop.f32.mrf.mxu0
        %v1053 = vadd.f32 0.0, %v1052
        %v1054 = vpop.f32.mrf.mxu0
        %v1055 = vadd.f32 0.0, %v1054
        %v1056 = vpop.f32.mrf.mxu0
        %v1057 = vadd.f32 0.0, %v1056
        %v1058 = vpop.f32.mrf.mxu0
        %v1059 = vadd.f32 0.0, %v1058
        %1060 = vmatprep.mubr.bf16.mxu0 0
        %1061 = vmatmul.mubr.bf16.gmra.mxu0 %v348
        %v1062 = vpop.f32.mrf.mxu0
        %v1063 = vadd.f32 0.0, %v1062
        %v1064 = vpop.f32.mrf.mxu0
        %v1065 = vadd.f32 0.0, %v1064
        %v1066 = vpop.f32.mrf.mxu0
        %v1067 = vadd.f32 0.0, %v1066
        %v1068 = vpop.f32.mrf.mxu0
        %v1069 = vadd.f32 0.0, %v1068
        %1070 = vdwg.mxu0
        %1071 = vmatprep.subr.bf16.mxu0 %v618
        %1072 = vmatpush1.bf16.msra.mxu0 %v617
        %1073 = vmatprep.subr.bf16.mxu0 %v610
        %1074 = vmatpush1.bf16.msra.mxu0 %v609
        %1075 = vmatprep.subr.bf16.mxu0 %v602
        %1076 = vmatpush1.bf16.msra.mxu0 %v601
        %1077 = vmatprep.subr.bf16.mxu0 %v594
        %1078 = vmatpush1.bf16.msra.mxu0 %v593
        %1079 = vmatprep.subr.bf16.mxu0 %v586
        %1080 = vmatpush1.bf16.msra.mxu0 %v585
        %1081 = vmatprep.subr.bf16.mxu0 %v578
        %1082 = vmatpush1.bf16.msra.mxu0 %v577
        %1083 = vmatprep.subr.bf16.mxu0 %v570
        %1084 = vmatpush1.bf16.msra.mxu0 %v569
        %1085 = vmatprep.subr.bf16.mxu0 %v562
        %1086 = vmatpush1.bf16.msra.mxu0 %v561
        %1087 = vmatprep.subr.bf16.mxu0 0
        %1088 = vmatpush2.bf16.msra.mxu0 0
        %1089 = vmatprep.subr.bf16.mxu0 0
        %1090 = vmatpush2.bf16.msra.mxu0 0
        %1091 = vmatprep.subr.bf16.mxu0 0
        %1092 = vmatpush2.bf16.msra.mxu0 0
        %1093 = vmatprep.subr.bf16.mxu0 0
        %1094 = vmatpush2.bf16.msra.mxu0 0
        %1095 = vmatprep.subr.bf16.mxu0 0
        %1096 = vmatpush2.bf16.msra.mxu0 0
        %1097 = vmatprep.subr.bf16.mxu0 0
        %1098 = vmatpush2.bf16.msra.mxu0 0
        %1099 = vmatprep.subr.bf16.mxu0 0
        %1100 = vmatpush2.bf16.msra.mxu0 0
        %1101 = vmatprep.subr.bf16.mxu0 0
        %1102 = vmatpush2.bf16.msra.mxu0 0
        %1103 = vmatprep.mubr.bf16.mxu0 0
        %1104 = vmatmul.mubr.bf16.gmra.mxu0 %v333
        %v1105 = vpop.f32.mrf.mxu0
        %v1106 = vadd.f32 0.0, %v1105
        %v1107 = vpop.f32.mrf.mxu0
        %v1108 = vadd.f32 0.0, %v1107
        %v1109 = vpop.f32.mrf.mxu0
        %v1110 = vadd.f32 0.0, %v1109
        %v1111 = vpop.f32.mrf.mxu0
        %v1112 = vadd.f32 0.0, %v1111
        %1113 = vmatprep.mubr.bf16.mxu0 0
        %1114 = vmatmul.mubr.bf16.gmra.mxu0 %v334
        %v1115 = vpop.f32.mrf.mxu0
        %v1116 = vadd.f32 0.0, %v1115
        %v1117 = vpop.f32.mrf.mxu0
        %v1118 = vadd.f32 0.0, %v1117
        %v1119 = vpop.f32.mrf.mxu0
        %v1120 = vadd.f32 0.0, %v1119
        %v1121 = vpop.f32.mrf.mxu0
        %v1122 = vadd.f32 0.0, %v1121
        %1123 = vmatprep.mubr.bf16.mxu0 0
        %1124 = vmatmul.mubr.bf16.gmra.mxu0 %v335
        %v1125 = vpop.f32.mrf.mxu0
        %v1126 = vadd.f32 0.0, %v1125
        %v1127 = vpop.f32.mrf.mxu0
        %v1128 = vadd.f32 0.0, %v1127
        %v1129 = vpop.f32.mrf.mxu0
        %v1130 = vadd.f32 0.0, %v1129
        %v1131 = vpop.f32.mrf.mxu0
        %v1132 = vadd.f32 0.0, %v1131
        %1133 = vmatprep.mubr.bf16.mxu0 0
        %1134 = vmatmul.mubr.bf16.gmra.mxu0 %v336
        %v1135 = vpop.f32.mrf.mxu0
        %v1136 = vadd.f32 0.0, %v1135
        %v1137 = vpop.f32.mrf.mxu0
        %v1138 = vadd.f32 0.0, %v1137
        %v1139 = vpop.f32.mrf.mxu0
        %v1140 = vadd.f32 0.0, %v1139
        %v1141 = vpop.f32.mrf.mxu0
        %v1142 = vadd.f32 0.0, %v1141
        %1143 = vmatprep.mubr.bf16.mxu0 0
        %1144 = vmatmul.mubr.bf16.gmra.mxu0 %v337
        %v1145 = vpop.f32.mrf.mxu0
        %v1146 = vadd.f32 0.0, %v1145
        %v1147 = vpop.f32.mrf.mxu0
        %v1148 = vadd.f32 0.0, %v1147
        %v1149 = vpop.f32.mrf.mxu0
        %v1150 = vadd.f32 0.0, %v1149
        %v1151 = vpop.f32.mrf.mxu0
        %v1152 = vadd.f32 0.0, %v1151
        %1153 = vmatprep.mubr.bf16.mxu0 0
        %1154 = vmatmul.mubr.bf16.gmra.mxu0 %v338
        %v1155 = vpop.f32.mrf.mxu0
        %v1156 = vadd.f32 0.0, %v1155
        %v1157 = vpop.f32.mrf.mxu0
        %v1158 = vadd.f32 0.0, %v1157
        %v1159 = vpop.f32.mrf.mxu0
        %v1160 = vadd.f32 0.0, %v1159
        %v1161 = vpop.f32.mrf.mxu0
        %v1162 = vadd.f32 0.0, %v1161
        %1163 = vmatprep.mubr.bf16.mxu0 0
        %1164 = vmatmul.mubr.bf16.gmra.mxu0 %v339
        %v1165 = vpop.f32.mrf.mxu0
        %v1166 = vadd.f32 0.0, %v1165
        %v1167 = vpop.f32.mrf.mxu0
        %v1168 = vadd.f32 0.0, %v1167
        %v1169 = vpop.f32.mrf.mxu0
        %v1170 = vadd.f32 0.0, %v1169
        %v1171 = vpop.f32.mrf.mxu0
        %v1172 = vadd.f32 0.0, %v1171
        %1173 = vmatprep.mubr.bf16.mxu0 0
        %1174 = vmatmul.mubr.bf16.gmra.mxu0 %v340
        %v1175 = vpop.f32.mrf.mxu0
        %v1176 = vadd.f32 0.0, %v1175
        %v1177 = vpop.f32.mrf.mxu0
        %v1178 = vadd.f32 0.0, %v1177
        %v1179 = vpop.f32.mrf.mxu0
        %v1180 = vadd.f32 0.0, %v1179
        %v1181 = vpop.f32.mrf.mxu0
        %v1182 = vadd.f32 0.0, %v1181
        %1183 = vmatprep.mubr.bf16.mxu0 0
        %1184 = vmatmul.mubr.bf16.gmra.mxu0 %v341
        %v1185 = vpop.f32.mrf.mxu0
        %v1186 = vadd.f32 0.0, %v1185
        %v1187 = vpop.f32.mrf.mxu0
        %v1188 = vadd.f32 0.0, %v1187
        %v1189 = vpop.f32.mrf.mxu0
        %v1190 = vadd.f32 0.0, %v1189
        %v1191 = vpop.f32.mrf.mxu0
        %v1192 = vadd.f32 0.0, %v1191
        %1193 = vmatprep.mubr.bf16.mxu0 0
        %1194 = vmatmul.mubr.bf16.gmra.mxu0 %v342
        %v1195 = vpop.f32.mrf.mxu0
        %v1196 = vadd.f32 0.0, %v1195
        %v1197 = vpop.f32.mrf.mxu0
        %v1198 = vadd.f32 0.0, %v1197
        %v1199 = vpop.f32.mrf.mxu0
        %v1200 = vadd.f32 0.0, %v1199
        %v1201 = vpop.f32.mrf.mxu0
        %v1202 = vadd.f32 0.0, %v1201
        %1203 = vmatprep.mubr.bf16.mxu0 0
        %1204 = vmatmul.mubr.bf16.gmra.mxu0 %v343
        %v1205 = vpop.f32.mrf.mxu0
        %v1206 = vadd.f32 0.0, %v1205
        %v1207 = vpop.f32.mrf.mxu0
        %v1208 = vadd.f32 0.0, %v1207
        %v1209 = vpop.f32.mrf.mxu0
        %v1210 = vadd.f32 0.0, %v1209
        %v1211 = vpop.f32.mrf.mxu0
        %v1212 = vadd.f32 0.0, %v1211
        %1213 = vmatprep.mubr.bf16.mxu0 0
        %1214 = vmatmul.mubr.bf16.gmra.mxu0 %v344
        %v1215 = vpop.f32.mrf.mxu0
        %v1216 = vadd.f32 0.0, %v1215
        %v1217 = vpop.f32.mrf.mxu0
        %v1218 = vadd.f32 0.0, %v1217
        %v1219 = vpop.f32.mrf.mxu0
        %v1220 = vadd.f32 0.0, %v1219
        %v1221 = vpop.f32.mrf.mxu0
        %v1222 = vadd.f32 0.0, %v1221
        %1223 = vmatprep.mubr.bf16.mxu0 0
        %1224 = vmatmul.mubr.bf16.gmra.mxu0 %v345
        %v1225 = vpop.f32.mrf.mxu0
        %v1226 = vadd.f32 0.0, %v1225
        %v1227 = vpop.f32.mrf.mxu0
        %v1228 = vadd.f32 0.0, %v1227
        %v1229 = vpop.f32.mrf.mxu0
        %v1230 = vadd.f32 0.0, %v1229
        %v1231 = vpop.f32.mrf.mxu0
        %v1232 = vadd.f32 0.0, %v1231
        %1233 = vmatprep.mubr.bf16.mxu0 0
        %1234 = vmatmul.mubr.bf16.gmra.mxu0 %v346
        %v1235 = vpop.f32.mrf.mxu0
        %v1236 = vadd.f32 0.0, %v1235
        %v1237 = vpop.f32.mrf.mxu0
        %v1238 = vadd.f32 0.0, %v1237
        %v1239 = vpop.f32.mrf.mxu0
        %v1240 = vadd.f32 0.0, %v1239
        %v1241 = vpop.f32.mrf.mxu0
        %v1242 = vadd.f32 0.0, %v1241
        %1243 = vmatprep.mubr.bf16.mxu0 0
        %1244 = vmatmul.mubr.bf16.gmra.mxu0 %v347
        %v1245 = vpop.f32.mrf.mxu0
        %v1246 = vadd.f32 0.0, %v1245
        %v1247 = vpop.f32.mrf.mxu0
        %v1248 = vadd.f32 0.0, %v1247
        %v1249 = vpop.f32.mrf.mxu0
        %v1250 = vadd.f32 0.0, %v1249
        %v1251 = vpop.f32.mrf.mxu0
        %v1252 = vadd.f32 0.0, %v1251
        %1253 = vmatprep.mubr.bf16.mxu0 0
        %1254 = vmatmul.mubr.bf16.gmra.mxu0 %v348
        %v1255 = vpop.f32.mrf.mxu0
        %v1256 = vadd.f32 0.0, %v1255
        %v1257 = vpop.f32.mrf.mxu0
        %v1258 = vadd.f32 0.0, %v1257
        %v1259 = vpop.f32.mrf.mxu0
        %v1260 = vadd.f32 0.0, %v1259
        %v1261 = vpop.f32.mrf.mxu0
        %v1262 = vadd.f32 0.0, %v1261
        %1263 = vdwg.mxu0
        %1264 = vmatprep.subr.bf16.mxu0 %v620
        %1265 = vmatpush1.bf16.msra.mxu0 %v619
        %1266 = vmatprep.subr.bf16.mxu0 %v612
        %1267 = vmatpush1.bf16.msra.mxu0 %v611
        %1268 = vmatprep.subr.bf16.mxu0 %v604
        %1269 = vmatpush1.bf16.msra.mxu0 %v603
        %1270 = vmatprep.subr.bf16.mxu0 %v596
        %1271 = vmatpush1.bf16.msra.mxu0 %v595
        %1272 = vmatprep.subr.bf16.mxu0 %v588
        %1273 = vmatpush1.bf16.msra.mxu0 %v587
        %1274 = vmatprep.subr.bf16.mxu0 %v580
        %1275 = vmatpush1.bf16.msra.mxu0 %v579
        %1276 = vmatprep.subr.bf16.mxu0 %v572
        %1277 = vmatpush1.bf16.msra.mxu0 %v571
        %1278 = vmatprep.subr.bf16.mxu0 %v564
        %1279 = vmatpush1.bf16.msra.mxu0 %v563
        %1280 = vmatprep.subr.bf16.mxu0 0
        %1281 = vmatpush2.bf16.msra.mxu0 0
        %1282 = vmatprep.subr.bf16.mxu0 0
        %1283 = vmatpush2.bf16.msra.mxu0 0
        %1284 = vmatprep.subr.bf16.mxu0 0
        %1285 = vmatpush2.bf16.msra.mxu0 0
        %1286 = vmatprep.subr.bf16.mxu0 0
        %1287 = vmatpush2.bf16.msra.mxu0 0
        %1288 = vmatprep.subr.bf16.mxu0 0
        %1289 = vmatpush2.bf16.msra.mxu0 0
        %1290 = vmatprep.subr.bf16.mxu0 0
        %1291 = vmatpush2.bf16.msra.mxu0 0
        %1292 = vmatprep.subr.bf16.mxu0 0
        %1293 = vmatpush2.bf16.msra.mxu0 0
        %1294 = vmatprep.subr.bf16.mxu0 0
        %1295 = vmatpush2.bf16.msra.mxu0 0
        %1296 = vmatprep.mubr.bf16.mxu0 0
        %1297 = vmatmul.mubr.bf16.gmra.mxu0 %v333
        %v1298 = vpop.f32.mrf.mxu0
        %v1299 = vadd.f32 0.0, %v1298
        %v1300 = vpop.f32.mrf.mxu0
        %v1301 = vadd.f32 0.0, %v1300
        %v1302 = vpop.f32.mrf.mxu0
        %v1303 = vadd.f32 0.0, %v1302
        %v1304 = vpop.f32.mrf.mxu0
        %v1305 = vadd.f32 0.0, %v1304
        %1306 = vmatprep.mubr.bf16.mxu0 0
        %1307 = vmatmul.mubr.bf16.gmra.mxu0 %v334
        %v1308 = vpop.f32.mrf.mxu0
        %v1309 = vadd.f32 0.0, %v1308
        %v1310 = vpop.f32.mrf.mxu0
        %v1311 = vadd.f32 0.0, %v1310
        %v1312 = vpop.f32.mrf.mxu0
        %v1313 = vadd.f32 0.0, %v1312
        %v1314 = vpop.f32.mrf.mxu0
        %v1315 = vadd.f32 0.0, %v1314
        %1316 = vmatprep.mubr.bf16.mxu0 0
        %1317 = vmatmul.mubr.bf16.gmra.mxu0 %v335
        %v1318 = vpop.f32.mrf.mxu0
        %v1319 = vadd.f32 0.0, %v1318
        %v1320 = vpop.f32.mrf.mxu0
        %v1321 = vadd.f32 0.0, %v1320
        %v1322 = vpop.f32.mrf.mxu0
        %v1323 = vadd.f32 0.0, %v1322
        %v1324 = vpop.f32.mrf.mxu0
        %v1325 = vadd.f32 0.0, %v1324
        %1326 = vmatprep.mubr.bf16.mxu0 0
        %1327 = vmatmul.mubr.bf16.gmra.mxu0 %v336
        %v1328 = vpop.f32.mrf.mxu0
        %v1329 = vadd.f32 0.0, %v1328
        %v1330 = vpop.f32.mrf.mxu0
        %v1331 = vadd.f32 0.0, %v1330
        %v1332 = vpop.f32.mrf.mxu0
        %v1333 = vadd.f32 0.0, %v1332
        %v1334 = vpop.f32.mrf.mxu0
        %v1335 = vadd.f32 0.0, %v1334
        %1336 = vmatprep.mubr.bf16.mxu0 0
        %1337 = vmatmul.mubr.bf16.gmra.mxu0 %v337
        %v1338 = vpop.f32.mrf.mxu0
        %v1339 = vadd.f32 0.0, %v1338
        %v1340 = vpop.f32.mrf.mxu0
        %v1341 = vadd.f32 0.0, %v1340
        %v1342 = vpop.f32.mrf.mxu0
        %v1343 = vadd.f32 0.0, %v1342
        %v1344 = vpop.f32.mrf.mxu0
        %v1345 = vadd.f32 0.0, %v1344
        %1346 = vmatprep.mubr.bf16.mxu0 0
        %1347 = vmatmul.mubr.bf16.gmra.mxu0 %v338
        %v1348 = vpop.f32.mrf.mxu0
        %v1349 = vadd.f32 0.0, %v1348
        %v1350 = vpop.f32.mrf.mxu0
        %v1351 = vadd.f32 0.0, %v1350
        %v1352 = vpop.f32.mrf.mxu0
        %v1353 = vadd.f32 0.0, %v1352
        %v1354 = vpop.f32.mrf.mxu0
        %v1355 = vadd.f32 0.0, %v1354
        %1356 = vmatprep.mubr.bf16.mxu0 0
        %1357 = vmatmul.mubr.bf16.gmra.mxu0 %v339
        %v1358 = vpop.f32.mrf.mxu0
        %v1359 = vadd.f32 0.0, %v1358
        %v1360 = vpop.f32.mrf.mxu0
        %v1361 = vadd.f32 0.0, %v1360
        %v1362 = vpop.f32.mrf.mxu0
        %v1363 = vadd.f32 0.0, %v1362
        %v1364 = vpop.f32.mrf.mxu0
        %v1365 = vadd.f32 0.0, %v1364
        %1366 = vmatprep.mubr.bf16.mxu0 0
        %1367 = vmatmul.mubr.bf16.gmra.mxu0 %v340
        %v1368 = vpop.f32.mrf.mxu0
        %v1369 = vadd.f32 0.0, %v1368
        %v1370 = vpop.f32.mrf.mxu0
        %v1371 = vadd.f32 0.0, %v1370
        %v1372 = vpop.f32.mrf.mxu0
        %v1373 = vadd.f32 0.0, %v1372
        %v1374 = vpop.f32.mrf.mxu0
        %v1375 = vadd.f32 0.0, %v1374
        %1376 = vmatprep.mubr.bf16.mxu0 0
        %1377 = vmatmul.mubr.bf16.gmra.mxu0 %v341
        %v1378 = vpop.f32.mrf.mxu0
        %v1379 = vadd.f32 0.0, %v1378
        %v1380 = vpop.f32.mrf.mxu0
        %v1381 = vadd.f32 0.0, %v1380
        %v1382 = vpop.f32.mrf.mxu0
        %v1383 = vadd.f32 0.0, %v1382
        %v1384 = vpop.f32.mrf.mxu0
        %v1385 = vadd.f32 0.0, %v1384
        %1386 = vmatprep.mubr.bf16.mxu0 0
        %1387 = vmatmul.mubr.bf16.gmra.mxu0 %v342
        %v1388 = vpop.f32.mrf.mxu0
        %v1389 = vadd.f32 0.0, %v1388
        %v1390 = vpop.f32.mrf.mxu0
        %v1391 = vadd.f32 0.0, %v1390
        %v1392 = vpop.f32.mrf.mxu0
        %v1393 = vadd.f32 0.0, %v1392
        %v1394 = vpop.f32.mrf.mxu0
        %v1395 = vadd.f32 0.0, %v1394
        %1396 = vmatprep.mubr.bf16.mxu0 0
        %1397 = vmatmul.mubr.bf16.gmra.mxu0 %v343
        %v1398 = vpop.f32.mrf.mxu0
        %v1399 = vadd.f32 0.0, %v1398
        %v1400 = vpop.f32.mrf.mxu0
        %v1401 = vadd.f32 0.0, %v1400
        %v1402 = vpop.f32.mrf.mxu0
        %v1403 = vadd.f32 0.0, %v1402
        %v1404 = vpop.f32.mrf.mxu0
        %v1405 = vadd.f32 0.0, %v1404
        %1406 = vmatprep.mubr.bf16.mxu0 0
        %1407 = vmatmul.mubr.bf16.gmra.mxu0 %v344
        %v1408 = vpop.f32.mrf.mxu0
        %v1409 = vadd.f32 0.0, %v1408
        %v1410 = vpop.f32.mrf.mxu0
        %v1411 = vadd.f32 0.0, %v1410
        %v1412 = vpop.f32.mrf.mxu0
        %v1413 = vadd.f32 0.0, %v1412
        %v1414 = vpop.f32.mrf.mxu0
        %v1415 = vadd.f32 0.0, %v1414
        %1416 = vmatprep.mubr.bf16.mxu0 0
        %1417 = vmatmul.mubr.bf16.gmra.mxu0 %v345
        %v1418 = vpop.f32.mrf.mxu0
        %v1419 = vadd.f32 0.0, %v1418
        %v1420 = vpop.f32.mrf.mxu0
        %v1421 = vadd.f32 0.0, %v1420
        %v1422 = vpop.f32.mrf.mxu0
        %v1423 = vadd.f32 0.0, %v1422
        %v1424 = vpop.f32.mrf.mxu0
        %v1425 = vadd.f32 0.0, %v1424
        %1426 = vmatprep.mubr.bf16.mxu0 0
        %1427 = vmatmul.mubr.bf16.gmra.mxu0 %v346
        %v1428 = vpop.f32.mrf.mxu0
        %v1429 = vadd.f32 0.0, %v1428
        %v1430 = vpop.f32.mrf.mxu0
        %v1431 = vadd.f32 0.0, %v1430
        %v1432 = vpop.f32.mrf.mxu0
        %v1433 = vadd.f32 0.0, %v1432
        %v1434 = vpop.f32.mrf.mxu0
        %v1435 = vadd.f32 0.0, %v1434
        %1436 = vmatprep.mubr.bf16.mxu0 0
        %1437 = vmatmul.mubr.bf16.gmra.mxu0 %v347
        %v1438 = vpop.f32.mrf.mxu0
        %v1439 = vadd.f32 0.0, %v1438
        %v1440 = vpop.f32.mrf.mxu0
        %v1441 = vadd.f32 0.0, %v1440
        %v1442 = vpop.f32.mrf.mxu0
        %v1443 = vadd.f32 0.0, %v1442
        %v1444 = vpop.f32.mrf.mxu0
        %v1445 = vadd.f32 0.0, %v1444
        %1446 = vmatprep.mubr.bf16.mxu0 0
        %1447 = vmatmul.mubr.bf16.gmra.mxu0 %v348
        %v1448 = vpop.f32.mrf.mxu0
        %v1449 = vadd.f32 0.0, %v1448
        %v1450 = vpop.f32.mrf.mxu0
        %v1451 = vadd.f32 0.0, %v1450
        %v1452 = vpop.f32.mrf.mxu0
        %v1453 = vadd.f32 0.0, %v1452
        %v1454 = vpop.f32.mrf.mxu0
        %v1455 = vadd.f32 0.0, %v1454
        %1456 = vdwg.mxu0
        %v1457 = vxor.u32 %v720, 2147483648
        %v1458 = vxor.u32 %v722, 2147483648
        %v1459 = vxor.u32 %v913, 2147483648
        %v1460 = vxor.u32 %v915, 2147483648
        %v1461 = vxor.u32 %v724, 2147483648
        %v1462 = vxor.u32 %v726, 2147483648
        %v1463 = vxor.u32 %v917, 2147483648
        %v1464 = vxor.u32 %v919, 2147483648
        %v1465 = vxor.u32 %v730, 2147483648
        %v1466 = vxor.u32 %v732, 2147483648
        %v1467 = vxor.u32 %v923, 2147483648
        %v1468 = vxor.u32 %v925, 2147483648
        %v1469 = vxor.u32 %v734, 2147483648
        %v1470 = vxor.u32 %v736, 2147483648
        %v1471 = vxor.u32 %v927, 2147483648
        %v1472 = vxor.u32 %v929, 2147483648
        %v1473 = vxor.u32 %v740, 2147483648
        %v1474 = vxor.u32 %v742, 2147483648
        %v1475 = vxor.u32 %v933, 2147483648
        %v1476 = vxor.u32 %v935, 2147483648
        %v1477 = vxor.u32 %v744, 2147483648
        %v1478 = vxor.u32 %v746, 2147483648
        %v1479 = vxor.u32 %v937, 2147483648
        %v1480 = vxor.u32 %v939, 2147483648
        %v1481 = vxor.u32 %v750, 2147483648
        %v1482 = vxor.u32 %v752, 2147483648
        %v1483 = vxor.u32 %v943, 2147483648
        %v1484 = vxor.u32 %v945, 2147483648
        %v1485 = vxor.u32 %v754, 2147483648
        %v1486 = vxor.u32 %v756, 2147483648
        %v1487 = vxor.u32 %v947, 2147483648
        %v1488 = vxor.u32 %v949, 2147483648
        %v1489 = vxor.u32 %v760, 2147483648
        %v1490 = vxor.u32 %v762, 2147483648
        %v1491 = vxor.u32 %v953, 2147483648
        %v1492 = vxor.u32 %v955, 2147483648
        %v1493 = vxor.u32 %v764, 2147483648
        %v1494 = vxor.u32 %v766, 2147483648
        %v1495 = vxor.u32 %v957, 2147483648
        %v1496 = vxor.u32 %v959, 2147483648
        %v1497 = vxor.u32 %v770, 2147483648
        %v1498 = vxor.u32 %v772, 2147483648
        %v1499 = vxor.u32 %v963, 2147483648
        %v1500 = vxor.u32 %v965, 2147483648
        %v1501 = vxor.u32 %v774, 2147483648
        %v1502 = vxor.u32 %v776, 2147483648
        %v1503 = vxor.u32 %v967, 2147483648
        %v1504 = vxor.u32 %v969, 2147483648
        %v1505 = vxor.u32 %v780, 2147483648
        %v1506 = vxor.u32 %v782, 2147483648
        %v1507 = vxor.u32 %v973, 2147483648
        %v1508 = vxor.u32 %v975, 2147483648
        %v1509 = vxor.u32 %v784, 2147483648
        %v1510 = vxor.u32 %v786, 2147483648
        %v1511 = vxor.u32 %v977, 2147483648
        %v1512 = vxor.u32 %v979, 2147483648
        %v1513 = vxor.u32 %v790, 2147483648
        %v1514 = vxor.u32 %v792, 2147483648
        %v1515 = vxor.u32 %v983, 2147483648
        %v1516 = vxor.u32 %v985, 2147483648
        %v1517 = vxor.u32 %v794, 2147483648
        %v1518 = vxor.u32 %v796, 2147483648
        %v1519 = vxor.u32 %v987, 2147483648
        %v1520 = vxor.u32 %v989, 2147483648
        %v1521 = vxor.u32 %v800, 2147483648
        %v1522 = vxor.u32 %v802, 2147483648
        %v1523 = vxor.u32 %v993, 2147483648
        %v1524 = vxor.u32 %v995, 2147483648
        %v1525 = vxor.u32 %v804, 2147483648
        %v1526 = vxor.u32 %v806, 2147483648
        %v1527 = vxor.u32 %v997, 2147483648
        %v1528 = vxor.u32 %v999, 2147483648
        %v1529 = vxor.u32 %v810, 2147483648
        %v1530 = vxor.u32 %v812, 2147483648
        %v1531 = vxor.u32 %v1003, 2147483648
        %v1532 = vxor.u32 %v1005, 2147483648
        %v1533 = vxor.u32 %v814, 2147483648
        %v1534 = vxor.u32 %v816, 2147483648
        %v1535 = vxor.u32 %v1007, 2147483648
        %v1536 = vxor.u32 %v1009, 2147483648
        %v1537 = vxor.u32 %v820, 2147483648
        %v1538 = vxor.u32 %v822, 2147483648
        %v1539 = vxor.u32 %v1013, 2147483648
        %v1540 = vxor.u32 %v1015, 2147483648
        %v1541 = vxor.u32 %v824, 2147483648
        %v1542 = vxor.u32 %v826, 2147483648
        %v1543 = vxor.u32 %v1017, 2147483648
        %v1544 = vxor.u32 %v1019, 2147483648
        %v1545 = vxor.u32 %v830, 2147483648
        %v1546 = vxor.u32 %v832, 2147483648
        %v1547 = vxor.u32 %v1023, 2147483648
        %v1548 = vxor.u32 %v1025, 2147483648
        %v1549 = vxor.u32 %v834, 2147483648
        %v1550 = vxor.u32 %v836, 2147483648
        %v1551 = vxor.u32 %v1027, 2147483648
        %v1552 = vxor.u32 %v1029, 2147483648
        %v1553 = vxor.u32 %v840, 2147483648
        %v1554 = vxor.u32 %v842, 2147483648
        %v1555 = vxor.u32 %v1033, 2147483648
        %v1556 = vxor.u32 %v1035, 2147483648
        %v1557 = vxor.u32 %v844, 2147483648
        %v1558 = vxor.u32 %v846, 2147483648
        %v1559 = vxor.u32 %v1037, 2147483648
        %v1560 = vxor.u32 %v1039, 2147483648
        %v1561 = vxor.u32 %v850, 2147483648
        %v1562 = vxor.u32 %v852, 2147483648
        %v1563 = vxor.u32 %v1043, 2147483648
        %v1564 = vxor.u32 %v1045, 2147483648
        %v1565 = vxor.u32 %v854, 2147483648
        %v1566 = vxor.u32 %v856, 2147483648
        %v1567 = vxor.u32 %v1047, 2147483648
        %v1568 = vxor.u32 %v1049, 2147483648
        %v1569 = vxor.u32 %v860, 2147483648
        %v1570 = vxor.u32 %v862, 2147483648
        %v1571 = vxor.u32 %v1053, 2147483648
        %v1572 = vxor.u32 %v1055, 2147483648
        %v1573 = vxor.u32 %v864, 2147483648
        %v1574 = vxor.u32 %v866, 2147483648
        %v1575 = vxor.u32 %v1057, 2147483648
        %v1576 = vxor.u32 %v1059, 2147483648
        %v1577 = vxor.u32 %v870, 2147483648
        %v1578 = vxor.u32 %v872, 2147483648
        %v1579 = vxor.u32 %v1063, 2147483648
        %v1580 = vxor.u32 %v1065, 2147483648
        %v1581 = vxor.u32 %v874, 2147483648
        %v1582 = vxor.u32 %v876, 2147483648
        %v1583 = vxor.u32 %v1067, 2147483648
        %v1584 = vxor.u32 %v1069, 2147483648
        %v1585 = vmul.f32 %v1457, 1.442695
        %v1586 = vpow.pop %v1585
        %v1587 = vmul.f32 %v1458, 1.442695
        %v1588 = vpow.pop %v1587
        %v1589 = vmul.f32 %v1459, 1.442695
        %v1590 = vpow.pop %v1589
        %v1591 = vmul.f32 %v1460, 1.442695
        %v1592 = vpow.pop %v1591
        %v1593 = vmul.f32 %v1461, 1.442695
        %v1594 = vpow.pop %v1593
        %v1595 = vmul.f32 %v1462, 1.442695
        %v1596 = vpow.pop %v1595
        %v1597 = vmul.f32 %v1463, 1.442695
        %v1598 = vpow.pop %v1597
        %v1599 = vmul.f32 %v1464, 1.442695
        %v1600 = vpow.pop %v1599
        %v1601 = vmul.f32 %v1465, 1.442695
        %v1602 = vpow.pop %v1601
        %v1603 = vmul.f32 %v1466, 1.442695
        %v1604 = vpow.pop %v1603
        %v1605 = vmul.f32 %v1467, 1.442695
        %v1606 = vpow.pop %v1605
        %v1607 = vmul.f32 %v1468, 1.442695
        %v1608 = vpow.pop %v1607
        %v1609 = vmul.f32 %v1469, 1.442695
        %v1610 = vpow.pop %v1609
        %v1611 = vmul.f32 %v1470, 1.442695
        %v1612 = vpow.pop %v1611
        %v1613 = vmul.f32 %v1471, 1.442695
        %v1614 = vpow.pop %v1613
        %v1615 = vmul.f32 %v1472, 1.442695
        %v1616 = vpow.pop %v1615
        %v1617 = vmul.f32 %v1473, 1.442695
        %v1618 = vpow.pop %v1617
        %v1619 = vmul.f32 %v1474, 1.442695
        %v1620 = vpow.pop %v1619
        %v1621 = vmul.f32 %v1475, 1.442695
        %v1622 = vpow.pop %v1621
        %v1623 = vmul.f32 %v1476, 1.442695
        %v1624 = vpow.pop %v1623
        %v1625 = vmul.f32 %v1477, 1.442695
        %v1626 = vpow.pop %v1625
        %v1627 = vmul.f32 %v1478, 1.442695
        %v1628 = vpow.pop %v1627
        %v1629 = vmul.f32 %v1479, 1.442695
        %v1630 = vpow.pop %v1629
        %v1631 = vmul.f32 %v1480, 1.442695
        %v1632 = vpow.pop %v1631
        %v1633 = vmul.f32 %v1481, 1.442695
        %v1634 = vpow.pop %v1633
        %v1635 = vmul.f32 %v1482, 1.442695
        %v1636 = vpow.pop %v1635
        %v1637 = vmul.f32 %v1483, 1.442695
        %v1638 = vpow.pop %v1637
        %v1639 = vmul.f32 %v1484, 1.442695
        %v1640 = vpow.pop %v1639
        %v1641 = vmul.f32 %v1485, 1.442695
        %v1642 = vpow.pop %v1641
        %v1643 = vmul.f32 %v1486, 1.442695
        %v1644 = vpow.pop %v1643
        %v1645 = vmul.f32 %v1487, 1.442695
        %v1646 = vpow.pop %v1645
        %v1647 = vmul.f32 %v1488, 1.442695
        %v1648 = vpow.pop %v1647
        %v1649 = vmul.f32 %v1489, 1.442695
        %v1650 = vpow.pop %v1649
        %v1651 = vmul.f32 %v1490, 1.442695
        %v1652 = vpow.pop %v1651
        %v1653 = vmul.f32 %v1491, 1.442695
        %v1654 = vpow.pop %v1653
        %v1655 = vmul.f32 %v1492, 1.442695
        %v1656 = vpow.pop %v1655
        %v1657 = vmul.f32 %v1493, 1.442695
        %v1658 = vpow.pop %v1657
        %v1659 = vmul.f32 %v1494, 1.442695
        %v1660 = vpow.pop %v1659
        %v1661 = vmul.f32 %v1495, 1.442695
        %v1662 = vpow.pop %v1661
        %v1663 = vmul.f32 %v1496, 1.442695
        %v1664 = vpow.pop %v1663
        %v1665 = vmul.f32 %v1497, 1.442695
        %v1666 = vpow.pop %v1665
        %v1667 = vmul.f32 %v1498, 1.442695
        %v1668 = vpow.pop %v1667
        %v1669 = vmul.f32 %v1499, 1.442695
        %v1670 = vpow.pop %v1669
        %v1671 = vmul.f32 %v1500, 1.442695
        %v1672 = vpow.pop %v1671
        %v1673 = vmul.f32 %v1501, 1.442695
        %v1674 = vpow.pop %v1673
        %v1675 = vmul.f32 %v1502, 1.442695
        %v1676 = vpow.pop %v1675
        %v1677 = vmul.f32 %v1503, 1.442695
        %v1678 = vpow.pop %v1677
        %v1679 = vmul.f32 %v1504, 1.442695
        %v1680 = vpow.pop %v1679
        %v1681 = vmul.f32 %v1505, 1.442695
        %v1682 = vpow.pop %v1681
        %v1683 = vmul.f32 %v1506, 1.442695
        %v1684 = vpow.pop %v1683
        %v1685 = vmul.f32 %v1507, 1.442695
        %v1686 = vpow.pop %v1685
        %v1687 = vmul.f32 %v1508, 1.442695
        %v1688 = vpow.pop %v1687
        %v1689 = vmul.f32 %v1509, 1.442695
        %v1690 = vpow.pop %v1689
        %v1691 = vmul.f32 %v1510, 1.442695
        %v1692 = vpow.pop %v1691
        %v1693 = vmul.f32 %v1511, 1.442695
        %v1694 = vpow.pop %v1693
        %v1695 = vmul.f32 %v1512, 1.442695
        %v1696 = vpow.pop %v1695
        %v1697 = vmul.f32 %v1513, 1.442695
        %v1698 = vpow.pop %v1697
        %v1699 = vmul.f32 %v1514, 1.442695
        %v1700 = vpow.pop %v1699
        %v1701 = vmul.f32 %v1515, 1.442695
        %v1702 = vpow.pop %v1701
        %v1703 = vmul.f32 %v1516, 1.442695
        %v1704 = vpow.pop %v1703
        %v1705 = vmul.f32 %v1517, 1.442695
        %v1706 = vpow.pop %v1705
        %v1707 = vmul.f32 %v1518, 1.442695
        %v1708 = vpow.pop %v1707
        %v1709 = vmul.f32 %v1519, 1.442695
        %v1710 = vpow.pop %v1709
        %v1711 = vmul.f32 %v1520, 1.442695
        %v1712 = vpow.pop %v1711
        %v1713 = vmul.f32 %v1521, 1.442695
        %v1714 = vpow.pop %v1713
        %v1715 = vmul.f32 %v1522, 1.442695
        %v1716 = vpow.pop %v1715
        %v1717 = vmul.f32 %v1523, 1.442695
        %v1718 = vpow.pop %v1717
        %v1719 = vmul.f32 %v1524, 1.442695
        %v1720 = vpow.pop %v1719
        %v1721 = vmul.f32 %v1525, 1.442695
        %v1722 = vpow.pop %v1721
        %v1723 = vmul.f32 %v1526, 1.442695
        %v1724 = vpow.pop %v1723
        %v1725 = vmul.f32 %v1527, 1.442695
        %v1726 = vpow.pop %v1725
        %v1727 = vmul.f32 %v1528, 1.442695
        %v1728 = vpow.pop %v1727
        %v1729 = vmul.f32 %v1529, 1.442695
        %v1730 = vpow.pop %v1729
        %v1731 = vmul.f32 %v1530, 1.442695
        %v1732 = vpow.pop %v1731
        %v1733 = vmul.f32 %v1531, 1.442695
        %v1734 = vpow.pop %v1733
        %v1735 = vmul.f32 %v1532, 1.442695
        %v1736 = vpow.pop %v1735
        %v1737 = vmul.f32 %v1533, 1.442695
        %v1738 = vpow.pop %v1737
        %v1739 = vmul.f32 %v1534, 1.442695
        %v1740 = vpow.pop %v1739
        %v1741 = vmul.f32 %v1535, 1.442695
        %v1742 = vpow.pop %v1741
        %v1743 = vmul.f32 %v1536, 1.442695
        %v1744 = vpow.pop %v1743
        %v1745 = vmul.f32 %v1537, 1.442695
        %v1746 = vpow.pop %v1745
        %v1747 = vmul.f32 %v1538, 1.442695
        %v1748 = vpow.pop %v1747
        %v1749 = vmul.f32 %v1539, 1.442695
        %v1750 = vpow.pop %v1749
        %v1751 = vmul.f32 %v1540, 1.442695
        %v1752 = vpow.pop %v1751
        %v1753 = vmul.f32 %v1541, 1.442695
        %v1754 = vpow.pop %v1753
        %v1755 = vmul.f32 %v1542, 1.442695
        %v1756 = vpow.pop %v1755
        %v1757 = vmul.f32 %v1543, 1.442695
        %v1758 = vpow.pop %v1757
        %v1759 = vmul.f32 %v1544, 1.442695
        %v1760 = vpow.pop %v1759
        %v1761 = vmul.f32 %v1545, 1.442695
        %v1762 = vpow.pop %v1761
        %v1763 = vmul.f32 %v1546, 1.442695
        %v1764 = vpow.pop %v1763
        %v1765 = vmul.f32 %v1547, 1.442695
        %v1766 = vpow.pop %v1765
        %v1767 = vmul.f32 %v1548, 1.442695
        %v1768 = vpow.pop %v1767
        %v1769 = vmul.f32 %v1549, 1.442695
        %v1770 = vpow.pop %v1769
        %v1771 = vmul.f32 %v1550, 1.442695
        %v1772 = vpow.pop %v1771
        %v1773 = vmul.f32 %v1551, 1.442695
        %v1774 = vpow.pop %v1773
        %v1775 = vmul.f32 %v1552, 1.442695
        %v1776 = vpow.pop %v1775
        %v1777 = vmul.f32 %v1553, 1.442695
        %v1778 = vpow.pop %v1777
        %v1779 = vmul.f32 %v1554, 1.442695
        %v1780 = vpow.pop %v1779
        %v1781 = vmul.f32 %v1555, 1.442695
        %v1782 = vpow.pop %v1781
        %v1783 = vmul.f32 %v1556, 1.442695
        %v1784 = vpow.pop %v1783
        %v1785 = vmul.f32 %v1557, 1.442695
        %v1786 = vpow.pop %v1785
        %v1787 = vmul.f32 %v1558, 1.442695
        %v1788 = vpow.pop %v1787
        %v1789 = vmul.f32 %v1559, 1.442695
        %v1790 = vpow.pop %v1789
        %v1791 = vmul.f32 %v1560, 1.442695
        %v1792 = vpow.pop %v1791
        %v1793 = vmul.f32 %v1561, 1.442695
        %v1794 = vpow.pop %v1793
        %v1795 = vmul.f32 %v1562, 1.442695
        %v1796 = vpow.pop %v1795
        %v1797 = vmul.f32 %v1563, 1.442695
        %v1798 = vpow.pop %v1797
        %v1799 = vmul.f32 %v1564, 1.442695
        %v1800 = vpow.pop %v1799
        %v1801 = vmul.f32 %v1565, 1.442695
        %v1802 = vpow.pop %v1801
        %v1803 = vmul.f32 %v1566, 1.442695
        %v1804 = vpow.pop %v1803
        %v1805 = vmul.f32 %v1567, 1.442695
        %v1806 = vpow.pop %v1805
        %v1807 = vmul.f32 %v1568, 1.442695
        %v1808 = vpow.pop %v1807
        %v1809 = vmul.f32 %v1569, 1.442695
        %v1810 = vpow.pop %v1809
        %v1811 = vmul.f32 %v1570, 1.442695
        %v1812 = vpow.pop %v1811
        %v1813 = vmul.f32 %v1571, 1.442695
        %v1814 = vpow.pop %v1813
        %v1815 = vmul.f32 %v1572, 1.442695
        %v1816 = vpow.pop %v1815
        %v1817 = vmul.f32 %v1573, 1.442695
        %v1818 = vpow.pop %v1817
        %v1819 = vmul.f32 %v1574, 1.442695
        %v1820 = vpow.pop %v1819
        %v1821 = vmul.f32 %v1575, 1.442695
        %v1822 = vpow.pop %v1821
        %v1823 = vmul.f32 %v1576, 1.442695
        %v1824 = vpow.pop %v1823
        %v1825 = vmul.f32 %v1577, 1.442695
        %v1826 = vpow.pop %v1825
        %v1827 = vmul.f32 %v1578, 1.442695
        %v1828 = vpow.pop %v1827
        %v1829 = vmul.f32 %v1579, 1.442695
        %v1830 = vpow.pop %v1829
        %v1831 = vmul.f32 %v1580, 1.442695
        %v1832 = vpow.pop %v1831
        %v1833 = vmul.f32 %v1581, 1.442695
        %v1834 = vpow.pop %v1833
        %v1835 = vmul.f32 %v1582, 1.442695
        %v1836 = vpow.pop %v1835
        %v1837 = vmul.f32 %v1583, 1.442695
        %v1838 = vpow.pop %v1837
        %v1839 = vmul.f32 %v1584, 1.442695
        %v1840 = vpow.pop %v1839
        %v1841 = vadd.f32 %v1586, 1.0
        %v1842 = vadd.f32 %v1588, 1.0
        %v1843 = vadd.f32 %v1590, 1.0
        %v1844 = vadd.f32 %v1592, 1.0
        %v1845 = vadd.f32 %v1594, 1.0
        %v1846 = vadd.f32 %v1596, 1.0
        %v1847 = vadd.f32 %v1598, 1.0
        %v1848 = vadd.f32 %v1600, 1.0
        %v1849 = vadd.f32 %v1602, 1.0
        %v1850 = vadd.f32 %v1604, 1.0
        %v1851 = vadd.f32 %v1606, 1.0
        %v1852 = vadd.f32 %v1608, 1.0
        %v1853 = vadd.f32 %v1610, 1.0
        %v1854 = vadd.f32 %v1612, 1.0
        %v1855 = vadd.f32 %v1614, 1.0
        %v1856 = vadd.f32 %v1616, 1.0
        %v1857 = vadd.f32 %v1618, 1.0
        %v1858 = vadd.f32 %v1620, 1.0
        %v1859 = vadd.f32 %v1622, 1.0
        %v1860 = vadd.f32 %v1624, 1.0
        %v1861 = vadd.f32 %v1626, 1.0
        %v1862 = vadd.f32 %v1628, 1.0
        %v1863 = vadd.f32 %v1630, 1.0
        %v1864 = vadd.f32 %v1632, 1.0
        %v1865 = vadd.f32 %v1634, 1.0
        %v1866 = vadd.f32 %v1636, 1.0
        %v1867 = vadd.f32 %v1638, 1.0
        %v1868 = vadd.f32 %v1640, 1.0
        %v1869 = vadd.f32 %v1642, 1.0
        %v1870 = vadd.f32 %v1644, 1.0
        %v1871 = vadd.f32 %v1646, 1.0
        %v1872 = vadd.f32 %v1648, 1.0
        %v1873 = vadd.f32 %v1650, 1.0
        %v1874 = vadd.f32 %v1652, 1.0
        %v1875 = vadd.f32 %v1654, 1.0
        %v1876 = vadd.f32 %v1656, 1.0
        %v1877 = vadd.f32 %v1658, 1.0
        %v1878 = vadd.f32 %v1660, 1.0
        %v1879 = vadd.f32 %v1662, 1.0
        %v1880 = vadd.f32 %v1664, 1.0
        %v1881 = vadd.f32 %v1666, 1.0
        %v1882 = vadd.f32 %v1668, 1.0
        %v1883 = vadd.f32 %v1670, 1.0
        %v1884 = vadd.f32 %v1672, 1.0
        %v1885 = vadd.f32 %v1674, 1.0
        %v1886 = vadd.f32 %v1676, 1.0
        %v1887 = vadd.f32 %v1678, 1.0
        %v1888 = vadd.f32 %v1680, 1.0
        %v1889 = vadd.f32 %v1682, 1.0
        %v1890 = vadd.f32 %v1684, 1.0
        %v1891 = vadd.f32 %v1686, 1.0
        %v1892 = vadd.f32 %v1688, 1.0
        %v1893 = vadd.f32 %v1690, 1.0
        %v1894 = vadd.f32 %v1692, 1.0
        %v1895 = vadd.f32 %v1694, 1.0
        %v1896 = vadd.f32 %v1696, 1.0
        %v1897 = vadd.f32 %v1698, 1.0
        %v1898 = vadd.f32 %v1700, 1.0
        %v1899 = vadd.f32 %v1702, 1.0
        %v1900 = vadd.f32 %v1704, 1.0
        %v1901 = vadd.f32 %v1706, 1.0
        %v1902 = vadd.f32 %v1708, 1.0
        %v1903 = vadd.f32 %v1710, 1.0
        %v1904 = vadd.f32 %v1712, 1.0
        %v1905 = vadd.f32 %v1714, 1.0
        %v1906 = vadd.f32 %v1716, 1.0
        %v1907 = vadd.f32 %v1718, 1.0
        %v1908 = vadd.f32 %v1720, 1.0
        %v1909 = vadd.f32 %v1722, 1.0
        %v1910 = vadd.f32 %v1724, 1.0
        %v1911 = vadd.f32 %v1726, 1.0
        %v1912 = vadd.f32 %v1728, 1.0
        %v1913 = vadd.f32 %v1730, 1.0
        %v1914 = vadd.f32 %v1732, 1.0
        %v1915 = vadd.f32 %v1734, 1.0
        %v1916 = vadd.f32 %v1736, 1.0
        %v1917 = vadd.f32 %v1738, 1.0
        %v1918 = vadd.f32 %v1740, 1.0
        %v1919 = vadd.f32 %v1742, 1.0
        %v1920 = vadd.f32 %v1744, 1.0
        %v1921 = vadd.f32 %v1746, 1.0
        %v1922 = vadd.f32 %v1748, 1.0
        %v1923 = vadd.f32 %v1750, 1.0
        %v1924 = vadd.f32 %v1752, 1.0
        %v1925 = vadd.f32 %v1754, 1.0
        %v1926 = vadd.f32 %v1756, 1.0
        %v1927 = vadd.f32 %v1758, 1.0
        %v1928 = vadd.f32 %v1760, 1.0
        %v1929 = vadd.f32 %v1762, 1.0
        %v1930 = vadd.f32 %v1764, 1.0
        %v1931 = vadd.f32 %v1766, 1.0
        %v1932 = vadd.f32 %v1768, 1.0
        %v1933 = vadd.f32 %v1770, 1.0
        %v1934 = vadd.f32 %v1772, 1.0
        %v1935 = vadd.f32 %v1774, 1.0
        %v1936 = vadd.f32 %v1776, 1.0
        %v1937 = vadd.f32 %v1778, 1.0
        %v1938 = vadd.f32 %v1780, 1.0
        %v1939 = vadd.f32 %v1782, 1.0
        %v1940 = vadd.f32 %v1784, 1.0
        %v1941 = vadd.f32 %v1786, 1.0
        %v1942 = vadd.f32 %v1788, 1.0
        %v1943 = vadd.f32 %v1790, 1.0
        %v1944 = vadd.f32 %v1792, 1.0
        %v1945 = vadd.f32 %v1794, 1.0
        %v1946 = vadd.f32 %v1796, 1.0
        %v1947 = vadd.f32 %v1798, 1.0
        %v1948 = vadd.f32 %v1800, 1.0
        %v1949 = vadd.f32 %v1802, 1.0
        %v1950 = vadd.f32 %v1804, 1.0
        %v1951 = vadd.f32 %v1806, 1.0
        %v1952 = vadd.f32 %v1808, 1.0
        %v1953 = vadd.f32 %v1810, 1.0
        %v1954 = vadd.f32 %v1812, 1.0
        %v1955 = vadd.f32 %v1814, 1.0
        %v1956 = vadd.f32 %v1816, 1.0
        %v1957 = vadd.f32 %v1818, 1.0
        %v1958 = vadd.f32 %v1820, 1.0
        %v1959 = vadd.f32 %v1822, 1.0
        %v1960 = vadd.f32 %v1824, 1.0
        %v1961 = vadd.f32 %v1826, 1.0
        %v1962 = vadd.f32 %v1828, 1.0
        %v1963 = vadd.f32 %v1830, 1.0
        %v1964 = vadd.f32 %v1832, 1.0
        %v1965 = vadd.f32 %v1834, 1.0
        %v1966 = vadd.f32 %v1836, 1.0
        %v1967 = vadd.f32 %v1838, 1.0
        %v1968 = vadd.f32 %v1840, 1.0
        %v1969 = vrcp.pop %v1841
        %v1970 = vmul.f32 1.0, %v1969
        %v1971 = vrcp.pop %v1842
        %v1972 = vmul.f32 1.0, %v1971
        %v1973 = vrcp.pop %v1843
        %v1974 = vmul.f32 1.0, %v1973
        %v1975 = vrcp.pop %v1844
        %v1976 = vmul.f32 1.0, %v1975
        %v1977 = vrcp.pop %v1845
        %v1978 = vmul.f32 1.0, %v1977
        %v1979 = vrcp.pop %v1846
        %v1980 = vmul.f32 1.0, %v1979
        %v1981 = vrcp.pop %v1847
        %v1982 = vmul.f32 1.0, %v1981
        %v1983 = vrcp.pop %v1848
        %v1984 = vmul.f32 1.0, %v1983
        %v1985 = vrcp.pop %v1849
        %v1986 = vmul.f32 1.0, %v1985
        %v1987 = vrcp.pop %v1850
        %v1988 = vmul.f32 1.0, %v1987
        %v1989 = vrcp.pop %v1851
        %v1990 = vmul.f32 1.0, %v1989
        %v1991 = vrcp.pop %v1852
        %v1992 = vmul.f32 1.0, %v1991
        %v1993 = vrcp.pop %v1853
        %v1994 = vmul.f32 1.0, %v1993
        %v1995 = vrcp.pop %v1854
        %v1996 = vmul.f32 1.0, %v1995
        %v1997 = vrcp.pop %v1855
        %v1998 = vmul.f32 1.0, %v1997
        %v1999 = vrcp.pop %v1856
        %v2000 = vmul.f32 1.0, %v1999
        %v2001 = vrcp.pop %v1857
        %v2002 = vmul.f32 1.0, %v2001
        %v2003 = vrcp.pop %v1858
        %v2004 = vmul.f32 1.0, %v2003
        %v2005 = vrcp.pop %v1859
        %v2006 = vmul.f32 1.0, %v2005
        %v2007 = vrcp.pop %v1860
        %v2008 = vmul.f32 1.0, %v2007
        %v2009 = vrcp.pop %v1861
        %v2010 = vmul.f32 1.0, %v2009
        %v2011 = vrcp.pop %v1862
        %v2012 = vmul.f32 1.0, %v2011
        %v2013 = vrcp.pop %v1863
        %v2014 = vmul.f32 1.0, %v2013
        %v2015 = vrcp.pop %v1864
        %v2016 = vmul.f32 1.0, %v2015
        %v2017 = vrcp.pop %v1865
        %v2018 = vmul.f32 1.0, %v2017
        %v2019 = vrcp.pop %v1866
        %v2020 = vmul.f32 1.0, %v2019
        %v2021 = vrcp.pop %v1867
        %v2022 = vmul.f32 1.0, %v2021
        %v2023 = vrcp.pop %v1868
        %v2024 = vmul.f32 1.0, %v2023
        %v2025 = vrcp.pop %v1869
        %v2026 = vmul.f32 1.0, %v2025
        %v2027 = vrcp.pop %v1870
        %v2028 = vmul.f32 1.0, %v2027
        %v2029 = vrcp.pop %v1871
        %v2030 = vmul.f32 1.0, %v2029
        %v2031 = vrcp.pop %v1872
        %v2032 = vmul.f32 1.0, %v2031
        %v2033 = vrcp.pop %v1873
        %v2034 = vmul.f32 1.0, %v2033
        %v2035 = vrcp.pop %v1874
        %v2036 = vmul.f32 1.0, %v2035
        %v2037 = vrcp.pop %v1875
        %v2038 = vmul.f32 1.0, %v2037
        %v2039 = vrcp.pop %v1876
        %v2040 = vmul.f32 1.0, %v2039
        %v2041 = vrcp.pop %v1877
        %v2042 = vmul.f32 1.0, %v2041
        %v2043 = vrcp.pop %v1878
        %v2044 = vmul.f32 1.0, %v2043
        %v2045 = vrcp.pop %v1879
        %v2046 = vmul.f32 1.0, %v2045
        %v2047 = vrcp.pop %v1880
        %v2048 = vmul.f32 1.0, %v2047
        %v2049 = vrcp.pop %v1881
        %v2050 = vmul.f32 1.0, %v2049
        %v2051 = vrcp.pop %v1882
        %v2052 = vmul.f32 1.0, %v2051
        %v2053 = vrcp.pop %v1883
        %v2054 = vmul.f32 1.0, %v2053
        %v2055 = vrcp.pop %v1884
        %v2056 = vmul.f32 1.0, %v2055
        %v2057 = vrcp.pop %v1885
        %v2058 = vmul.f32 1.0, %v2057
        %v2059 = vrcp.pop %v1886
        %v2060 = vmul.f32 1.0, %v2059
        %v2061 = vrcp.pop %v1887
        %v2062 = vmul.f32 1.0, %v2061
        %v2063 = vrcp.pop %v1888
        %v2064 = vmul.f32 1.0, %v2063
        %v2065 = vrcp.pop %v1889
        %v2066 = vmul.f32 1.0, %v2065
        %v2067 = vrcp.pop %v1890
        %v2068 = vmul.f32 1.0, %v2067
        %v2069 = vrcp.pop %v1891
        %v2070 = vmul.f32 1.0, %v2069
        %v2071 = vrcp.pop %v1892
        %v2072 = vmul.f32 1.0, %v2071
        %v2073 = vrcp.pop %v1893
        %v2074 = vmul.f32 1.0, %v2073
        %v2075 = vrcp.pop %v1894
        %v2076 = vmul.f32 1.0, %v2075
        %v2077 = vrcp.pop %v1895
        %v2078 = vmul.f32 1.0, %v2077
        %v2079 = vrcp.pop %v1896
        %v2080 = vmul.f32 1.0, %v2079
        %v2081 = vrcp.pop %v1897
        %v2082 = vmul.f32 1.0, %v2081
        %v2083 = vrcp.pop %v1898
        %v2084 = vmul.f32 1.0, %v2083
        %v2085 = vrcp.pop %v1899
        %v2086 = vmul.f32 1.0, %v2085
        %v2087 = vrcp.pop %v1900
        %v2088 = vmul.f32 1.0, %v2087
        %v2089 = vrcp.pop %v1901
        %v2090 = vmul.f32 1.0, %v2089
        %v2091 = vrcp.pop %v1902
        %v2092 = vmul.f32 1.0, %v2091
        %v2093 = vrcp.pop %v1903
        %v2094 = vmul.f32 1.0, %v2093
        %v2095 = vrcp.pop %v1904
        %v2096 = vmul.f32 1.0, %v2095
        %v2097 = vrcp.pop %v1905
        %v2098 = vmul.f32 1.0, %v2097
        %v2099 = vrcp.pop %v1906
        %v2100 = vmul.f32 1.0, %v2099
        %v2101 = vrcp.pop %v1907
        %v2102 = vmul.f32 1.0, %v2101
        %v2103 = vrcp.pop %v1908
        %v2104 = vmul.f32 1.0, %v2103
        %v2105 = vrcp.pop %v1909
        %v2106 = vmul.f32 1.0, %v2105
        %v2107 = vrcp.pop %v1910
        %v2108 = vmul.f32 1.0, %v2107
        %v2109 = vrcp.pop %v1911
        %v2110 = vmul.f32 1.0, %v2109
        %v2111 = vrcp.pop %v1912
        %v2112 = vmul.f32 1.0, %v2111
        %v2113 = vrcp.pop %v1913
        %v2114 = vmul.f32 1.0, %v2113
        %v2115 = vrcp.pop %v1914
        %v2116 = vmul.f32 1.0, %v2115
        %v2117 = vrcp.pop %v1915
        %v2118 = vmul.f32 1.0, %v2117
        %v2119 = vrcp.pop %v1916
        %v2120 = vmul.f32 1.0, %v2119
        %v2121 = vrcp.pop %v1917
        %v2122 = vmul.f32 1.0, %v2121
        %v2123 = vrcp.pop %v1918
        %v2124 = vmul.f32 1.0, %v2123
        %v2125 = vrcp.pop %v1919
        %v2126 = vmul.f32 1.0, %v2125
        %v2127 = vrcp.pop %v1920
        %v2128 = vmul.f32 1.0, %v2127
        %v2129 = vrcp.pop %v1921
        %v2130 = vmul.f32 1.0, %v2129
        %v2131 = vrcp.pop %v1922
        %v2132 = vmul.f32 1.0, %v2131
        %v2133 = vrcp.pop %v1923
        %v2134 = vmul.f32 1.0, %v2133
        %v2135 = vrcp.pop %v1924
        %v2136 = vmul.f32 1.0, %v2135
        %v2137 = vrcp.pop %v1925
        %v2138 = vmul.f32 1.0, %v2137
        %v2139 = vrcp.pop %v1926
        %v2140 = vmul.f32 1.0, %v2139
        %v2141 = vrcp.pop %v1927
        %v2142 = vmul.f32 1.0, %v2141
        %v2143 = vrcp.pop %v1928
        %v2144 = vmul.f32 1.0, %v2143
        %v2145 = vrcp.pop %v1929
        %v2146 = vmul.f32 1.0, %v2145
        %v2147 = vrcp.pop %v1930
        %v2148 = vmul.f32 1.0, %v2147
        %v2149 = vrcp.pop %v1931
        %v2150 = vmul.f32 1.0, %v2149
        %v2151 = vrcp.pop %v1932
        %v2152 = vmul.f32 1.0, %v2151
        %v2153 = vrcp.pop %v1933
        %v2154 = vmul.f32 1.0, %v2153
        %v2155 = vrcp.pop %v1934
        %v2156 = vmul.f32 1.0, %v2155
        %v2157 = vrcp.pop %v1935
        %v2158 = vmul.f32 1.0, %v2157
        %v2159 = vrcp.pop %v1936
        %v2160 = vmul.f32 1.0, %v2159
        %v2161 = vrcp.pop %v1937
        %v2162 = vmul.f32 1.0, %v2161
        %v2163 = vrcp.pop %v1938
        %v2164 = vmul.f32 1.0, %v2163
        %v2165 = vrcp.pop %v1939
        %v2166 = vmul.f32 1.0, %v2165
        %v2167 = vrcp.pop %v1940
        %v2168 = vmul.f32 1.0, %v2167
        %v2169 = vrcp.pop %v1941
        %v2170 = vmul.f32 1.0, %v2169
        %v2171 = vrcp.pop %v1942
        %v2172 = vmul.f32 1.0, %v2171
        %v2173 = vrcp.pop %v1943
        %v2174 = vmul.f32 1.0, %v2173
        %v2175 = vrcp.pop %v1944
        %v2176 = vmul.f32 1.0, %v2175
        %v2177 = vrcp.pop %v1945
        %v2178 = vmul.f32 1.0, %v2177
        %v2179 = vrcp.pop %v1946
        %v2180 = vmul.f32 1.0, %v2179
        %v2181 = vrcp.pop %v1947
        %v2182 = vmul.f32 1.0, %v2181
        %v2183 = vrcp.pop %v1948
        %v2184 = vmul.f32 1.0, %v2183
        %v2185 = vrcp.pop %v1949
        %v2186 = vmul.f32 1.0, %v2185
        %v2187 = vrcp.pop %v1950
        %v2188 = vmul.f32 1.0, %v2187
        %v2189 = vrcp.pop %v1951
        %v2190 = vmul.f32 1.0, %v2189
        %v2191 = vrcp.pop %v1952
        %v2192 = vmul.f32 1.0, %v2191
        %v2193 = vrcp.pop %v1953
        %v2194 = vmul.f32 1.0, %v2193
        %v2195 = vrcp.pop %v1954
        %v2196 = vmul.f32 1.0, %v2195
        %v2197 = vrcp.pop %v1955
        %v2198 = vmul.f32 1.0, %v2197
        %v2199 = vrcp.pop %v1956
        %v2200 = vmul.f32 1.0, %v2199
        %v2201 = vrcp.pop %v1957
        %v2202 = vmul.f32 1.0, %v2201
        %v2203 = vrcp.pop %v1958
        %v2204 = vmul.f32 1.0, %v2203
        %v2205 = vrcp.pop %v1959
        %v2206 = vmul.f32 1.0, %v2205
        %v2207 = vrcp.pop %v1960
        %v2208 = vmul.f32 1.0, %v2207
        %v2209 = vrcp.pop %v1961
        %v2210 = vmul.f32 1.0, %v2209
        %v2211 = vrcp.pop %v1962
        %v2212 = vmul.f32 1.0, %v2211
        %v2213 = vrcp.pop %v1963
        %v2214 = vmul.f32 1.0, %v2213
        %v2215 = vrcp.pop %v1964
        %v2216 = vmul.f32 1.0, %v2215
        %v2217 = vrcp.pop %v1965
        %v2218 = vmul.f32 1.0, %v2217
        %v2219 = vrcp.pop %v1966
        %v2220 = vmul.f32 1.0, %v2219
        %v2221 = vrcp.pop %v1967
        %v2222 = vmul.f32 1.0, %v2221
        %v2223 = vrcp.pop %v1968
        %v2224 = vmul.f32 1.0, %v2223
        %v2225 = vmul.f32 %v720, %v1970
        %v2226 = vmul.f32 %v722, %v1972
        %v2227 = vmul.f32 %v913, %v1974
        %v2228 = vmul.f32 %v915, %v1976
        %v2229 = vmul.f32 %v724, %v1978
        %v2230 = vmul.f32 %v726, %v1980
        %v2231 = vmul.f32 %v917, %v1982
        %v2232 = vmul.f32 %v919, %v1984
        %v2233 = vmul.f32 %v730, %v1986
        %v2234 = vmul.f32 %v732, %v1988
        %v2235 = vmul.f32 %v923, %v1990
        %v2236 = vmul.f32 %v925, %v1992
        %v2237 = vmul.f32 %v734, %v1994
        %v2238 = vmul.f32 %v736, %v1996
        %v2239 = vmul.f32 %v927, %v1998
        %v2240 = vmul.f32 %v929, %v2000
        %v2241 = vmul.f32 %v740, %v2002
        %v2242 = vmul.f32 %v742, %v2004
        %v2243 = vmul.f32 %v933, %v2006
        %v2244 = vmul.f32 %v935, %v2008
        %v2245 = vmul.f32 %v744, %v2010
        %v2246 = vmul.f32 %v746, %v2012
        %v2247 = vmul.f32 %v937, %v2014
        %v2248 = vmul.f32 %v939, %v2016
        %v2249 = vmul.f32 %v750, %v2018
        %v2250 = vmul.f32 %v752, %v2020
        %v2251 = vmul.f32 %v943, %v2022
        %v2252 = vmul.f32 %v945, %v2024
        %v2253 = vmul.f32 %v754, %v2026
        %v2254 = vmul.f32 %v756, %v2028
        %v2255 = vmul.f32 %v947, %v2030
        %v2256 = vmul.f32 %v949, %v2032
        %v2257 = vmul.f32 %v760, %v2034
        %v2258 = vmul.f32 %v762, %v2036
        %v2259 = vmul.f32 %v953, %v2038
        %v2260 = vmul.f32 %v955, %v2040
        %v2261 = vmul.f32 %v764, %v2042
        %v2262 = vmul.f32 %v766, %v2044
        %v2263 = vmul.f32 %v957, %v2046
        %v2264 = vmul.f32 %v959, %v2048
        %v2265 = vmul.f32 %v770, %v2050
        %v2266 = vmul.f32 %v772, %v2052
        %v2267 = vmul.f32 %v963, %v2054
        %v2268 = vmul.f32 %v965, %v2056
        %v2269 = vmul.f32 %v774, %v2058
        %v2270 = vmul.f32 %v776, %v2060
        %v2271 = vmul.f32 %v967, %v2062
        %v2272 = vmul.f32 %v969, %v2064
        %v2273 = vmul.f32 %v780, %v2066
        %v2274 = vmul.f32 %v782, %v2068
        %v2275 = vmul.f32 %v973, %v2070
        %v2276 = vmul.f32 %v975, %v2072
        %v2277 = vmul.f32 %v784, %v2074
        %v2278 = vmul.f32 %v786, %v2076
        %v2279 = vmul.f32 %v977, %v2078
        %v2280 = vmul.f32 %v979, %v2080
        %v2281 = vmul.f32 %v790, %v2082
        %v2282 = vmul.f32 %v792, %v2084
        %v2283 = vmul.f32 %v983, %v2086
        %v2284 = vmul.f32 %v985, %v2088
        %v2285 = vmul.f32 %v794, %v2090
        %v2286 = vmul.f32 %v796, %v2092
        %v2287 = vmul.f32 %v987, %v2094
        %v2288 = vmul.f32 %v989, %v2096
        %v2289 = vmul.f32 %v800, %v2098
        %v2290 = vmul.f32 %v802, %v2100
        %v2291 = vmul.f32 %v993, %v2102
        %v2292 = vmul.f32 %v995, %v2104
        %v2293 = vmul.f32 %v804, %v2106
        %v2294 = vmul.f32 %v806, %v2108
        %v2295 = vmul.f32 %v997, %v2110
        %v2296 = vmul.f32 %v999, %v2112
        %v2297 = vmul.f32 %v810, %v2114
        %v2298 = vmul.f32 %v812, %v2116
        %v2299 = vmul.f32 %v1003, %v2118
        %v2300 = vmul.f32 %v1005, %v2120
        %v2301 = vmul.f32 %v814, %v2122
        %v2302 = vmul.f32 %v816, %v2124
        %v2303 = vmul.f32 %v1007, %v2126
        %v2304 = vmul.f32 %v1009, %v2128
        %v2305 = vmul.f32 %v820, %v2130
        %v2306 = vmul.f32 %v822, %v2132
        %v2307 = vmul.f32 %v1013, %v2134
        %v2308 = vmul.f32 %v1015, %v2136
        %v2309 = vmul.f32 %v824, %v2138
        %v2310 = vmul.f32 %v826, %v2140
        %v2311 = vmul.f32 %v1017, %v2142
        %v2312 = vmul.f32 %v1019, %v2144
        %v2313 = vmul.f32 %v830, %v2146
        %v2314 = vmul.f32 %v832, %v2148
        %v2315 = vmul.f32 %v1023, %v2150
        %v2316 = vmul.f32 %v1025, %v2152
        %v2317 = vmul.f32 %v834, %v2154
        %v2318 = vmul.f32 %v836, %v2156
        %v2319 = vmul.f32 %v1027, %v2158
        %v2320 = vmul.f32 %v1029, %v2160
        %v2321 = vmul.f32 %v840, %v2162
        %v2322 = vmul.f32 %v842, %v2164
        %v2323 = vmul.f32 %v1033, %v2166
        %v2324 = vmul.f32 %v1035, %v2168
        %v2325 = vmul.f32 %v844, %v2170
        %v2326 = vmul.f32 %v846, %v2172
        %v2327 = vmul.f32 %v1037, %v2174
        %v2328 = vmul.f32 %v1039, %v2176
        %v2329 = vmul.f32 %v850, %v2178
        %v2330 = vmul.f32 %v852, %v2180
        %v2331 = vmul.f32 %v1043, %v2182
        %v2332 = vmul.f32 %v1045, %v2184
        %v2333 = vmul.f32 %v854, %v2186
        %v2334 = vmul.f32 %v856, %v2188
        %v2335 = vmul.f32 %v1047, %v2190
        %v2336 = vmul.f32 %v1049, %v2192
        %v2337 = vmul.f32 %v860, %v2194
        %v2338 = vmul.f32 %v862, %v2196
        %v2339 = vmul.f32 %v1053, %v2198
        %v2340 = vmul.f32 %v1055, %v2200
        %v2341 = vmul.f32 %v864, %v2202
        %v2342 = vmul.f32 %v866, %v2204
        %v2343 = vmul.f32 %v1057, %v2206
        %v2344 = vmul.f32 %v1059, %v2208
        %v2345 = vmul.f32 %v870, %v2210
        %v2346 = vmul.f32 %v872, %v2212
        %v2347 = vmul.f32 %v1063, %v2214
        %v2348 = vmul.f32 %v1065, %v2216
        %v2349 = vmul.f32 %v874, %v2218
        %v2350 = vmul.f32 %v876, %v2220
        %v2351 = vmul.f32 %v1067, %v2222
        %v2352 = vmul.f32 %v1069, %v2224
        %v2353 = vmul.f32 %v2225, %v1106
        %v2354 = vmul.f32 %v2226, %v1108
        %v2355 = vmul.f32 %v2227, %v1299
        %v2356 = vmul.f32 %v2228, %v1301
        %v2357 = vmul.f32 %v2229, %v1110
        %v2358 = vmul.f32 %v2230, %v1112
        %v2359 = vmul.f32 %v2231, %v1303
        %v2360 = vmul.f32 %v2232, %v1305
        %v2361 = vmul.f32 %v2233, %v1116
        %v2362 = vmul.f32 %v2234, %v1118
        %v2363 = vmul.f32 %v2235, %v1309
        %v2364 = vmul.f32 %v2236, %v1311
        %v2365 = vmul.f32 %v2237, %v1120
        %v2366 = vmul.f32 %v2238, %v1122
        %v2367 = vmul.f32 %v2239, %v1313
        %v2368 = vmul.f32 %v2240, %v1315
        %v2369 = vmul.f32 %v2241, %v1126
        %v2370 = vmul.f32 %v2242, %v1128
        %v2371 = vmul.f32 %v2243, %v1319
        %v2372 = vmul.f32 %v2244, %v1321
        %v2373 = vmul.f32 %v2245, %v1130
        %v2374 = vmul.f32 %v2246, %v1132
        %v2375 = vmul.f32 %v2247, %v1323
        %v2376 = vmul.f32 %v2248, %v1325
        %v2377 = vmul.f32 %v2249, %v1136
        %v2378 = vmul.f32 %v2250, %v1138
        %v2379 = vmul.f32 %v2251, %v1329
        %v2380 = vmul.f32 %v2252, %v1331
        %v2381 = vmul.f32 %v2253, %v1140
        %v2382 = vmul.f32 %v2254, %v1142
        %v2383 = vmul.f32 %v2255, %v1333
        %v2384 = vmul.f32 %v2256, %v1335
        %v2385 = vmul.f32 %v2257, %v1146
        %v2386 = vmul.f32 %v2258, %v1148
        %v2387 = vmul.f32 %v2259, %v1339
        %v2388 = vmul.f32 %v2260, %v1341
        %v2389 = vmul.f32 %v2261, %v1150
        %v2390 = vmul.f32 %v2262, %v1152
        %v2391 = vmul.f32 %v2263, %v1343
        %v2392 = vmul.f32 %v2264, %v1345
        %v2393 = vmul.f32 %v2265, %v1156
        %v2394 = vmul.f32 %v2266, %v1158
        %v2395 = vmul.f32 %v2267, %v1349
        %v2396 = vmul.f32 %v2268, %v1351
        %v2397 = vmul.f32 %v2269, %v1160
        %v2398 = vmul.f32 %v2270, %v1162
        %v2399 = vmul.f32 %v2271, %v1353
        %v2400 = vmul.f32 %v2272, %v1355
        %v2401 = vmul.f32 %v2273, %v1166
        %v2402 = vmul.f32 %v2274, %v1168
        %v2403 = vmul.f32 %v2275, %v1359
        %v2404 = vmul.f32 %v2276, %v1361
        %v2405 = vmul.f32 %v2277, %v1170
        %v2406 = vmul.f32 %v2278, %v1172
        %v2407 = vmul.f32 %v2279, %v1363
        %v2408 = vmul.f32 %v2280, %v1365
        %v2409 = vmul.f32 %v2281, %v1176
        %v2410 = vmul.f32 %v2282, %v1178
        %v2411 = vmul.f32 %v2283, %v1369
        %v2412 = vmul.f32 %v2284, %v1371
        %v2413 = vmul.f32 %v2285, %v1180
        %v2414 = vmul.f32 %v2286, %v1182
        %v2415 = vmul.f32 %v2287, %v1373
        %v2416 = vmul.f32 %v2288, %v1375
        %v2417 = vmul.f32 %v2289, %v1186
        %v2418 = vmul.f32 %v2290, %v1188
        %v2419 = vmul.f32 %v2291, %v1379
        %v2420 = vmul.f32 %v2292, %v1381
        %v2421 = vmul.f32 %v2293, %v1190
        %v2422 = vmul.f32 %v2294, %v1192
        %v2423 = vmul.f32 %v2295, %v1383
        %v2424 = vmul.f32 %v2296, %v1385
        %v2425 = vmul.f32 %v2297, %v1196
        %v2426 = vmul.f32 %v2298, %v1198
        %v2427 = vmul.f32 %v2299, %v1389
        %v2428 = vmul.f32 %v2300, %v1391
        %v2429 = vmul.f32 %v2301, %v1200
        %v2430 = vmul.f32 %v2302, %v1202
        %v2431 = vmul.f32 %v2303, %v1393
        %v2432 = vmul.f32 %v2304, %v1395
        %v2433 = vmul.f32 %v2305, %v1206
        %v2434 = vmul.f32 %v2306, %v1208
        %v2435 = vmul.f32 %v2307, %v1399
        %v2436 = vmul.f32 %v2308, %v1401
        %v2437 = vmul.f32 %v2309, %v1210
        %v2438 = vmul.f32 %v2310, %v1212
        %v2439 = vmul.f32 %v2311, %v1403
        %v2440 = vmul.f32 %v2312, %v1405
        %v2441 = vmul.f32 %v2313, %v1216
        %v2442 = vmul.f32 %v2314, %v1218
        %v2443 = vmul.f32 %v2315, %v1409
        %v2444 = vmul.f32 %v2316, %v1411
        %v2445 = vmul.f32 %v2317, %v1220
        %v2446 = vmul.f32 %v2318, %v1222
        %v2447 = vmul.f32 %v2319, %v1413
        %v2448 = vmul.f32 %v2320, %v1415
        %v2449 = vmul.f32 %v2321, %v1226
        %v2450 = vmul.f32 %v2322, %v1228
        %v2451 = vmul.f32 %v2323, %v1419
        %v2452 = vmul.f32 %v2324, %v1421
        %v2453 = vmul.f32 %v2325, %v1230
        %v2454 = vmul.f32 %v2326, %v1232
        %v2455 = vmul.f32 %v2327, %v1423
        %v2456 = vmul.f32 %v2328, %v1425
        %v2457 = vmul.f32 %v2329, %v1236
        %v2458 = vmul.f32 %v2330, %v1238
        %v2459 = vmul.f32 %v2331, %v1429
        %v2460 = vmul.f32 %v2332, %v1431
        %v2461 = vmul.f32 %v2333, %v1240
        %v2462 = vmul.f32 %v2334, %v1242
        %v2463 = vmul.f32 %v2335, %v1433
        %v2464 = vmul.f32 %v2336, %v1435
        %v2465 = vmul.f32 %v2337, %v1246
        %v2466 = vmul.f32 %v2338, %v1248
        %v2467 = vmul.f32 %v2339, %v1439
        %v2468 = vmul.f32 %v2340, %v1441
        %v2469 = vmul.f32 %v2341, %v1250
        %v2470 = vmul.f32 %v2342, %v1252
        %v2471 = vmul.f32 %v2343, %v1443
        %v2472 = vmul.f32 %v2344, %v1445
        %v2473 = vmul.f32 %v2345, %v1256
        %v2474 = vmul.f32 %v2346, %v1258
        %v2475 = vmul.f32 %v2347, %v1449
        %v2476 = vmul.f32 %v2348, %v1451
        %v2477 = vmul.f32 %v2349, %v1260
        %v2478 = vmul.f32 %v2350, %v1262
        %v2479 = vmul.f32 %v2351, %v1453
        %v2480 = vmul.f32 %v2352, %v1455
        %v2481 = vpack.c.bf16 %v2357, %v2353
        %v2482 = vpack.c.bf16 %v2358, %v2354
        %v2483 = vpack.c.bf16 %v2359, %v2355
        %v2484 = vpack.c.bf16 %v2360, %v2356
        %v2485 = vpack.c.bf16 %v2365, %v2361
        %v2486 = vpack.c.bf16 %v2366, %v2362
        %v2487 = vpack.c.bf16 %v2367, %v2363
        %v2488 = vpack.c.bf16 %v2368, %v2364
        %v2489 = vpack.c.bf16 %v2373, %v2369
        %v2490 = vpack.c.bf16 %v2374, %v2370
        %v2491 = vpack.c.bf16 %v2375, %v2371
        %v2492 = vpack.c.bf16 %v2376, %v2372
        %v2493 = vpack.c.bf16 %v2381, %v2377
        %v2494 = vpack.c.bf16 %v2382, %v2378
        %v2495 = vpack.c.bf16 %v2383, %v2379
        %v2496 = vpack.c.bf16 %v2384, %v2380
        %v2497 = vpack.c.bf16 %v2389, %v2385
        %v2498 = vpack.c.bf16 %v2390, %v2386
        %v2499 = vpack.c.bf16 %v2391, %v2387
        %v2500 = vpack.c.bf16 %v2392, %v2388
        %v2501 = vpack.c.bf16 %v2397, %v2393
        %v2502 = vpack.c.bf16 %v2398, %v2394
        %v2503 = vpack.c.bf16 %v2399, %v2395
        %v2504 = vpack.c.bf16 %v2400, %v2396
        %v2505 = vpack.c.bf16 %v2405, %v2401
        %v2506 = vpack.c.bf16 %v2406, %v2402
        %v2507 = vpack.c.bf16 %v2407, %v2403
        %v2508 = vpack.c.bf16 %v2408, %v2404
        %v2509 = vpack.c.bf16 %v2413, %v2409
        %v2510 = vpack.c.bf16 %v2414, %v2410
        %v2511 = vpack.c.bf16 %v2415, %v2411
        %v2512 = vpack.c.bf16 %v2416, %v2412
        %v2513 = vpack.c.bf16 %v2421, %v2417
        %v2514 = vpack.c.bf16 %v2422, %v2418
        %v2515 = vpack.c.bf16 %v2423, %v2419
        %v2516 = vpack.c.bf16 %v2424, %v2420
        %v2517 = vpack.c.bf16 %v2429, %v2425
        %v2518 = vpack.c.bf16 %v2430, %v2426
        %v2519 = vpack.c.bf16 %v2431, %v2427
        %v2520 = vpack.c.bf16 %v2432, %v2428
        %v2521 = vpack.c.bf16 %v2437, %v2433
        %v2522 = vpack.c.bf16 %v2438, %v2434
        %v2523 = vpack.c.bf16 %v2439, %v2435
        %v2524 = vpack.c.bf16 %v2440, %v2436
        %v2525 = vpack.c.bf16 %v2445, %v2441
        %v2526 = vpack.c.bf16 %v2446, %v2442
        %v2527 = vpack.c.bf16 %v2447, %v2443
        %v2528 = vpack.c.bf16 %v2448, %v2444
        %v2529 = vpack.c.bf16 %v2453, %v2449
        %v2530 = vpack.c.bf16 %v2454, %v2450
        %v2531 = vpack.c.bf16 %v2455, %v2451
        %v2532 = vpack.c.bf16 %v2456, %v2452
        %v2533 = vpack.c.bf16 %v2461, %v2457
        %v2534 = vpack.c.bf16 %v2462, %v2458
        %v2535 = vpack.c.bf16 %v2463, %v2459
        %v2536 = vpack.c.bf16 %v2464, %v2460
        %v2537 = vpack.c.bf16 %v2469, %v2465
        %v2538 = vpack.c.bf16 %v2470, %v2466
        %v2539 = vpack.c.bf16 %v2471, %v2467
        %v2540 = vpack.c.bf16 %v2472, %v2468
        %v2541 = vpack.c.bf16 %v2477, %v2473
        %v2542 = vpack.c.bf16 %v2478, %v2474
        %v2543 = vpack.c.bf16 %v2479, %v2475
        %v2544 = vpack.c.bf16 %v2480, %v2476
        %v2545 = vld [vmem:[%s2] sm:$0xf]
        %v2546 = vld [vmem:[%s2 + $0x4] sm:$0xf]
        %v2547 = vld [vmem:[%s2 + $0x8] sm:$0xf]
        %v2548 = vld [vmem:[%s2 + $0xc] sm:$0xf]
        %v2549 = vld [vmem:[%s2 + $0x10] sm:$0xf]
        %v2550 = vld [vmem:[%s2 + $0x14] sm:$0xf]
        %v2551 = vld [vmem:[%s2 + $0x18] sm:$0xf]
        %v2552 = vld [vmem:[%s2 + $0x1c] sm:$0xf]
        %v2553 = vld [vmem:[%s2 + $0x20] sm:$0xf]
        %v2554 = vld [vmem:[%s2 + $0x24] sm:$0xf]
        %v2555 = vld [vmem:[%s2 + $0x28] sm:$0xf]
        %v2556 = vld [vmem:[%s2 + $0x2c] sm:$0xf]
        %v2557 = vld [vmem:[%s2 + $0x30] sm:$0xf]
        %v2558 = vld [vmem:[%s2 + $0x34] sm:$0xf]
        %v2559 = vld [vmem:[%s2 + $0x38] sm:$0xf]
        %v2560 = vld [vmem:[%s2 + $0x3c] sm:$0xf]
        %v2561 = vld [vmem:[%s2 + $0x40] sm:$0xf]
        %v2562 = vld [vmem:[%s2 + $0x44] sm:$0xf]
        %v2563 = vld [vmem:[%s2 + $0x48] sm:$0xf]
        %v2564 = vld [vmem:[%s2 + $0x4c] sm:$0xf]
        %v2565 = vld [vmem:[%s2 + $0x50] sm:$0xf]
        %v2566 = vld [vmem:[%s2 + $0x54] sm:$0xf]
        %v2567 = vld [vmem:[%s2 + $0x58] sm:$0xf]
        %v2568 = vld [vmem:[%s2 + $0x5c] sm:$0xf]
        %v2569 = vld [vmem:[%s2 + $0x60] sm:$0xf]
        %v2570 = vld [vmem:[%s2 + $0x64] sm:$0xf]
        %v2571 = vld [vmem:[%s2 + $0x68] sm:$0xf]
        %v2572 = vld [vmem:[%s2 + $0x6c] sm:$0xf]
        %v2573 = vld [vmem:[%s2 + $0x70] sm:$0xf]
        %v2574 = vld [vmem:[%s2 + $0x74] sm:$0xf]
        %v2575 = vld [vmem:[%s2 + $0x78] sm:$0xf]
        %v2576 = vld [vmem:[%s2 + $0x7c] sm:$0xf]
        %v2577 = vld [vmem:[%s2 + $0x80] sm:$0xf]
        %v2578 = vld [vmem:[%s2 + $0x84] sm:$0xf]
        %v2579 = vld [vmem:[%s2 + $0x88] sm:$0xf]
        %v2580 = vld [vmem:[%s2 + $0x8c] sm:$0xf]
        %v2581 = vld [vmem:[%s2 + $0x90] sm:$0xf]
        %v2582 = vld [vmem:[%s2 + $0x94] sm:$0xf]
        %v2583 = vld [vmem:[%s2 + $0x98] sm:$0xf]
        %v2584 = vld [vmem:[%s2 + $0x9c] sm:$0xf]
        %v2585 = vld [vmem:[%s2 + $0xa0] sm:$0xf]
        %v2586 = vld [vmem:[%s2 + $0xa4] sm:$0xf]
        %v2587 = vld [vmem:[%s2 + $0xa8] sm:$0xf]
        %v2588 = vld [vmem:[%s2 + $0xac] sm:$0xf]
        %v2589 = vld [vmem:[%s2 + $0xb0] sm:$0xf]
        %v2590 = vld [vmem:[%s2 + $0xb4] sm:$0xf]
        %v2591 = vld [vmem:[%s2 + $0xb8] sm:$0xf]
        %v2592 = vld [vmem:[%s2 + $0xbc] sm:$0xf]
        %v2593 = vld [vmem:[%s2 + $0xc0] sm:$0xf]
        %v2594 = vld [vmem:[%s2 + $0xc4] sm:$0xf]
        %v2595 = vld [vmem:[%s2 + $0xc8] sm:$0xf]
        %v2596 = vld [vmem:[%s2 + $0xcc] sm:$0xf]
        %v2597 = vld [vmem:[%s2 + $0xd0] sm:$0xf]
        %v2598 = vld [vmem:[%s2 + $0xd4] sm:$0xf]
        %v2599 = vld [vmem:[%s2 + $0xd8] sm:$0xf]
        %v2600 = vld [vmem:[%s2 + $0xdc] sm:$0xf]
        %v2601 = vld [vmem:[%s2 + $0xe0] sm:$0xf]
        %v2602 = vld [vmem:[%s2 + $0xe4] sm:$0xf]
        %v2603 = vld [vmem:[%s2 + $0xe8] sm:$0xf]
        %v2604 = vld [vmem:[%s2 + $0xec] sm:$0xf]
        %v2605 = vld [vmem:[%s2 + $0xf0] sm:$0xf]
        %v2606 = vld [vmem:[%s2 + $0xf4] sm:$0xf]
        %v2607 = vld [vmem:[%s2 + $0xf8] sm:$0xf]
        %v2608 = vld [vmem:[%s2 + $0xfc] sm:$0xf]
        %v2673 = vunpack.c.l.b16 %v2545
        %v2674 = vunpack.c.l.b16 %v2546
        %v2675 = vunpack.c.l.b16 %v2547
        %v2676 = vunpack.c.l.b16 %v2548
        %v2677 = vunpack.c.l.b16 %v2549
        %v2678 = vunpack.c.l.b16 %v2550
        %v2679 = vunpack.c.l.b16 %v2551
        %v2680 = vunpack.c.l.b16 %v2552
        %v2681 = vunpack.c.l.b16 %v2553
        %v2682 = vunpack.c.l.b16 %v2554
        %v2683 = vunpack.c.l.b16 %v2555
        %v2684 = vunpack.c.l.b16 %v2556
        %v2685 = vunpack.c.l.b16 %v2557
        %v2686 = vunpack.c.l.b16 %v2558
        %v2687 = vunpack.c.l.b16 %v2559
        %v2688 = vunpack.c.l.b16 %v2560
        %v2689 = vunpack.c.l.b16 %v2561
        %v2690 = vunpack.c.l.b16 %v2562
        %v2691 = vunpack.c.l.b16 %v2563
        %v2692 = vunpack.c.l.b16 %v2564
        %v2693 = vunpack.c.l.b16 %v2565
        %v2694 = vunpack.c.l.b16 %v2566
        %v2695 = vunpack.c.l.b16 %v2567
        %v2696 = vunpack.c.l.b16 %v2568
        %v2697 = vunpack.c.l.b16 %v2569
        %v2698 = vunpack.c.l.b16 %v2570
        %v2699 = vunpack.c.l.b16 %v2571
        %v2700 = vunpack.c.l.b16 %v2572
        %v2701 = vunpack.c.l.b16 %v2573
        %v2702 = vunpack.c.l.b16 %v2574
        %v2703 = vunpack.c.l.b16 %v2575
        %v2704 = vunpack.c.l.b16 %v2576
        %v2705 = vunpack.c.l.b16 %v2577
        %v2706 = vunpack.c.l.b16 %v2578
        %v2707 = vunpack.c.l.b16 %v2579
        %v2708 = vunpack.c.l.b16 %v2580
        %v2709 = vunpack.c.l.b16 %v2581
        %v2710 = vunpack.c.l.b16 %v2582
        %v2711 = vunpack.c.l.b16 %v2583
        %v2712 = vunpack.c.l.b16 %v2584
        %v2713 = vunpack.c.l.b16 %v2585
        %v2714 = vunpack.c.l.b16 %v2586
        %v2715 = vunpack.c.l.b16 %v2587
        %v2716 = vunpack.c.l.b16 %v2588
        %v2717 = vunpack.c.l.b16 %v2589
        %v2718 = vunpack.c.l.b16 %v2590
        %v2719 = vunpack.c.l.b16 %v2591
        %v2720 = vunpack.c.l.b16 %v2592
        %v2721 = vunpack.c.l.b16 %v2593
        %v2722 = vunpack.c.l.b16 %v2594
        %v2723 = vunpack.c.l.b16 %v2595
        %v2724 = vunpack.c.l.b16 %v2596
        %v2725 = vunpack.c.l.b16 %v2597
        %v2726 = vunpack.c.l.b16 %v2598
        %v2727 = vunpack.c.l.b16 %v2599
        %v2728 = vunpack.c.l.b16 %v2600
        %v2729 = vunpack.c.l.b16 %v2601
        %v2730 = vunpack.c.l.b16 %v2602
        %v2731 = vunpack.c.l.b16 %v2603
        %v2732 = vunpack.c.l.b16 %v2604
        %v2733 = vunpack.c.l.b16 %v2605
        %v2734 = vunpack.c.l.b16 %v2606
        %v2735 = vunpack.c.l.b16 %v2607
        %v2736 = vunpack.c.l.b16 %v2608
        %v2737 = vpack.c.b16 %v2674, %v2673
        %v2738 = vpack.c.b16 %v2676, %v2675
        %v2739 = vpack.c.b16 %v2678, %v2677
        %v2740 = vpack.c.b16 %v2680, %v2679
        %v2741 = vpack.c.b16 %v2682, %v2681
        %v2742 = vpack.c.b16 %v2684, %v2683
        %v2743 = vpack.c.b16 %v2686, %v2685
        %v2744 = vpack.c.b16 %v2688, %v2687
        %v2745 = vpack.c.b16 %v2690, %v2689
        %v2746 = vpack.c.b16 %v2692, %v2691
        %v2747 = vpack.c.b16 %v2694, %v2693
        %v2748 = vpack.c.b16 %v2696, %v2695
        %v2749 = vpack.c.b16 %v2698, %v2697
        %v2750 = vpack.c.b16 %v2700, %v2699
        %v2751 = vpack.c.b16 %v2702, %v2701
        %v2752 = vpack.c.b16 %v2704, %v2703
        %v2753 = vpack.c.b16 %v2706, %v2705
        %v2754 = vpack.c.b16 %v2708, %v2707
        %v2755 = vpack.c.b16 %v2710, %v2709
        %v2756 = vpack.c.b16 %v2712, %v2711
        %v2757 = vpack.c.b16 %v2714, %v2713
        %v2758 = vpack.c.b16 %v2716, %v2715
        %v2759 = vpack.c.b16 %v2718, %v2717
        %v2760 = vpack.c.b16 %v2720, %v2719
        %v2761 = vpack.c.b16 %v2722, %v2721
        %v2762 = vpack.c.b16 %v2724, %v2723
        %v2763 = vpack.c.b16 %v2726, %v2725
        %v2764 = vpack.c.b16 %v2728, %v2727
        %v2765 = vpack.c.b16 %v2730, %v2729
        %v2766 = vpack.c.b16 %v2732, %v2731
        %v2767 = vpack.c.b16 %v2734, %v2733
        %v2768 = vpack.c.b16 %v2736, %v2735
        %2801 = vmatprep.subr.bf16.mxu0 0
        %2802 = vmatpush1.bf16.msra.mxu0 %v2744
        %2803 = vmatprep.subr.bf16.mxu0 0
        %2804 = vmatpush1.bf16.msra.mxu0 %v2743
        %2805 = vmatprep.subr.bf16.mxu0 0
        %2806 = vmatpush1.bf16.msra.mxu0 %v2742
        %2807 = vmatprep.subr.bf16.mxu0 0
        %2808 = vmatpush1.bf16.msra.mxu0 %v2741
        %2809 = vmatprep.subr.bf16.mxu0 0
        %2810 = vmatpush1.bf16.msra.mxu0 %v2740
        %2811 = vmatprep.subr.bf16.mxu0 0
        %2812 = vmatpush1.bf16.msra.mxu0 %v2739
        %2813 = vmatprep.subr.bf16.mxu0 0
        %2814 = vmatpush1.bf16.msra.mxu0 %v2738
        %2815 = vmatprep.subr.bf16.mxu0 0
        %2816 = vmatpush1.bf16.msra.mxu0 %v2737
        %2817 = vmatprep.subr.bf16.mxu0 0
        %2818 = vmatpush2.bf16.msra.mxu0 %v2752
        %2819 = vmatprep.subr.bf16.mxu0 0
        %2820 = vmatpush2.bf16.msra.mxu0 %v2751
        %2821 = vmatprep.subr.bf16.mxu0 0
        %2822 = vmatpush2.bf16.msra.mxu0 %v2750
        %2823 = vmatprep.subr.bf16.mxu0 0
        %2824 = vmatpush2.bf16.msra.mxu0 %v2749
        %2825 = vmatprep.subr.bf16.mxu0 0
        %2826 = vmatpush2.bf16.msra.mxu0 %v2748
        %2827 = vmatprep.subr.bf16.mxu0 0
        %2828 = vmatpush2.bf16.msra.mxu0 %v2747
        %2829 = vmatprep.subr.bf16.mxu0 0
        %2830 = vmatpush2.bf16.msra.mxu0 %v2746
        %2831 = vmatprep.subr.bf16.mxu0 0
        %2832 = vmatpush2.bf16.msra.mxu0 %v2745
        %2833 = vmatprep.mubr.bf16.mxu0 %v2482
        %2834 = vmatmul.mubr.bf16.gmra.mxu0 %v2481
        %v2835 = vpop.f32.mrf.mxu0
        %v2836 = vadd.f32 0.0, %v2835
        %v2837 = vpop.f32.mrf.mxu0
        %v2838 = vpop.f32.mrf.mxu0
        %v2839 = vadd.f32 0.0, %v2838
        %v2840 = vpop.f32.mrf.mxu0
        %2841 = vmatprep.mubr.bf16.mxu0 %v2486
        %2842 = vmatmul.mubr.bf16.gmra.mxu0 %v2485
        %v2843 = vpop.f32.mrf.mxu0
        %v2844 = vadd.f32 0.0, %v2843
        %v2845 = vpop.f32.mrf.mxu0
        %v2846 = vpop.f32.mrf.mxu0
        %v2847 = vadd.f32 0.0, %v2846
        %v2848 = vpop.f32.mrf.mxu0
        %2849 = vmatprep.mubr.bf16.mxu0 %v2490
        %2850 = vmatmul.mubr.bf16.gmra.mxu0 %v2489
        %v2851 = vpop.f32.mrf.mxu0
        %v2852 = vadd.f32 0.0, %v2851
        %v2853 = vpop.f32.mrf.mxu0
        %v2854 = vpop.f32.mrf.mxu0
        %v2855 = vadd.f32 0.0, %v2854
        %v2856 = vpop.f32.mrf.mxu0
        %2857 = vmatprep.mubr.bf16.mxu0 %v2494
        %2858 = vmatmul.mubr.bf16.gmra.mxu0 %v2493
        %v2859 = vpop.f32.mrf.mxu0
        %v2860 = vadd.f32 0.0, %v2859
        %v2861 = vpop.f32.mrf.mxu0
        %v2862 = vpop.f32.mrf.mxu0
        %v2863 = vadd.f32 0.0, %v2862
        %v2864 = vpop.f32.mrf.mxu0
        %2865 = vmatprep.mubr.bf16.mxu0 %v2498
        %2866 = vmatmul.mubr.bf16.gmra.mxu0 %v2497
        %v2867 = vpop.f32.mrf.mxu0
        %v2868 = vadd.f32 0.0, %v2867
        %v2869 = vpop.f32.mrf.mxu0
        %v2870 = vpop.f32.mrf.mxu0
        %v2871 = vadd.f32 0.0, %v2870
        %v2872 = vpop.f32.mrf.mxu0
        %2873 = vmatprep.mubr.bf16.mxu0 %v2502
        %2874 = vmatmul.mubr.bf16.gmra.mxu0 %v2501
        %v2875 = vpop.f32.mrf.mxu0
        %v2876 = vadd.f32 0.0, %v2875
        %v2877 = vpop.f32.mrf.mxu0
        %v2878 = vpop.f32.mrf.mxu0
        %v2879 = vadd.f32 0.0, %v2878
        %v2880 = vpop.f32.mrf.mxu0
        %2881 = vmatprep.mubr.bf16.mxu0 %v2506
        %2882 = vmatmul.mubr.bf16.gmra.mxu0 %v2505
        %v2883 = vpop.f32.mrf.mxu0
        %v2884 = vadd.f32 0.0, %v2883
        %v2885 = vpop.f32.mrf.mxu0
        %v2886 = vpop.f32.mrf.mxu0
        %v2887 = vadd.f32 0.0, %v2886
        %v2888 = vpop.f32.mrf.mxu0
        %2889 = vmatprep.mubr.bf16.mxu0 %v2510
        %2890 = vmatmul.mubr.bf16.gmra.mxu0 %v2509
        %v2891 = vpop.f32.mrf.mxu0
        %v2892 = vadd.f32 0.0, %v2891
        %v2893 = vpop.f32.mrf.mxu0
        %v2894 = vpop.f32.mrf.mxu0
        %v2895 = vadd.f32 0.0, %v2894
        %v2896 = vpop.f32.mrf.mxu0
        %2897 = vmatprep.mubr.bf16.mxu0 %v2514
        %2898 = vmatmul.mubr.bf16.gmra.mxu0 %v2513
        %v2899 = vpop.f32.mrf.mxu0
        %v2900 = vadd.f32 0.0, %v2899
        %v2901 = vpop.f32.mrf.mxu0
        %v2902 = vpop.f32.mrf.mxu0
        %v2903 = vadd.f32 0.0, %v2902
        %v2904 = vpop.f32.mrf.mxu0
        %2905 = vmatprep.mubr.bf16.mxu0 %v2518
        %2906 = vmatmul.mubr.bf16.gmra.mxu0 %v2517
        %v2907 = vpop.f32.mrf.mxu0
        %v2908 = vadd.f32 0.0, %v2907
        %v2909 = vpop.f32.mrf.mxu0
        %v2910 = vpop.f32.mrf.mxu0
        %v2911 = vadd.f32 0.0, %v2910
        %v2912 = vpop.f32.mrf.mxu0
        %2913 = vmatprep.mubr.bf16.mxu0 %v2522
        %2914 = vmatmul.mubr.bf16.gmra.mxu0 %v2521
        %v2915 = vpop.f32.mrf.mxu0
        %v2916 = vadd.f32 0.0, %v2915
        %v2917 = vpop.f32.mrf.mxu0
        %v2918 = vpop.f32.mrf.mxu0
        %v2919 = vadd.f32 0.0, %v2918
        %v2920 = vpop.f32.mrf.mxu0
        %2921 = vmatprep.mubr.bf16.mxu0 %v2526
        %2922 = vmatmul.mubr.bf16.gmra.mxu0 %v2525
        %v2923 = vpop.f32.mrf.mxu0
        %v2924 = vadd.f32 0.0, %v2923
        %v2925 = vpop.f32.mrf.mxu0
        %v2926 = vpop.f32.mrf.mxu0
        %v2927 = vadd.f32 0.0, %v2926
        %v2928 = vpop.f32.mrf.mxu0
        %2929 = vmatprep.mubr.bf16.mxu0 %v2530
        %2930 = vmatmul.mubr.bf16.gmra.mxu0 %v2529
        %v2931 = vpop.f32.mrf.mxu0
        %v2932 = vadd.f32 0.0, %v2931
        %v2933 = vpop.f32.mrf.mxu0
        %v2934 = vpop.f32.mrf.mxu0
        %v2935 = vadd.f32 0.0, %v2934
        %v2936 = vpop.f32.mrf.mxu0
        %2937 = vmatprep.mubr.bf16.mxu0 %v2534
        %2938 = vmatmul.mubr.bf16.gmra.mxu0 %v2533
        %v2939 = vpop.f32.mrf.mxu0
        %v2940 = vadd.f32 0.0, %v2939
        %v2941 = vpop.f32.mrf.mxu0
        %v2942 = vpop.f32.mrf.mxu0
        %v2943 = vadd.f32 0.0, %v2942
        %v2944 = vpop.f32.mrf.mxu0
        %2945 = vmatprep.mubr.bf16.mxu0 %v2538
        %2946 = vmatmul.mubr.bf16.gmra.mxu0 %v2537
        %v2947 = vpop.f32.mrf.mxu0
        %v2948 = vadd.f32 0.0, %v2947
        %v2949 = vpop.f32.mrf.mxu0
        %v2950 = vpop.f32.mrf.mxu0
        %v2951 = vadd.f32 0.0, %v2950
        %v2952 = vpop.f32.mrf.mxu0
        %2953 = vmatprep.mubr.bf16.mxu0 %v2542
        %2954 = vmatmul.mubr.bf16.gmra.mxu0 %v2541
        %v2955 = vpop.f32.mrf.mxu0
        %v2956 = vadd.f32 0.0, %v2955
        %v2957 = vpop.f32.mrf.mxu0
        %v2958 = vpop.f32.mrf.mxu0
        %v2959 = vadd.f32 0.0, %v2958
        %v2960 = vpop.f32.mrf.mxu0
        %2961 = vdwg.mxu0
        %2962 = vmatprep.subr.bf16.mxu0 0
        %2963 = vmatpush1.bf16.msra.mxu0 %v2760
        %2964 = vmatprep.subr.bf16.mxu0 0
        %2965 = vmatpush1.bf16.msra.mxu0 %v2759
        %2966 = vmatprep.subr.bf16.mxu0 0
        %2967 = vmatpush1.bf16.msra.mxu0 %v2758
        %2968 = vmatprep.subr.bf16.mxu0 0
        %2969 = vmatpush1.bf16.msra.mxu0 %v2757
        %2970 = vmatprep.subr.bf16.mxu0 0
        %2971 = vmatpush1.bf16.msra.mxu0 %v2756
        %2972 = vmatprep.subr.bf16.mxu0 0
        %2973 = vmatpush1.bf16.msra.mxu0 %v2755
        %2974 = vmatprep.subr.bf16.mxu0 0
        %2975 = vmatpush1.bf16.msra.mxu0 %v2754
        %2976 = vmatprep.subr.bf16.mxu0 0
        %2977 = vmatpush1.bf16.msra.mxu0 %v2753
        %2978 = vmatprep.subr.bf16.mxu0 0
        %2979 = vmatpush2.bf16.msra.mxu0 %v2768
        %2980 = vmatprep.subr.bf16.mxu0 0
        %2981 = vmatpush2.bf16.msra.mxu0 %v2767
        %2982 = vmatprep.subr.bf16.mxu0 0
        %2983 = vmatpush2.bf16.msra.mxu0 %v2766
        %2984 = vmatprep.subr.bf16.mxu0 0
        %2985 = vmatpush2.bf16.msra.mxu0 %v2765
        %2986 = vmatprep.subr.bf16.mxu0 0
        %2987 = vmatpush2.bf16.msra.mxu0 %v2764
        %2988 = vmatprep.subr.bf16.mxu0 0
        %2989 = vmatpush2.bf16.msra.mxu0 %v2763
        %2990 = vmatprep.subr.bf16.mxu0 0
        %2991 = vmatpush2.bf16.msra.mxu0 %v2762
        %2992 = vmatprep.subr.bf16.mxu0 0
        %2993 = vmatpush2.bf16.msra.mxu0 %v2761
        %2994 = vmatprep.mubr.bf16.mxu0 %v2484
        %2995 = vmatmul.mubr.bf16.gmra.mxu0 %v2483
        %v2996 = vpop.f32.mrf.mxu0
        %v2997 = vadd.f32 %v2836, %v2996
        %v2998 = vpop.f32.mrf.mxu0
        %v2999 = vpop.f32.mrf.mxu0
        %v3000 = vadd.f32 %v2839, %v2999
        %v3001 = vpop.f32.mrf.mxu0
        %3002 = vmatprep.mubr.bf16.mxu0 %v2488
        %3003 = vmatmul.mubr.bf16.gmra.mxu0 %v2487
        %v3004 = vpop.f32.mrf.mxu0
        %v3005 = vadd.f32 %v2844, %v3004
        %v3006 = vpop.f32.mrf.mxu0
        %v3007 = vpop.f32.mrf.mxu0
        %v3008 = vadd.f32 %v2847, %v3007
        %v3009 = vpop.f32.mrf.mxu0
        %3010 = vmatprep.mubr.bf16.mxu0 %v2492
        %3011 = vmatmul.mubr.bf16.gmra.mxu0 %v2491
        %v3012 = vpop.f32.mrf.mxu0
        %v3013 = vadd.f32 %v2852, %v3012
        %v3014 = vpop.f32.mrf.mxu0
        %v3015 = vpop.f32.mrf.mxu0
        %v3016 = vadd.f32 %v2855, %v3015
        %v3017 = vpop.f32.mrf.mxu0
        %3018 = vmatprep.mubr.bf16.mxu0 %v2496
        %3019 = vmatmul.mubr.bf16.gmra.mxu0 %v2495
        %v3020 = vpop.f32.mrf.mxu0
        %v3021 = vadd.f32 %v2860, %v3020
        %v3022 = vpop.f32.mrf.mxu0
        %v3023 = vpop.f32.mrf.mxu0
        %v3024 = vadd.f32 %v2863, %v3023
        %v3025 = vpop.f32.mrf.mxu0
        %3026 = vmatprep.mubr.bf16.mxu0 %v2500
        %3027 = vmatmul.mubr.bf16.gmra.mxu0 %v2499
        %v3028 = vpop.f32.mrf.mxu0
        %v3029 = vadd.f32 %v2868, %v3028
        %v3030 = vpop.f32.mrf.mxu0
        %v3031 = vpop.f32.mrf.mxu0
        %v3032 = vadd.f32 %v2871, %v3031
        %v3033 = vpop.f32.mrf.mxu0
        %3034 = vmatprep.mubr.bf16.mxu0 %v2504
        %3035 = vmatmul.mubr.bf16.gmra.mxu0 %v2503
        %v3036 = vpop.f32.mrf.mxu0
        %v3037 = vadd.f32 %v2876, %v3036
        %v3038 = vpop.f32.mrf.mxu0
        %v3039 = vpop.f32.mrf.mxu0
        %v3040 = vadd.f32 %v2879, %v3039
        %v3041 = vpop.f32.mrf.mxu0
        %3042 = vmatprep.mubr.bf16.mxu0 %v2508
        %3043 = vmatmul.mubr.bf16.gmra.mxu0 %v2507
        %v3044 = vpop.f32.mrf.mxu0
        %v3045 = vadd.f32 %v2884, %v3044
        %v3046 = vpop.f32.mrf.mxu0
        %v3047 = vpop.f32.mrf.mxu0
        %v3048 = vadd.f32 %v2887, %v3047
        %v3049 = vpop.f32.mrf.mxu0
        %3050 = vmatprep.mubr.bf16.mxu0 %v2512
        %3051 = vmatmul.mubr.bf16.gmra.mxu0 %v2511
        %v3052 = vpop.f32.mrf.mxu0
        %v3053 = vadd.f32 %v2892, %v3052
        %v3054 = vpop.f32.mrf.mxu0
        %v3055 = vpop.f32.mrf.mxu0
        %v3056 = vadd.f32 %v2895, %v3055
        %v3057 = vpop.f32.mrf.mxu0
        %3058 = vmatprep.mubr.bf16.mxu0 %v2516
        %3059 = vmatmul.mubr.bf16.gmra.mxu0 %v2515
        %v3060 = vpop.f32.mrf.mxu0
        %v3061 = vadd.f32 %v2900, %v3060
        %v3062 = vpop.f32.mrf.mxu0
        %v3063 = vpop.f32.mrf.mxu0
        %v3064 = vadd.f32 %v2903, %v3063
        %v3065 = vpop.f32.mrf.mxu0
        %3066 = vmatprep.mubr.bf16.mxu0 %v2520
        %3067 = vmatmul.mubr.bf16.gmra.mxu0 %v2519
        %v3068 = vpop.f32.mrf.mxu0
        %v3069 = vadd.f32 %v2908, %v3068
        %v3070 = vpop.f32.mrf.mxu0
        %v3071 = vpop.f32.mrf.mxu0
        %v3072 = vadd.f32 %v2911, %v3071
        %v3073 = vpop.f32.mrf.mxu0
        %3074 = vmatprep.mubr.bf16.mxu0 %v2524
        %3075 = vmatmul.mubr.bf16.gmra.mxu0 %v2523
        %v3076 = vpop.f32.mrf.mxu0
        %v3077 = vadd.f32 %v2916, %v3076
        %v3078 = vpop.f32.mrf.mxu0
        %v3079 = vpop.f32.mrf.mxu0
        %v3080 = vadd.f32 %v2919, %v3079
        %v3081 = vpop.f32.mrf.mxu0
        %3082 = vmatprep.mubr.bf16.mxu0 %v2528
        %3083 = vmatmul.mubr.bf16.gmra.mxu0 %v2527
        %v3084 = vpop.f32.mrf.mxu0
        %v3085 = vadd.f32 %v2924, %v3084
        %v3086 = vpop.f32.mrf.mxu0
        %v3087 = vpop.f32.mrf.mxu0
        %v3088 = vadd.f32 %v2927, %v3087
        %v3089 = vpop.f32.mrf.mxu0
        %3090 = vmatprep.mubr.bf16.mxu0 %v2532
        %3091 = vmatmul.mubr.bf16.gmra.mxu0 %v2531
        %v3092 = vpop.f32.mrf.mxu0
        %v3093 = vadd.f32 %v2932, %v3092
        %v3094 = vpop.f32.mrf.mxu0
        %v3095 = vpop.f32.mrf.mxu0
        %v3096 = vadd.f32 %v2935, %v3095
        %v3097 = vpop.f32.mrf.mxu0
        %3098 = vmatprep.mubr.bf16.mxu0 %v2536
        %3099 = vmatmul.mubr.bf16.gmra.mxu0 %v2535
        %v3100 = vpop.f32.mrf.mxu0
        %v3101 = vadd.f32 %v2940, %v3100
        %v3102 = vpop.f32.mrf.mxu0
        %v3103 = vpop.f32.mrf.mxu0
        %v3104 = vadd.f32 %v2943, %v3103
        %v3105 = vpop.f32.mrf.mxu0
        %3106 = vmatprep.mubr.bf16.mxu0 %v2540
        %3107 = vmatmul.mubr.bf16.gmra.mxu0 %v2539
        %v3108 = vpop.f32.mrf.mxu0
        %v3109 = vadd.f32 %v2948, %v3108
        %v3110 = vpop.f32.mrf.mxu0
        %v3111 = vpop.f32.mrf.mxu0
        %v3112 = vadd.f32 %v2951, %v3111
        %v3113 = vpop.f32.mrf.mxu0
        %3114 = vmatprep.mubr.bf16.mxu0 %v2544
        %3115 = vmatmul.mubr.bf16.gmra.mxu0 %v2543
        %v3116 = vpop.f32.mrf.mxu0
        %v3117 = vadd.f32 %v2956, %v3116
        %v3118 = vpop.f32.mrf.mxu0
        %v3119 = vpop.f32.mrf.mxu0
        %v3120 = vadd.f32 %v2959, %v3119
        %v3121 = vpop.f32.mrf.mxu0
        %3122 = vdwg.mxu0
        %3123 = vst [vmem:[%s164] sm:$0xff] %v2997
        %3124 = vst [vmem:[%s164 + $0x8] sm:$0xff] %v3000
        %3125 = vst [vmem:[%s164 + $0x10] sm:$0xff] %v3005
        %3126 = vst [vmem:[%s164 + $0x18] sm:$0xff] %v3008
        %3127 = vst [vmem:[%s164 + $0x20] sm:$0xff] %v3013
        %3128 = vst [vmem:[%s164 + $0x28] sm:$0xff] %v3016
        %3129 = vst [vmem:[%s164 + $0x30] sm:$0xff] %v3021
        %3130 = vst [vmem:[%s164 + $0x38] sm:$0xff] %v3024
        %3131 = vst [vmem:[%s164 + $0x40] sm:$0xff] %v3029
        %3132 = vst [vmem:[%s164 + $0x48] sm:$0xff] %v3032
        %3133 = vst [vmem:[%s164 + $0x50] sm:$0xff] %v3037
        %3134 = vst [vmem:[%s164 + $0x58] sm:$0xff] %v3040
        %3135 = vst [vmem:[%s164 + $0x60] sm:$0xff] %v3045
        %3136 = vst [vmem:[%s164 + $0x68] sm:$0xff] %v3048
        %3137 = vst [vmem:[%s164 + $0x70] sm:$0xff] %v3053
        %3138 = vst [vmem:[%s164 + $0x78] sm:$0xff] %v3056
        %3139 = vst [vmem:[%s164 + $0x80] sm:$0xff] %v3061
        %3140 = vst [vmem:[%s164 + $0x88] sm:$0xff] %v3064
        %3141 = vst [vmem:[%s164 + $0x90] sm:$0xff] %v3069
        %3142 = vst [vmem:[%s164 + $0x98] sm:$0xff] %v3072
        %3143 = vst [vmem:[%s164 + $0xa0] sm:$0xff] %v3077
        %3144 = vst [vmem:[%s164 + $0xa8] sm:$0xff] %v3080
        %3145 = vst [vmem:[%s164 + $0xb0] sm:$0xff] %v3085
        %3146 = vst [vmem:[%s164 + $0xb8] sm:$0xff] %v3088
        %3147 = vst [vmem:[%s164 + $0xc0] sm:$0xff] %v3093
        %3148 = vst [vmem:[%s164 + $0xc8] sm:$0xff] %v3096
        %3149 = vst [vmem:[%s164 + $0xd0] sm:$0xff] %v3101
        %3150 = vst [vmem:[%s164 + $0xd8] sm:$0xff] %v3104
        %3151 = vst [vmem:[%s164 + $0xe0] sm:$0xff] %v3109
        %3152 = vst [vmem:[%s164 + $0xe8] sm:$0xff] %v3112
        %3153 = vst [vmem:[%s164 + $0xf0] sm:$0xff] %v3117
        %3154 = vst [vmem:[%s164 + $0xf8] sm:$0xff] %v3120
        %s3155 = sand.u32 %s93, 1
        %s3156 = scalar_lea.sflag [#allocation3], %s3155
        %s3157 = sand.u32 %s93, 1
        %s3158 = smul.addr %s3157, 256
        %s3159 = scalar_lea.vmem [#allocation2], %s3158
        // Predicated region
        $region33: #{feed_forward.1} parent=31 // pred_check
          %p3160 = pneg %p103
        $region34: #{feed_forward.1} parent=31 // pred_check_branch
          %3162 = sbr.rel (%p3160) target = $region36
        $region35: #{feed_forward.1} parent=31 // pred_region
          %s3163 = smul.u32 32, %s17
          %s3165 = ssub.s32 4096, 4096
          %3166 = vsyncadd %s3156, %s3165
          %s3167 = smul.addr %s3163, 128
          %s3168 = scalar_lea.hbm %s3, %s3167
          %s3169 = sshll.u32 %s3159, 4
          %s3170 = int_to_ptr.vmem [resolvable:$true] %s3169
          %3175 = dma.vmem_to_hbm [thread:$0]  %s3170, 4096, %s3168, %s3156, 128, 128, 8
        $region36: #{feed_forward.1} parent=31 // pred_fallthru
          _
      $region32: #{feed_forward.1} parent=5 // pred_fallthru
        _
      %p3176 = scmp.le.s32.totalorder 2, %s12
      // Predicated region
      $region37: #{feed_forward.1} parent=5 // pred_check
        %p3177 = pneg %p3176
      $region38: #{feed_forward.1} parent=5 // pred_check_branch
        %3179 = sbr.rel (%p3177) target = $region40
      $region39: #{feed_forward.1} parent=5 // pred_region
        %s3180 = ssub.s32 %s12, 2
        // Predicated region
        $region41: #{feed_forward.1} parent=39 // pred_check
          %p3181 = pneg %p109
        $region42: #{feed_forward.1} parent=39 // pred_check_branch
          %3183 = sbr.rel (%p3181) target = $region44
        $region43: #{feed_forward.1} parent=39 // pred_region
          %s3184 = sand.u32 %s94, 1
          %s3185 = scalar_lea.sflag [#allocation3], %s3184
          %s3186 = sand.u32 %s94, 1
          %s3187 = smul.addr %s3186, 256
          %s3188 = scalar_lea.vmem [#allocation2], %s3187
          %3189 = dma.done %s3185, 4096
        $region44: #{feed_forward.1} parent=39 // pred_fallthru
          _
      $region40: #{feed_forward.1} parent=5 // pred_fallthru
        _
    $region6: #{feed_forward.1} parent=1 // loop_footer
      %s16 = sadd.s32 1, %s12
    $region7: #{feed_forward.1} parent=1 // loop_footer_branch
      %11 = sbr.rel target = $region3
    $region8: #{feed_forward.1} parent=1 // loop_exit
      _
    %3190 = vsyncpa [#allocation3], 1
    %s3191 = scalar_lea.sflag [#allocation3], 1
    %3192 = vsyncpa %s3191, 1

// kernel: feed_forward.1
$region0: #{feed_forward.1}
  #allocation0 [shape = 'u32[]', space=smem, size = 0x4, offset = 0x4, fixed_abs, tag = 'smem constant byte address 0x4 - core index']
  #allocation1 [shape = 'u32[144,128]{1,0:T(1,128)}', space=vmem, size = 0x12000, scoped, tag = 'internal scratch']
  %s0 = inlined_call_operand.vmem [shape: bf16[512,128], index: 0, kind: input, shape index: {}]
  %s1 = inlined_call_operand.vmem [shape: bf16[128,1024], index: 1, kind: input, shape index: {}]
  %s2 = inlined_call_operand.vmem [shape: bf16[512,128], index: 2, kind: input, shape index: {}]
  %s3 = inlined_call_operand.hbm [shape: f32[512,128], index: 3, kind: output, shape index: {}]
  %s4 = sld [smem:[#allocation0]]
  $region45: #{feed_forward.1} parent=0
    _
  %s6 = ssub.s32 1, %s4
  %s7 = scalar_select 0, %s6, %s4
  $region1: #{feed_forward.1} parent=0
    #allocation2 [shape = 'u8[262144]{0}', space=vmem, size = 0x40000, scoped, tag = 'output window, operand 0']
    #allocation3 [shape = 's32[2]{0}', space=sflag, size = 0x8, scoped, tag = 'scoped memory for feed_forward.1']
    %8 = vsyncpa [#allocation3], 0
    %s9 = scalar_lea.sflag [#allocation3], 1
    %10 = vsyncpa %s9, 0
    loop: start=0, step=1, limit=4
    $region2: #{feed_forward.1} parent=1 // loop_pre_header
      _
    $region3: #{feed_forward.1} parent=1 // loop_header
      %s12 = sphi 0, %s16
      %p13 = scmp.ge.s32.totalorder %s12, 4
      %s22 = sphi 0, %s24
      %s25 = sphi 0, %s22
      %s26 = sphi 0, %s25
      %s42 = sphi 0, %s26
      %s46 = sphi 0, %s46
      %s48 = sphi 0, %s46
      %s49 = sphi 0, %s48
      %s63 = sphi 0, %s49
      %s67 = sphi 0, %s67
      %s69 = sphi 0, %s67
      %s70 = sphi 0, %s69
      %s84 = sphi 0, %s70
      %s90 = sphi 0, %s92
      %s93 = sphi 0, %s90
      %s94 = sphi 0, %s93
      %s110 = sphi 0, %s94
    $region4: #{feed_forward.1} parent=1 // loop_header_branch
      %15 = sbr.rel (%p13) target = $region8
    $region5: #{feed_forward.1} parent=1 // loop_body
      %s17 = ssub.s32 %s12, 1
      %s18 = ssub.s32 %s12, 2
      %s19 = sadd.s32 %s12, 1
      %s20 = ssub.s32 %s12, %s19
      %p21 = scmp.eq.s32.totalorder %s20, 0
      %s23 = sadd.s32 %s22, 1
      %s24 = scalar_select %p21, %s22, %s23
      %p27 = pneg %p21
      %p28 = scmp.eq.s32.totalorder %s12, 1
      %p29 = por %p27, %p28
      %p30 = scmp.ne.s32.totalorder %s22, %s25
      %p31 = scmp.eq.s32.totalorder %s12, 0
      %p32 = por %p30, %p31
      %p33 = scmp.ne.s32.totalorder %s22, %s25
      %p34 = scmp.eq.s32.totalorder %s17, 1
      %p35 = por %p33, %p34
      %p36 = scmp.ne.s32.totalorder %s25, %s26
      %p37 = scmp.eq.s32.totalorder %s17, 0
      %p38 = por %p36, %p37
      %p39 = scmp.ne.s32.totalorder %s25, %s26
      %p40 = scmp.eq.s32.totalorder %s18, 1
      %p41 = por %p39, %p40
      %p43 = scmp.ne.s32.totalorder %s26, %s42
      %p44 = scmp.eq.s32.totalorder %s18, 0
      %p45 = por %p43, %p44
      %s47 = sadd.s32 %s46, 1
      %p50 = scmp.eq.s32.totalorder %s12, 1
      %p51 = scmp.ne.s32.totalorder %s46, %s48
      %p52 = scmp.eq.s32.totalorder %s12, 0
      %p53 = por %p51, %p52
      %p54 = scmp.ne.s32.totalorder %s46, %s48
      %p55 = scmp.eq.s32.totalorder %s17, 1
      %p56 = por %p54, %p55
      %p57 = scmp.ne.s32.totalorder %s48, %s49
      %p58 = scmp.eq.s32.totalorder %s17, 0
      %p59 = por %p57, %p58
      %p60 = scmp.ne.s32.totalorder %s48, %s49
      %p61 = scmp.eq.s32.totalorder %s18, 1
      %p62 = por %p60, %p61
      %p64 = scmp.ne.s32.totalorder %s49, %s63
      %p65 = scmp.eq.s32.totalorder %s18, 0
      %p66 = por %p64, %p65
      %s68 = sadd.s32 %s67, 1
      %p71 = scmp.eq.s32.totalorder %s12, 1
      %p72 = scmp.ne.s32.totalorder %s67, %s69
      %p73 = scmp.eq.s32.totalorder %s12, 0
      %p74 = por %p72, %p73
      %p75 = scmp.ne.s32.totalorder %s67, %s69
      %p76 = scmp.eq.s32.totalorder %s17, 1
      %p77 = por %p75, %p76
      %p78 = scmp.ne.s32.totalorder %s69, %s70
      %p79 = scmp.eq.s32.totalorder %s17, 0
      %p80 = por %p78, %p79
      %p81 = scmp.ne.s32.totalorder %s69, %s70
      %p82 = scmp.eq.s32.totalorder %s18, 1
      %p83 = por %p81, %p82
      %p85 = scmp.ne.s32.totalorder %s70, %s84
      %p86 = scmp.eq.s32.totalorder %s18, 0
      %p87 = por %p85, %p86
      %s88 = ssub.s32 %s12, %s19
      %p89 = scmp.eq.s32.totalorder %s88, 0
      %s91 = sadd.s32 %s90, 1
      %s92 = scalar_select %p89, %s90, %s91
      %p95 = pneg %p89
      %p96 = scmp.eq.s32.totalorder %s12, 1
      %p97 = por %p95, %p96
      %p98 = scmp.ne.s32.totalorder %s90, %s93
      %p99 = scmp.eq.s32.totalorder %s12, 0
      %p100 = por %p98, %p99
      %p101 = scmp.ne.s32.totalorder %s90, %s93
      %p102 = scmp.eq.s32.totalorder %s17, 1
      %p103 = por %p101, %p102
      %p104 = scmp.ne.s32.totalorder %s93, %s94
      %p105 = scmp.eq.s32.totalorder %s17, 0
      %p106 = por %p104, %p105
      %p107 = scmp.ne.s32.totalorder %s93, %s94
      %p108 = scmp.eq.s32.totalorder %s18, 1
      %p109 = por %p107, %p108
      %p111 = scmp.ne.s32.totalorder %s94, %s110
      %p112 = scmp.eq.s32.totalorder %s18, 0
      %p113 = por %p111, %p112
      %p114 = scmp.le.s32.totalorder 1, %s12
      %p115 = scmp.lt.s32.totalorder %s12, 3
      %p116 = pnand %p114, %p115
      %p117 = pneg %p116
      // Predicated region
      $region9: #{feed_forward.1} parent=5 // pred_check
        _
      $region10: #{feed_forward.1} parent=5 // pred_check_branch
        %119 = sbr.rel (%p116) target = $region12
      $region11: #{feed_forward.1} parent=5 // pred_region
        %s120 = ssub.s32 %s12, 1
        // Predicated region
        $region13: #{feed_forward.1} parent=11 // pred_check
          %p121 = pneg %p59
        $region14: #{feed_forward.1} parent=11 // pred_check_branch
          %123 = sbr.rel (%p121) target = $region16
        $region15: #{feed_forward.1} parent=11 // pred_region
          _
        $region16: #{feed_forward.1} parent=11 // pred_fallthru
          _
        // Predicated region
        $region17: #{feed_forward.1} parent=11 // pred_check
          %p124 = pneg %p80
        $region18: #{feed_forward.1} parent=11 // pred_check_branch
          %126 = sbr.rel (%p124) target = $region20
        $region19: #{feed_forward.1} parent=11 // pred_region
          _
        $region20: #{feed_forward.1} parent=11 // pred_fallthru
          _
      $region12: #{feed_forward.1} parent=5 // pred_fallthru
        _
      %p127 = scmp.lt.s32.totalorder %s12, 2
      // Predicated region
      $region21: #{feed_forward.1} parent=5 // pred_check
        %p128 = pneg %p127
      $region22: #{feed_forward.1} parent=5 // pred_check_branch
        %130 = sbr.rel (%p128) target = $region24
      $region23: #{feed_forward.1} parent=5 // pred_region
        // Predicated region
        $region25: #{feed_forward.1} parent=23 // pred_check
          %p131 = pneg %p32
        $region26: #{feed_forward.1} parent=23 // pred_check_branch
          %133 = sbr.rel (%p131) target = $region28
        $region27: #{feed_forward.1} parent=23 // pred_region
          %s134 = smul.u32 32, %s12
          %p135 = scmp.lt.s32.totalorder %s134, 63
          %s136 = scalar_select %p135, %s134, 63
          %s137 = smul.addr %s136, 4
          %s138 = scalar_lea.vmem %s0, %s137
          %s139 = smul.u32 32, %s12
        $region28: #{feed_forward.1} parent=23 // pred_fallthru
          _
      $region24: #{feed_forward.1} parent=5 // pred_fallthru
        _
      %p140 = scmp.le.s32.totalorder 1, %s12
      %p141 = scmp.lt.s32.totalorder %s12, 3
      %p142 = pnand %p140, %p141
      %p143 = pneg %p142
      // Predicated region
      $region29: #{feed_forward.1} parent=5 // pred_check
        _
      $region30: #{feed_forward.1} parent=5 // pred_check_branch
        %145 = sbr.rel (%p142) target = $region32
      $region31: #{feed_forward.1} parent=5 // pred_region
        %s146 = ssub.s32 %s12, 1
        %s147 = smul.u32 32, %s17
        %p148 = scmp.lt.s32.totalorder %s147, 63
        %s149 = scalar_select %p148, %s147, 63
        %s150 = smul.addr %s149, 4
        %s151 = scalar_lea.vmem %s0, %s150
        %p152 = pneg %p38
        %p153 = pneg %p35
        %p154 = pneg %p59
        %p155 = pneg %p56
        %p156 = pneg %p80
        %p157 = pneg %p77
        %p158 = pneg %p106
        %p159 = pneg %p103
        %s160 = sand.u32 %s93, 1
        %s161 = scalar_lea.sflag [#allocation3], %s160
        %s162 = sand.u32 %s93, 1
        %s163 = smul.addr %s162, 256
        %s164 = scalar_lea.vmem [#allocation2], %s163
        %s165 = smul.u32 32, %s17
        %p166 = scmp.lt.s32.totalorder %s165, 63
        %s167 = scalar_select %p166, %s165, 63
        %s168 = smul.addr %s167, 4
        %s169 = scalar_lea.vmem %s0, %s168
        %s170 = smul.u32 32, %s17
        %s171 = smul.u32 32, %s17
        %v173 = vld [vmem:[%s169] sm:$0xf]
        %v174 = vld [vmem:[%s169 + $0x4] sm:$0xf]
        %v175 = vld [vmem:[%s169 + $0x8] sm:$0xf]
        %v176 = vld [vmem:[%s169 + $0xc] sm:$0xf]
        %v177 = vld [vmem:[%s169 + $0x10] sm:$0xf]
        %v178 = vld [vmem:[%s169 + $0x14] sm:$0xf]
        %v179 = vld [vmem:[%s169 + $0x18] sm:$0xf]
        %v180 = vld [vmem:[%s169 + $0x1c] sm:$0xf]
        %v181 = vld [vmem:[%s169 + $0x20] sm:$0xf]
        %v182 = vld [vmem:[%s169 + $0x24] sm:$0xf]
        %v183 = vld [vmem:[%s169 + $0x28] sm:$0xf]
        %v184 = vld [vmem:[%s169 + $0x2c] sm:$0xf]
        %v185 = vld [vmem:[%s169 + $0x30] sm:$0xf]
        %v186 = vld [vmem:[%s169 + $0x34] sm:$0xf]
        %v187 = vld [vmem:[%s169 + $0x38] sm:$0xf]
        %v188 = vld [vmem:[%s169 + $0x3c] sm:$0xf]
        %v189 = vld [vmem:[%s169 + $0x40] sm:$0xf]
        %v190 = vld [vmem:[%s169 + $0x44] sm:$0xf]
        %v191 = vld [vmem:[%s169 + $0x48] sm:$0xf]
        %v192 = vld [vmem:[%s169 + $0x4c] sm:$0xf]
        %v193 = vld [vmem:[%s169 + $0x50] sm:$0xf]
        %v194 = vld [vmem:[%s169 + $0x54] sm:$0xf]
        %v195 = vld [vmem:[%s169 + $0x58] sm:$0xf]
        %v196 = vld [vmem:[%s169 + $0x5c] sm:$0xf]
        %v197 = vld [vmem:[%s169 + $0x60] sm:$0xf]
        %v198 = vld [vmem:[%s169 + $0x64] sm:$0xf]
        %v199 = vld [vmem:[%s169 + $0x68] sm:$0xf]
        %v200 = vld [vmem:[%s169 + $0x6c] sm:$0xf]
        %v201 = vld [vmem:[%s169 + $0x70] sm:$0xf]
        %v202 = vld [vmem:[%s169 + $0x74] sm:$0xf]
        %v203 = vld [vmem:[%s169 + $0x78] sm:$0xf]
        %v204 = vld [vmem:[%s169 + $0x7c] sm:$0xf]
        %v205 = vld [vmem:[%s1] sm:$0xff]
        %v206 = vld [vmem:[%s1 + $0x8] sm:$0xff]
        %v207 = vld [vmem:[%s1 + $0x10] sm:$0xff]
        %v208 = vld [vmem:[%s1 + $0x18] sm:$0xff]
        %v209 = vld [vmem:[%s1 + $0x20] sm:$0xff]
        %v210 = vld [vmem:[%s1 + $0x28] sm:$0xff]
        %v211 = vld [vmem:[%s1 + $0x30] sm:$0xff]
        %v212 = vld [vmem:[%s1 + $0x38] sm:$0xff]
        %v213 = vld [vmem:[%s1 + $0x40] sm:$0xff]
        %v214 = vld [vmem:[%s1 + $0x48] sm:$0xff]
        %v215 = vld [vmem:[%s1 + $0x50] sm:$0xff]
        %v216 = vld [vmem:[%s1 + $0x58] sm:$0xff]
        %v217 = vld [vmem:[%s1 + $0x60] sm:$0xff]
        %v218 = vld [vmem:[%s1 + $0x68] sm:$0xff]
        %v219 = vld [vmem:[%s1 + $0x70] sm:$0xff]
        %v220 = vld [vmem:[%s1 + $0x78] sm:$0xff]
        %v221 = vld [vmem:[%s1 + $0x80] sm:$0xff]
        %v222 = vld [vmem:[%s1 + $0x88] sm:$0xff]
        %v223 = vld [vmem:[%s1 + $0x90] sm:$0xff]
        %v224 = vld [vmem:[%s1 + $0x98] sm:$0xff]
        %v225 = vld [vmem:[%s1 + $0xa0] sm:$0xff]
        %v226 = vld [vmem:[%s1 + $0xa8] sm:$0xff]
        %v227 = vld [vmem:[%s1 + $0xb0] sm:$0xff]
        %v228 = vld [vmem:[%s1 + $0xb8] sm:$0xff]
        %v229 = vld [vmem:[%s1 + $0xc0] sm:$0xff]
        %v230 = vld [vmem:[%s1 + $0xc8] sm:$0xff]
        %v231 = vld [vmem:[%s1 + $0xd0] sm:$0xff]
        %v232 = vld [vmem:[%s1 + $0xd8] sm:$0xff]
        %v233 = vld [vmem:[%s1 + $0xe0] sm:$0xff]
        %v234 = vld [vmem:[%s1 + $0xe8] sm:$0xff]
        %v235 = vld [vmem:[%s1 + $0xf0] sm:$0xff]
        %v236 = vld [vmem:[%s1 + $0xf8] sm:$0xff]
        %v237 = vld [vmem:[%s1 + $0x100] sm:$0xff]
        %v238 = vld [vmem:[%s1 + $0x108] sm:$0xff]
        %v239 = vld [vmem:[%s1 + $0x110] sm:$0xff]
        %v240 = vld [vmem:[%s1 + $0x118] sm:$0xff]
        %v241 = vld [vmem:[%s1 + $0x120] sm:$0xff]
        %v242 = vld [vmem:[%s1 + $0x128] sm:$0xff]
        %v243 = vld [vmem:[%s1 + $0x130] sm:$0xff]
        %v244 = vld [vmem:[%s1 + $0x138] sm:$0xff]
        %v245 = vld [vmem:[%s1 + $0x140] sm:$0xff]
        %v246 = vld [vmem:[%s1 + $0x148] sm:$0xff]
        %v247 = vld [vmem:[%s1 + $0x150] sm:$0xff]
        %v248 = vld [vmem:[%s1 + $0x158] sm:$0xff]
        %v249 = vld [vmem:[%s1 + $0x160] sm:$0xff]
        %v250 = vld [vmem:[%s1 + $0x168] sm:$0xff]
        %v251 = vld [vmem:[%s1 + $0x170] sm:$0xff]
        %v252 = vld [vmem:[%s1 + $0x178] sm:$0xff]
        %v253 = vld [vmem:[%s1 + $0x180] sm:$0xff]
        %v254 = vld [vmem:[%s1 + $0x188] sm:$0xff]
        %v255 = vld [vmem:[%s1 + $0x190] sm:$0xff]
        %v256 = vld [vmem:[%s1 + $0x198] sm:$0xff]
        %v257 = vld [vmem:[%s1 + $0x1a0] sm:$0xff]
        %v258 = vld [vmem:[%s1 + $0x1a8] sm:$0xff]
        %v259 = vld [vmem:[%s1 + $0x1b0] sm:$0xff]
        %v260 = vld [vmem:[%s1 + $0x1b8] sm:$0xff]
        %v261 = vld [vmem:[%s1 + $0x1c0] sm:$0xff]
        %v262 = vld [vmem:[%s1 + $0x1c8] sm:$0xff]
        %v263 = vld [vmem:[%s1 + $0x1d0] sm:$0xff]
        %v264 = vld [vmem:[%s1 + $0x1d8] sm:$0xff]
        %v265 = vld [vmem:[%s1 + $0x1e0] sm:$0xff]
        %v266 = vld [vmem:[%s1 + $0x1e8] sm:$0xff]
        %v267 = vld [vmem:[%s1 + $0x1f0] sm:$0xff]
        %v268 = vld [vmem:[%s1 + $0x1f8] sm:$0xff]
        %v301 = vunpack.c.l.b16 %v173
        %v302 = vunpack.c.l.b16 %v174
        %v303 = vunpack.c.l.b16 %v175
        %v304 = vunpack.c.l.b16 %v176
        %v305 = vunpack.c.l.b16 %v177
        %v306 = vunpack.c.l.b16 %v178
        %v307 = vunpack.c.l.b16 %v179
        %v308 = vunpack.c.l.b16 %v180
        %v309 = vunpack.c.l.b16 %v181
        %v310 = vunpack.c.l.b16 %v182
        %v311 = vunpack.c.l.b16 %v183
        %v312 = vunpack.c.l.b16 %v184
        %v313 = vunpack.c.l.b16 %v185
        %v314 = vunpack.c.l.b16 %v186
        %v315 = vunpack.c.l.b16 %v187
        %v316 = vunpack.c.l.b16 %v188
        %v317 = vunpack.c.l.b16 %v189
        %v318 = vunpack.c.l.b16 %v190
        %v319 = vunpack.c.l.b16 %v191
        %v320 = vunpack.c.l.b16 %v192
        %v321 = vunpack.c.l.b16 %v193
        %v322 = vunpack.c.l.b16 %v194
        %v323 = vunpack.c.l.b16 %v195
        %v324 = vunpack.c.l.b16 %v196
        %v325 = vunpack.c.l.b16 %v197
        %v326 = vunpack.c.l.b16 %v198
        %v327 = vunpack.c.l.b16 %v199
        %v328 = vunpack.c.l.b16 %v200
        %v329 = vunpack.c.l.b16 %v201
        %v330 = vunpack.c.l.b16 %v202
        %v331 = vunpack.c.l.b16 %v203
        %v332 = vunpack.c.l.b16 %v204
        %v333 = vpack.c.b16 %v302, %v301
        %v334 = vpack.c.b16 %v304, %v303
        %v335 = vpack.c.b16 %v306, %v305
        %v336 = vpack.c.b16 %v308, %v307
        %v337 = vpack.c.b16 %v310, %v309
        %v338 = vpack.c.b16 %v312, %v311
        %v339 = vpack.c.b16 %v314, %v313
        %v340 = vpack.c.b16 %v316, %v315
        %v341 = vpack.c.b16 %v318, %v317
        %v342 = vpack.c.b16 %v320, %v319
        %v343 = vpack.c.b16 %v322, %v321
        %v344 = vpack.c.b16 %v324, %v323
        %v345 = vpack.c.b16 %v326, %v325
        %v346 = vpack.c.b16 %v328, %v327
        %v347 = vpack.c.b16 %v330, %v329
        %v348 = vpack.c.b16 %v332, %v331
        %v429 = vunpack.c.l.b16 %v205
        %v430 = vunpack.c.h.b16 %v205
        %v431 = vunpack.c.l.b16 %v206
        %v432 = vunpack.c.h.b16 %v206
        %v433 = vunpack.c.l.b16 %v207
        %v434 = vunpack.c.h.b16 %v207
        %v435 = vunpack.c.l.b16 %v208
        %v436 = vunpack.c.h.b16 %v208
        %v437 = vunpack.c.l.b16 %v209
        %v438 = vunpack.c.h.b16 %v209
        %v439 = vunpack.c.l.b16 %v210
        %v440 = vunpack.c.h.b16 %v210
        %v441 = vunpack.c.l.b16 %v211
        %v442 = vunpack.c.h.b16 %v211
        %v443 = vunpack.c.l.b16 %v212
        %v444 = vunpack.c.h.b16 %v212
        %v445 = vunpack.c.l.b16 %v213
        %v446 = vunpack.c.h.b16 %v213
        %v447 = vunpack.c.l.b16 %v214
        %v448 = vunpack.c.h.b16 %v214
        %v449 = vunpack.c.l.b16 %v215
        %v450 = vunpack.c.h.b16 %v215
        %v451 = vunpack.c.l.b16 %v216
        %v452 = vunpack.c.h.b16 %v216
        %v453 = vunpack.c.l.b16 %v217
        %v454 = vunpack.c.h.b16 %v217
        %v455 = vunpack.c.l.b16 %v218
        %v456 = vunpack.c.h.b16 %v218
        %v457 = vunpack.c.l.b16 %v219
        %v458 = vunpack.c.h.b16 %v219
        %v459 = vunpack.c.l.b16 %v220
        %v460 = vunpack.c.h.b16 %v220
        %v461 = vunpack.c.l.b16 %v221
        %v462 = vunpack.c.h.b16 %v221
        %v463 = vunpack.c.l.b16 %v222
        %v464 = vunpack.c.h.b16 %v222
        %v465 = vunpack.c.l.b16 %v223
        %v466 = vunpack.c.h.b16 %v223
        %v467 = vunpack.c.l.b16 %v224
        %v468 = vunpack.c.h.b16 %v224
        %v469 = vunpack.c.l.b16 %v225
        %v470 = vunpack.c.h.b16 %v225
        %v471 = vunpack.c.l.b16 %v226
        %v472 = vunpack.c.h.b16 %v226
        %v473 = vunpack.c.l.b16 %v227
        %v474 = vunpack.c.h.b16 %v227
        %v475 = vunpack.c.l.b16 %v228
        %v476 = vunpack.c.h.b16 %v228
        %v477 = vunpack.c.l.b16 %v229
        %v478 = vunpack.c.h.b16 %v229
        %v479 = vunpack.c.l.b16 %v230
        %v480 = vunpack.c.h.b16 %v230
        %v481 = vunpack.c.l.b16 %v231
        %v482 = vunpack.c.h.b16 %v231
        %v483 = vunpack.c.l.b16 %v232
        %v484 = vunpack.c.h.b16 %v232
        %v485 = vunpack.c.l.b16 %v233
        %v486 = vunpack.c.h.b16 %v233
        %v487 = vunpack.c.l.b16 %v234
        %v488 = vunpack.c.h.b16 %v234
        %v489 = vunpack.c.l.b16 %v235
        %v490 = vunpack.c.h.b16 %v235
        %v491 = vunpack.c.l.b16 %v236
        %v492 = vunpack.c.h.b16 %v236
        %v493 = vunpack.c.l.b16 %v237
        %v494 = vunpack.c.h.b16 %v237
        %v495 = vunpack.c.l.b16 %v238
        %v496 = vunpack.c.h.b16 %v238
        %v497 = vunpack.c.l.b16 %v239
        %v498 = vunpack.c.h.b16 %v239
        %v499 = vunpack.c.l.b16 %v240
        %v500 = vunpack.c.h.b16 %v240
        %v501 = vunpack.c.l.b16 %v241
        %v502 = vunpack.c.h.b16 %v241
        %v503 = vunpack.c.l.b16 %v242
        %v504 = vunpack.c.h.b16 %v242
        %v505 = vunpack.c.l.b16 %v243
        %v506 = vunpack.c.h.b16 %v243
        %v507 = vunpack.c.l.b16 %v244
        %v508 = vunpack.c.h.b16 %v244
        %v509 = vunpack.c.l.b16 %v245
        %v510 = vunpack.c.h.b16 %v245
        %v511 = vunpack.c.l.b16 %v246
        %v512 = vunpack.c.h.b16 %v246
        %v513 = vunpack.c.l.b16 %v247
        %v514 = vunpack.c.h.b16 %v247
        %v515 = vunpack.c.l.b16 %v248
        %v516 = vunpack.c.h.b16 %v248
        %v517 = vunpack.c.l.b16 %v249
        %v518 = vunpack.c.h.b16 %v249
        %v519 = vunpack.c.l.b16 %v250
        %v520 = vunpack.c.h.b16 %v250
        %v521 = vunpack.c.l.b16 %v251
        %v522 = vunpack.c.h.b16 %v251
        %v523 = vunpack.c.l.b16 %v252
        %v524 = vunpack.c.h.b16 %v252
        %v525 = vunpack.c.l.b16 %v253
        %v526 = vunpack.c.h.b16 %v253
        %v527 = vunpack.c.l.b16 %v254
        %v528 = vunpack.c.h.b16 %v254
        %v529 = vunpack.c.l.b16 %v255
        %v530 = vunpack.c.h.b16 %v255
        %v531 = vunpack.c.l.b16 %v256
        %v532 = vunpack.c.h.b16 %v256
        %v533 = vunpack.c.l.b16 %v257
        %v534 = vunpack.c.h.b16 %v257
        %v535 = vunpack.c.l.b16 %v258
        %v536 = vunpack.c.h.b16 %v258
        %v537 = vunpack.c.l.b16 %v259
        %v538 = vunpack.c.h.b16 %v259
        %v539 = vunpack.c.l.b16 %v260
        %v540 = vunpack.c.h.b16 %v260
        %v541 = vunpack.c.l.b16 %v261
        %v542 = vunpack.c.h.b16 %v261
        %v543 = vunpack.c.l.b16 %v262
        %v544 = vunpack.c.h.b16 %v262
        %v545 = vunpack.c.l.b16 %v263
        %v546 = vunpack.c.h.b16 %v263
        %v547 = vunpack.c.l.b16 %v264
        %v548 = vunpack.c.h.b16 %v264
        %v549 = vunpack.c.l.b16 %v265
        %v550 = vunpack.c.h.b16 %v265
        %v551 = vunpack.c.l.b16 %v266
        %v552 = vunpack.c.h.b16 %v266
        %v553 = vunpack.c.l.b16 %v267
        %v554 = vunpack.c.h.b16 %v267
        %v555 = vunpack.c.l.b16 %v268
        %v556 = vunpack.c.h.b16 %v268
        %v557 = vpack.c.b16 %v437, %v429
        %v558 = vpack.c.b16 %v438, %v430
        %v559 = vpack.c.b16 %v439, %v431
        %v560 = vpack.c.b16 %v440, %v432
        %v561 = vpack.c.b16 %v441, %v433
        %v562 = vpack.c.b16 %v442, %v434
        %v563 = vpack.c.b16 %v443, %v435
        %v564 = vpack.c.b16 %v444, %v436
        %v565 = vpack.c.b16 %v453, %v445
        %v566 = vpack.c.b16 %v454, %v446
        %v567 = vpack.c.b16 %v455, %v447
        %v568 = vpack.c.b16 %v456, %v448
        %v569 = vpack.c.b16 %v457, %v449
        %v570 = vpack.c.b16 %v458, %v450
        %v571 = vpack.c.b16 %v459, %v451
        %v572 = vpack.c.b16 %v460, %v452
        %v573 = vpack.c.b16 %v469, %v461
        %v574 = vpack.c.b16 %v470, %v462
        %v575 = vpack.c.b16 %v471, %v463
        %v576 = vpack.c.b16 %v472, %v464
        %v577 = vpack.c.b16 %v473, %v465
        %v578 = vpack.c.b16 %v474, %v466
        %v579 = vpack.c.b16 %v475, %v467
        %v580 = vpack.c.b16 %v476, %v468
        %v581 = vpack.c.b16 %v485, %v477
        %v582 = vpack.c.b16 %v486, %v478
        %v583 = vpack.c.b16 %v487, %v479
        %v584 = vpack.c.b16 %v488, %v480
        %v585 = vpack.c.b16 %v489, %v481
        %v586 = vpack.c.b16 %v490, %v482
        %v587 = vpack.c.b16 %v491, %v483
        %v588 = vpack.c.b16 %v492, %v484
        %v589 = vpack.c.b16 %v501, %v493
        %v590 = vpack.c.b16 %v502, %v494
        %v591 = vpack.c.b16 %v503, %v495
        %v592 = vpack.c.b16 %v504, %v496
        %v593 = vpack.c.b16 %v505, %v497
        %v594 = vpack.c.b16 %v506, %v498
        %v595 = vpack.c.b16 %v507, %v499
        %v596 = vpack.c.b16 %v508, %v500
        %v597 = vpack.c.b16 %v517, %v509
        %v598 = vpack.c.b16 %v518, %v510
        %v599 = vpack.c.b16 %v519, %v511
        %v600 = vpack.c.b16 %v520, %v512
        %v601 = vpack.c.b16 %v521, %v513
        %v602 = vpack.c.b16 %v522, %v514
        %v603 = vpack.c.b16 %v523, %v515
        %v604 = vpack.c.b16 %v524, %v516
        %v605 = vpack.c.b16 %v533, %v525
        %v606 = vpack.c.b16 %v534, %v526
        %v607 = vpack.c.b16 %v535, %v527
        %v608 = vpack.c.b16 %v536, %v528
        %v609 = vpack.c.b16 %v537, %v529
        %v610 = vpack.c.b16 %v538, %v530
        %v611 = vpack.c.b16 %v539, %v531
        %v612 = vpack.c.b16 %v540, %v532
        %v613 = vpack.c.b16 %v549, %v541
        %v614 = vpack.c.b16 %v550, %v542
        %v615 = vpack.c.b16 %v551, %v543
        %v616 = vpack.c.b16 %v552, %v544
        %v617 = vpack.c.b16 %v553, %v545
        %v618 = vpack.c.b16 %v554, %v546
        %v619 = vpack.c.b16 %v555, %v547
        %v620 = vpack.c.b16 %v556, %v548
        %685 = vmatprep.subr.bf16.mxu0 %v614
        %686 = vmatpush1.bf16.msra.mxu0 %v613
        %687 = vmatprep.subr.bf16.mxu0 %v606
        %688 = vmatpush1.bf16.msra.mxu0 %v605
        %689 = vmatprep.subr.bf16.mxu0 %v598
        %690 = vmatpush1.bf16.msra.mxu0 %v597
        %691 = vmatprep.subr.bf16.mxu0 %v590
        %692 = vmatpush1.bf16.msra.mxu0 %v589
        %693 = vmatprep.subr.bf16.mxu0 %v582
        %694 = vmatpush1.bf16.msra.mxu0 %v581
        %695 = vmatprep.subr.bf16.mxu0 %v574
        %696 = vmatpush1.bf16.msra.mxu0 %v573
        %697 = vmatprep.subr.bf16.mxu0 %v566
        %698 = vmatpush1.bf16.msra.mxu0 %v565
        %699 = vmatprep.subr.bf16.mxu0 %v558
        %700 = vmatpush1.bf16.msra.mxu0 %v557
        %701 = vmatprep.subr.bf16.mxu0 0
        %702 = vmatpush2.bf16.msra.mxu0 0
        %703 = vmatprep.subr.bf16.mxu0 0
        %704 = vmatpush2.bf16.msra.mxu0 0
        %705 = vmatprep.subr.bf16.mxu0 0
        %706 = vmatpush2.bf16.msra.mxu0 0
        %707 = vmatprep.subr.bf16.mxu0 0
        %708 = vmatpush2.bf16.msra.mxu0 0
        %709 = vmatprep.subr.bf16.mxu0 0
        %710 = vmatpush2.bf16.msra.mxu0 0
        %711 = vmatprep.subr.bf16.mxu0 0
        %712 = vmatpush2.bf16.msra.mxu0 0
        %713 = vmatprep.subr.bf16.mxu0 0
        %714 = vmatpush2.bf16.msra.mxu0 0
        %715 = vmatprep.subr.bf16.mxu0 0
        %716 = vmatpush2.bf16.msra.mxu0 0
        %717 = vmatprep.mubr.bf16.mxu0 0
        %718 = vmatmul.mubr.bf16.gmra.mxu0 %v333
        %v719 = vpop.f32.mrf.mxu0
        %v720 = vadd.f32 0.0, %v719
        %v721 = vpop.f32.mrf.mxu0
        %v722 = vadd.f32 0.0, %v721
        %v723 = vpop.f32.mrf.mxu0
        %v724 = vadd.f32 0.0, %v723
        %v725 = vpop.f32.mrf.mxu0
        %v726 = vadd.f32 0.0, %v725
        %727 = vmatprep.mubr.bf16.mxu0 0
        %728 = vmatmul.mubr.bf16.gmra.mxu0 %v334
        %v729 = vpop.f32.mrf.mxu0
        %v730 = vadd.f32 0.0, %v729
        %v731 = vpop.f32.mrf.mxu0
        %v732 = vadd.f32 0.0, %v731
        %v733 = vpop.f32.mrf.mxu0
        %v734 = vadd.f32 0.0, %v733
        %v735 = vpop.f32.mrf.mxu0
        %v736 = vadd.f32 0.0, %v735
        %737 = vmatprep.mubr.bf16.mxu0 0
        %738 = vmatmul.mubr.bf16.gmra.mxu0 %v335
        %v739 = vpop.f32.mrf.mxu0
        %v740 = vadd.f32 0.0, %v739
        %v741 = vpop.f32.mrf.mxu0
        %v742 = vadd.f32 0.0, %v741
        %v743 = vpop.f32.mrf.mxu0
        %v744 = vadd.f32 0.0, %v743
        %v745 = vpop.f32.mrf.mxu0
        %v746 = vadd.f32 0.0, %v745
        %747 = vmatprep.mubr.bf16.mxu0 0
        %748 = vmatmul.mubr.bf16.gmra.mxu0 %v336
        %v749 = vpop.f32.mrf.mxu0
        %v750 = vadd.f32 0.0, %v749
        %v751 = vpop.f32.mrf.mxu0
        %v752 = vadd.f32 0.0, %v751
        %v753 = vpop.f32.mrf.mxu0
        %v754 = vadd.f32 0.0, %v753
        %v755 = vpop.f32.mrf.mxu0
        %v756 = vadd.f32 0.0, %v755
        %757 = vmatprep.mubr.bf16.mxu0 0
        %758 = vmatmul.mubr.bf16.gmra.mxu0 %v337
        %v759 = vpop.f32.mrf.mxu0
        %v760 = vadd.f32 0.0, %v759
        %v761 = vpop.f32.mrf.mxu0
        %v762 = vadd.f32 0.0, %v761
        %v763 = vpop.f32.mrf.mxu0
        %v764 = vadd.f32 0.0, %v763
        %v765 = vpop.f32.mrf.mxu0
        %v766 = vadd.f32 0.0, %v765
        %767 = vmatprep.mubr.bf16.mxu0 0
        %768 = vmatmul.mubr.bf16.gmra.mxu0 %v338
        %v769 = vpop.f32.mrf.mxu0
        %v770 = vadd.f32 0.0, %v769
        %v771 = vpop.f32.mrf.mxu0
        %v772 = vadd.f32 0.0, %v771
        %v773 = vpop.f32.mrf.mxu0
        %v774 = vadd.f32 0.0, %v773
        %v775 = vpop.f32.mrf.mxu0
        %v776 = vadd.f32 0.0, %v775
        %777 = vmatprep.mubr.bf16.mxu0 0
        %778 = vmatmul.mubr.bf16.gmra.mxu0 %v339
        %v779 = vpop.f32.mrf.mxu0
        %v780 = vadd.f32 0.0, %v779
        %v781 = vpop.f32.mrf.mxu0
        %v782 = vadd.f32 0.0, %v781
        %v783 = vpop.f32.mrf.mxu0
        %v784 = vadd.f32 0.0, %v783
        %v785 = vpop.f32.mrf.mxu0
        %v786 = vadd.f32 0.0, %v785
        %787 = vmatprep.mubr.bf16.mxu0 0
        %788 = vmatmul.mubr.bf16.gmra.mxu0 %v340
        %v789 = vpop.f32.mrf.mxu0
        %v790 = vadd.f32 0.0, %v789
        %v791 = vpop.f32.mrf.mxu0
        %v792 = vadd.f32 0.0, %v791
        %v793 = vpop.f32.mrf.mxu0
        %v794 = vadd.f32 0.0, %v793
        %v795 = vpop.f32.mrf.mxu0
        %v796 = vadd.f32 0.0, %v795
        %797 = vmatprep.mubr.bf16.mxu0 0
        %798 = vmatmul.mubr.bf16.gmra.mxu0 %v341
        %v799 = vpop.f32.mrf.mxu0
        %v800 = vadd.f32 0.0, %v799
        %v801 = vpop.f32.mrf.mxu0
        %v802 = vadd.f32 0.0, %v801
        %v803 = vpop.f32.mrf.mxu0
        %v804 = vadd.f32 0.0, %v803
        %v805 = vpop.f32.mrf.mxu0
        %v806 = vadd.f32 0.0, %v805
        %807 = vmatprep.mubr.bf16.mxu0 0
        %808 = vmatmul.mubr.bf16.gmra.mxu0 %v342
        %v809 = vpop.f32.mrf.mxu0
        %v810 = vadd.f32 0.0, %v809
        %v811 = vpop.f32.mrf.mxu0
        %v812 = vadd.f32 0.0, %v811
        %v813 = vpop.f32.mrf.mxu0
        %v814 = vadd.f32 0.0, %v813
        %v815 = vpop.f32.mrf.mxu0
        %v816 = vadd.f32 0.0, %v815
        %817 = vmatprep.mubr.bf16.mxu0 0
        %818 = vmatmul.mubr.bf16.gmra.mxu0 %v343
        %v819 = vpop.f32.mrf.mxu0
        %v820 = vadd.f32 0.0, %v819
        %v821 = vpop.f32.mrf.mxu0
        %v822 = vadd.f32 0.0, %v821
        %v823 = vpop.f32.mrf.mxu0
        %v824 = vadd.f32 0.0, %v823
        %v825 = vpop.f32.mrf.mxu0
        %v826 = vadd.f32 0.0, %v825
        %827 = vmatprep.mubr.bf16.mxu0 0
        %828 = vmatmul.mubr.bf16.gmra.mxu0 %v344
        %v829 = vpop.f32.mrf.mxu0
        %v830 = vadd.f32 0.0, %v829
        %v831 = vpop.f32.mrf.mxu0
        %v832 = vadd.f32 0.0, %v831
        %v833 = vpop.f32.mrf.mxu0
        %v834 = vadd.f32 0.0, %v833
        %v835 = vpop.f32.mrf.mxu0
        %v836 = vadd.f32 0.0, %v835
        %837 = vmatprep.mubr.bf16.mxu0 0
        %838 = vmatmul.mubr.bf16.gmra.mxu0 %v345
        %v839 = vpop.f32.mrf.mxu0
        %v840 = vadd.f32 0.0, %v839
        %v841 = vpop.f32.mrf.mxu0
        %v842 = vadd.f32 0.0, %v841
        %v843 = vpop.f32.mrf.mxu0
        %v844 = vadd.f32 0.0, %v843
        %v845 = vpop.f32.mrf.mxu0
        %v846 = vadd.f32 0.0, %v845
        %847 = vmatprep.mubr.bf16.mxu0 0
        %848 = vmatmul.mubr.bf16.gmra.mxu0 %v346
        %v849 = vpop.f32.mrf.mxu0
        %v850 = vadd.f32 0.0, %v849
        %v851 = vpop.f32.mrf.mxu0
        %v852 = vadd.f32 0.0, %v851
        %v853 = vpop.f32.mrf.mxu0
        %v854 = vadd.f32 0.0, %v853
        %v855 = vpop.f32.mrf.mxu0
        %v856 = vadd.f32 0.0, %v855
        %857 = vmatprep.mubr.bf16.mxu0 0
        %858 = vmatmul.mubr.bf16.gmra.mxu0 %v347
        %v859 = vpop.f32.mrf.mxu0
        %v860 = vadd.f32 0.0, %v859
        %v861 = vpop.f32.mrf.mxu0
        %v862 = vadd.f32 0.0, %v861
        %v863 = vpop.f32.mrf.mxu0
        %v864 = vadd.f32 0.0, %v863
        %v865 = vpop.f32.mrf.mxu0
        %v866 = vadd.f32 0.0, %v865
        %867 = vmatprep.mubr.bf16.mxu0 0
        %868 = vmatmul.mubr.bf16.gmra.mxu0 %v348
        %v869 = vpop.f32.mrf.mxu0
        %v870 = vadd.f32 0.0, %v869
        %v871 = vpop.f32.mrf.mxu0
        %v872 = vadd.f32 0.0, %v871
        %v873 = vpop.f32.mrf.mxu0
        %v874 = vadd.f32 0.0, %v873
        %v875 = vpop.f32.mrf.mxu0
        %v876 = vadd.f32 0.0, %v875
        %877 = vdwg.mxu0
        %878 = vmatprep.subr.bf16.mxu0 %v616
        %879 = vmatpush1.bf16.msra.mxu0 %v615
        %880 = vmatprep.subr.bf16.mxu0 %v608
        %881 = vmatpush1.bf16.msra.mxu0 %v607
        %882 = vmatprep.subr.bf16.mxu0 %v600
        %883 = vmatpush1.bf16.msra.mxu0 %v599
        %884 = vmatprep.subr.bf16.mxu0 %v592
        %885 = vmatpush1.bf16.msra.mxu0 %v591
        %886 = vmatprep.subr.bf16.mxu0 %v584
        %887 = vmatpush1.bf16.msra.mxu0 %v583
        %888 = vmatprep.subr.bf16.mxu0 %v576
        %889 = vmatpush1.bf16.msra.mxu0 %v575
        %890 = vmatprep.subr.bf16.mxu0 %v568
        %891 = vmatpush1.bf16.msra.mxu0 %v567
        %892 = vmatprep.subr.bf16.mxu0 %v560
        %893 = vmatpush1.bf16.msra.mxu0 %v559
        %894 = vmatprep.subr.bf16.mxu0 0
        %895 = vmatpush2.bf16.msra.mxu0 0
        %896 = vmatprep.subr.bf16.mxu0 0
        %897 = vmatpush2.bf16.msra.mxu0 0
        %898 = vmatprep.subr.bf16.mxu0 0
        %899 = vmatpush2.bf16.msra.mxu0 0
        %900 = vmatprep.subr.bf16.mxu0 0
        %901 = vmatpush2.bf16.msra.mxu0 0
        %902 = vmatprep.subr.bf16.mxu0 0
        %903 = vmatpush2.bf16.msra.mxu0 0
        %904 = vmatprep.subr.bf16.mxu0 0
        %905 = vmatpush2.bf16.msra.mxu0 0
        %906 = vmatprep.subr.bf16.mxu0 0
        %907 = vmatpush2.bf16.msra.mxu0 0
        %908 = vmatprep.subr.bf16.mxu0 0
        %909 = vmatpush2.bf16.msra.mxu0 0
        %910 = vmatprep.mubr.bf16.mxu0 0
        %911 = vmatmul.mubr.bf16.gmra.mxu0 %v333
        %v912 = vpop.f32.mrf.mxu0
        %v913 = vadd.f32 0.0, %v912
        %v914 = vpop.f32.mrf.mxu0
        %v915 = vadd.f32 0.0, %v914
        %v916 = vpop.f32.mrf.mxu0
        %v917 = vadd.f32 0.0, %v916
        %v918 = vpop.f32.mrf.mxu0
        %v919 = vadd.f32 0.0, %v918
        %920 = vmatprep.mubr.bf16.mxu0 0
        %921 = vmatmul.mubr.bf16.gmra.mxu0 %v334
        %v922 = vpop.f32.mrf.mxu0
        %v923 = vadd.f32 0.0, %v922
        %v924 = vpop.f32.mrf.mxu0
        %v925 = vadd.f32 0.0, %v924
        %v926 = vpop.f32.mrf.mxu0
        %v927 = vadd.f32 0.0, %v926
        %v928 = vpop.f32.mrf.mxu0
        %v929 = vadd.f32 0.0, %v928
        %930 = vmatprep.mubr.bf16.mxu0 0
        %931 = vmatmul.mubr.bf16.gmra.mxu0 %v335
        %v932 = vpop.f32.mrf.mxu0
        %v933 = vadd.f32 0.0, %v932
        %v934 = vpop.f32.mrf.mxu0
        %v935 = vadd.f32 0.0, %v934
        %v936 = vpop.f32.mrf.mxu0
        %v937 = vadd.f32 0.0, %v936
        %v938 = vpop.f32.mrf.mxu0
        %v939 = vadd.f32 0.0, %v938
        %940 = vmatprep.mubr.bf16.mxu0 0
        %941 = vmatmul.mubr.bf16.gmra.mxu0 %v336
        %v942 = vpop.f32.mrf.mxu0
        %v943 = vadd.f32 0.0, %v942
        %v944 = vpop.f32.mrf.mxu0
        %v945 = vadd.f32 0.0, %v944
        %v946 = vpop.f32.mrf.mxu0
        %v947 = vadd.f32 0.0, %v946
        %v948 = vpop.f32.mrf.mxu0
        %v949 = vadd.f32 0.0, %v948
        %950 = vmatprep.mubr.bf16.mxu0 0
        %951 = vmatmul.mubr.bf16.gmra.mxu0 %v337
        %v952 = vpop.f32.mrf.mxu0
        %v953 = vadd.f32 0.0, %v952
        %v954 = vpop.f32.mrf.mxu0
        %v955 = vadd.f32 0.0, %v954
        %v956 = vpop.f32.mrf.mxu0
        %v957 = vadd.f32 0.0, %v956
        %v958 = vpop.f32.mrf.mxu0
        %v959 = vadd.f32 0.0, %v958
        %960 = vmatprep.mubr.bf16.mxu0 0
        %961 = vmatmul.mubr.bf16.gmra.mxu0 %v338
        %v962 = vpop.f32.mrf.mxu0
        %v963 = vadd.f32 0.0, %v962
        %v964 = vpop.f32.mrf.mxu0
        %v965 = vadd.f32 0.0, %v964
        %v966 = vpop.f32.mrf.mxu0
        %v967 = vadd.f32 0.0, %v966
        %v968 = vpop.f32.mrf.mxu0
        %v969 = vadd.f32 0.0, %v968
        %970 = vmatprep.mubr.bf16.mxu0 0
        %971 = vmatmul.mubr.bf16.gmra.mxu0 %v339
        %v972 = vpop.f32.mrf.mxu0
        %v973 = vadd.f32 0.0, %v972
        %v974 = vpop.f32.mrf.mxu0
        %v975 = vadd.f32 0.0, %v974
        %v976 = vpop.f32.mrf.mxu0
        %v977 = vadd.f32 0.0, %v976
        %v978 = vpop.f32.mrf.mxu0
        %v979 = vadd.f32 0.0, %v978
        %980 = vmatprep.mubr.bf16.mxu0 0
        %981 = vmatmul.mubr.bf16.gmra.mxu0 %v340
        %v982 = vpop.f32.mrf.mxu0
        %v983 = vadd.f32 0.0, %v982
        %v984 = vpop.f32.mrf.mxu0
        %v985 = vadd.f32 0.0, %v984
        %v986 = vpop.f32.mrf.mxu0
        %v987 = vadd.f32 0.0, %v986
        %v988 = vpop.f32.mrf.mxu0
        %v989 = vadd.f32 0.0, %v988
        %990 = vmatprep.mubr.bf16.mxu0 0
        %991 = vmatmul.mubr.bf16.gmra.mxu0 %v341
        %v992 = vpop.f32.mrf.mxu0
        %v993 = vadd.f32 0.0, %v992
        %v994 = vpop.f32.mrf.mxu0
        %v995 = vadd.f32 0.0, %v994
        %v996 = vpop.f32.mrf.mxu0
        %v997 = vadd.f32 0.0, %v996
        %v998 = vpop.f32.mrf.mxu0
        %v999 = vadd.f32 0.0, %v998
        %1000 = vmatprep.mubr.bf16.mxu0 0
        %1001 = vmatmul.mubr.bf16.gmra.mxu0 %v342
        %v1002 = vpop.f32.mrf.mxu0
        %v1003 = vadd.f32 0.0, %v1002
        %v1004 = vpop.f32.mrf.mxu0
        %v1005 = vadd.f32 0.0, %v1004
        %v1006 = vpop.f32.mrf.mxu0
        %v1007 = vadd.f32 0.0, %v1006
        %v1008 = vpop.f32.mrf.mxu0
        %v1009 = vadd.f32 0.0, %v1008
        %1010 = vmatprep.mubr.bf16.mxu0 0
        %1011 = vmatmul.mubr.bf16.gmra.mxu0 %v343
        %v1012 = vpop.f32.mrf.mxu0
        %v1013 = vadd.f32 0.0, %v1012
        %v1014 = vpop.f32.mrf.mxu0
        %v1015 = vadd.f32 0.0, %v1014
        %v1016 = vpop.f32.mrf.mxu0
        %v1017 = vadd.f32 0.0, %v1016
        %v1018 = vpop.f32.mrf.mxu0
        %v1019 = vadd.f32 0.0, %v1018
        %1020 = vmatprep.mubr.bf16.mxu0 0
        %1021 = vmatmul.mubr.bf16.gmra.mxu0 %v344
        %v1022 = vpop.f32.mrf.mxu0
        %v1023 = vadd.f32 0.0, %v1022
        %v1024 = vpop.f32.mrf.mxu0
        %v1025 = vadd.f32 0.0, %v1024
        %v1026 = vpop.f32.mrf.mxu0
        %v1027 = vadd.f32 0.0, %v1026
        %v1028 = vpop.f32.mrf.mxu0
        %v1029 = vadd.f32 0.0, %v1028
        %1030 = vmatprep.mubr.bf16.mxu0 0
        %1031 = vmatmul.mubr.bf16.gmra.mxu0 %v345
        %v1032 = vpop.f32.mrf.mxu0
        %v1033 = vadd.f32 0.0, %v1032
        %v1034 = vpop.f32.mrf.mxu0
        %v1035 = vadd.f32 0.0, %v1034
        %v1036 = vpop.f32.mrf.mxu0
        %v1037 = vadd.f32 0.0, %v1036
        %v1038 = vpop.f32.mrf.mxu0
        %v1039 = vadd.f32 0.0, %v1038
        %1040 = vmatprep.mubr.bf16.mxu0 0
        %1041 = vmatmul.mubr.bf16.gmra.mxu0 %v346
        %v1042 = vpop.f32.mrf.mxu0
        %v1043 = vadd.f32 0.0, %v1042
        %v1044 = vpop.f32.mrf.mxu0
        %v1045 = vadd.f32 0.0, %v1044
        %v1046 = vpop.f32.mrf.mxu0
        %v1047 = vadd.f32 0.0, %v1046
        %v1048 = vpop.f32.mrf.mxu0
        %v1049 = vadd.f32 0.0, %v1048
        %1050 = vmatprep.mubr.bf16.mxu0 0
        %1051 = vmatmul.mubr.bf16.gmra.mxu0 %v347
        %v1052 = vpop.f32.mrf.mxu0
        %v1053 = vadd.f32 0.0, %v1052
        %v1054 = vpop.f32.mrf.mxu0
        %v1055 = vadd.f32 0.0, %v1054
        %v1056 = vpop.f32.mrf.mxu0
        %v1057 = vadd.f32 0.0, %v1056
        %v1058 = vpop.f32.mrf.mxu0
        %v1059 = vadd.f32 0.0, %v1058
        %1060 = vmatprep.mubr.bf16.mxu0 0
        %1061 = vmatmul.mubr.bf16.gmra.mxu0 %v348
        %v1062 = vpop.f32.mrf.mxu0
        %v1063 = vadd.f32 0.0, %v1062
        %v1064 = vpop.f32.mrf.mxu0
        %v1065 = vadd.f32 0.0, %v1064
        %v1066 = vpop.f32.mrf.mxu0
        %v1067 = vadd.f32 0.0, %v1066
        %v1068 = vpop.f32.mrf.mxu0
        %v1069 = vadd.f32 0.0, %v1068
        %1070 = vdwg.mxu0
        %1071 = vmatprep.subr.bf16.mxu0 %v618
        %1072 = vmatpush1.bf16.msra.mxu0 %v617
        %1073 = vmatprep.subr.bf16.mxu0 %v610
        %1074 = vmatpush1.bf16.msra.mxu0 %v609
        %1075 = vmatprep.subr.bf16.mxu0 %v602
        %1076 = vmatpush1.bf16.msra.mxu0 %v601
        %1077 = vmatprep.subr.bf16.mxu0 %v594
        %1078 = vmatpush1.bf16.msra.mxu0 %v593
        %1079 = vmatprep.subr.bf16.mxu0 %v586
        %1080 = vmatpush1.bf16.msra.mxu0 %v585
        %1081 = vmatprep.subr.bf16.mxu0 %v578
        %1082 = vmatpush1.bf16.msra.mxu0 %v577
        %1083 = vmatprep.subr.bf16.mxu0 %v570
        %1084 = vmatpush1.bf16.msra.mxu0 %v569
        %1085 = vmatprep.subr.bf16.mxu0 %v562
        %1086 = vmatpush1.bf16.msra.mxu0 %v561
        %1087 = vmatprep.subr.bf16.mxu0 0
        %1088 = vmatpush2.bf16.msra.mxu0 0
        %1089 = vmatprep.subr.bf16.mxu0 0
        %1090 = vmatpush2.bf16.msra.mxu0 0
        %1091 = vmatprep.subr.bf16.mxu0 0
        %1092 = vmatpush2.bf16.msra.mxu0 0
        %1093 = vmatprep.subr.bf16.mxu0 0
        %1094 = vmatpush2.bf16.msra.mxu0 0
        %1095 = vmatprep.subr.bf16.mxu0 0
        %1096 = vmatpush2.bf16.msra.mxu0 0
        %1097 = vmatprep.subr.bf16.mxu0 0
        %1098 = vmatpush2.bf16.msra.mxu0 0
        %1099 = vmatprep.subr.bf16.mxu0 0
        %1100 = vmatpush2.bf16.msra.mxu0 0
        %1101 = vmatprep.subr.bf16.mxu0 0
        %1102 = vmatpush2.bf16.msra.mxu0 0
        %1103 = vmatprep.mubr.bf16.mxu0 0
        %1104 = vmatmul.mubr.bf16.gmra.mxu0 %v333
        %v1105 = vpop.f32.mrf.mxu0
        %v1106 = vadd.f32 0.0, %v1105
        %v1107 = vpop.f32.mrf.mxu0
        %v1108 = vadd.f32 0.0, %v1107
        %v1109 = vpop.f32.mrf.mxu0
        %v1110 = vadd.f32 0.0, %v1109
        %v1111 = vpop.f32.mrf.mxu0
        %v1112 = vadd.f32 0.0, %v1111
        %1113 = vmatprep.mubr.bf16.mxu0 0
        %1114 = vmatmul.mubr.bf16.gmra.mxu0 %v334
        %v1115 = vpop.f32.mrf.mxu0
        %v1116 = vadd.f32 0.0, %v1115
        %v1117 = vpop.f32.mrf.mxu0
        %v1118 = vadd.f32 0.0, %v1117
        %v1119 = vpop.f32.mrf.mxu0
        %v1120 = vadd.f32 0.0, %v1119
        %v1121 = vpop.f32.mrf.mxu0
        %v1122 = vadd.f32 0.0, %v1121
        %1123 = vmatprep.mubr.bf16.mxu0 0
        %1124 = vmatmul.mubr.bf16.gmra.mxu0 %v335
        %v1125 = vpop.f32.mrf.mxu0
        %v1126 = vadd.f32 0.0, %v1125
        %v1127 = vpop.f32.mrf.mxu0
        %v1128 = vadd.f32 0.0, %v1127
        %v1129 = vpop.f32.mrf.mxu0
        %v1130 = vadd.f32 0.0, %v1129
        %v1131 = vpop.f32.mrf.mxu0
        %v1132 = vadd.f32 0.0, %v1131
        %1133 = vmatprep.mubr.bf16.mxu0 0
        %1134 = vmatmul.mubr.bf16.gmra.mxu0 %v336
        %v1135 = vpop.f32.mrf.mxu0
        %v1136 = vadd.f32 0.0, %v1135
        %v1137 = vpop.f32.mrf.mxu0
        %v1138 = vadd.f32 0.0, %v1137
        %v1139 = vpop.f32.mrf.mxu0
        %v1140 = vadd.f32 0.0, %v1139
        %v1141 = vpop.f32.mrf.mxu0
        %v1142 = vadd.f32 0.0, %v1141
        %1143 = vmatprep.mubr.bf16.mxu0 0
        %1144 = vmatmul.mubr.bf16.gmra.mxu0 %v337
        %v1145 = vpop.f32.mrf.mxu0
        %v1146 = vadd.f32 0.0, %v1145
        %v1147 = vpop.f32.mrf.mxu0
        %v1148 = vadd.f32 0.0, %v1147
        %v1149 = vpop.f32.mrf.mxu0
        %v1150 = vadd.f32 0.0, %v1149
        %v1151 = vpop.f32.mrf.mxu0
        %v1152 = vadd.f32 0.0, %v1151
        %1153 = vmatprep.mubr.bf16.mxu0 0
        %1154 = vmatmul.mubr.bf16.gmra.mxu0 %v338
        %v1155 = vpop.f32.mrf.mxu0
        %v1156 = vadd.f32 0.0, %v1155
        %v1157 = vpop.f32.mrf.mxu0
        %v1158 = vadd.f32 0.0, %v1157
        %v1159 = vpop.f32.mrf.mxu0
        %v1160 = vadd.f32 0.0, %v1159
        %v1161 = vpop.f32.mrf.mxu0
        %v1162 = vadd.f32 0.0, %v1161
        %1163 = vmatprep.mubr.bf16.mxu0 0
        %1164 = vmatmul.mubr.bf16.gmra.mxu0 %v339
        %v1165 = vpop.f32.mrf.mxu0
        %v1166 = vadd.f32 0.0, %v1165
        %v1167 = vpop.f32.mrf.mxu0
        %v1168 = vadd.f32 0.0, %v1167
        %v1169 = vpop.f32.mrf.mxu0
        %v1170 = vadd.f32 0.0, %v1169
        %v1171 = vpop.f32.mrf.mxu0
        %v1172 = vadd.f32 0.0, %v1171
        %1173 = vmatprep.mubr.bf16.mxu0 0
        %1174 = vmatmul.mubr.bf16.gmra.mxu0 %v340
        %v1175 = vpop.f32.mrf.mxu0
        %v1176 = vadd.f32 0.0, %v1175
        %v1177 = vpop.f32.mrf.mxu0
        %v1178 = vadd.f32 0.0, %v1177
        %v1179 = vpop.f32.mrf.mxu0
        %v1180 = vadd.f32 0.0, %v1179
        %v1181 = vpop.f32.mrf.mxu0
        %v1182 = vadd.f32 0.0, %v1181
        %1183 = vmatprep.mubr.bf16.mxu0 0
        %1184 = vmatmul.mubr.bf16.gmra.mxu0 %v341
        %v1185 = vpop.f32.mrf.mxu0
        %v1186 = vadd.f32 0.0, %v1185
        %v1187 = vpop.f32.mrf.mxu0
        %v1188 = vadd.f32 0.0, %v1187
        %v1189 = vpop.f32.mrf.mxu0
        %v1190 = vadd.f32 0.0, %v1189
        %v1191 = vpop.f32.mrf.mxu0
        %v1192 = vadd.f32 0.0, %v1191
        %1193 = vmatprep.mubr.bf16.mxu0 0
        %1194 = vmatmul.mubr.bf16.gmra.mxu0 %v342
        %v1195 = vpop.f32.mrf.mxu0
        %v1196 = vadd.f32 0.0, %v1195
        %v1197 = vpop.f32.mrf.mxu0
        %v1198 = vadd.f32 0.0, %v1197
        %v1199 = vpop.f32.mrf.mxu0
        %v1200 = vadd.f32 0.0, %v1199
        %v1201 = vpop.f32.mrf.mxu0
        %v1202 = vadd.f32 0.0, %v1201
        %1203 = vmatprep.mubr.bf16.mxu0 0
        %1204 = vmatmul.mubr.bf16.gmra.mxu0 %v343
        %v1205 = vpop.f32.mrf.mxu0
        %v1206 = vadd.f32 0.0, %v1205
        %v1207 = vpop.f32.mrf.mxu0
        %v1208 = vadd.f32 0.0, %v1207
        %v1209 = vpop.f32.mrf.mxu0
        %v1210 = vadd.f32 0.0, %v1209
        %v1211 = vpop.f32.mrf.mxu0
        %v1212 = vadd.f32 0.0, %v1211
        %1213 = vmatprep.mubr.bf16.mxu0 0
        %1214 = vmatmul.mubr.bf16.gmra.mxu0 %v344
        %v1215 = vpop.f32.mrf.mxu0
        %v1216 = vadd.f32 0.0, %v1215
        %v1217 = vpop.f32.mrf.mxu0
        %v1218 = vadd.f32 0.0, %v1217
        %v1219 = vpop.f32.mrf.mxu0
        %v1220 = vadd.f32 0.0, %v1219
        %v1221 = vpop.f32.mrf.mxu0
        %v1222 = vadd.f32 0.0, %v1221
        %1223 = vmatprep.mubr.bf16.mxu0 0
        %1224 = vmatmul.mubr.bf16.gmra.mxu0 %v345
        %v1225 = vpop.f32.mrf.mxu0
        %v1226 = vadd.f32 0.0, %v1225
        %v1227 = vpop.f32.mrf.mxu0
        %v1228 = vadd.f32 0.0, %v1227
        %v1229 = vpop.f32.mrf.mxu0
        %v1230 = vadd.f32 0.0, %v1229
        %v1231 = vpop.f32.mrf.mxu0
        %v1232 = vadd.f32 0.0, %v1231
        %1233 = vmatprep.mubr.bf16.mxu0 0
        %1234 = vmatmul.mubr.bf16.gmra.mxu0 %v346
        %v1235 = vpop.f32.mrf.mxu0
        %v1236 = vadd.f32 0.0, %v1235
        %v1237 = vpop.f32.mrf.mxu0
        %v1238 = vadd.f32 0.0, %v1237
        %v1239 = vpop.f32.mrf.mxu0
        %v1240 = vadd.f32 0.0, %v1239
        %v1241 = vpop.f32.mrf.mxu0
        %v1242 = vadd.f32 0.0, %v1241
        %1243 = vmatprep.mubr.bf16.mxu0 0
        %1244 = vmatmul.mubr.bf16.gmra.mxu0 %v347
        %v1245 = vpop.f32.mrf.mxu0
        %v1246 = vadd.f32 0.0, %v1245
        %v1247 = vpop.f32.mrf.mxu0
        %v1248 = vadd.f32 0.0, %v1247
        %v1249 = vpop.f32.mrf.mxu0
        %v1250 = vadd.f32 0.0, %v1249
        %v1251 = vpop.f32.mrf.mxu0
        %v1252 = vadd.f32 0.0, %v1251
        %1253 = vmatprep.mubr.bf16.mxu0 0
        %1254 = vmatmul.mubr.bf16.gmra.mxu0 %v348
        %v1255 = vpop.f32.mrf.mxu0
        %v1256 = vadd.f32 0.0, %v1255
        %v1257 = vpop.f32.mrf.mxu0
        %v1258 = vadd.f32 0.0, %v1257
        %v1259 = vpop.f32.mrf.mxu0
        %v1260 = vadd.f32 0.0, %v1259
        %v1261 = vpop.f32.mrf.mxu0
        %v1262 = vadd.f32 0.0, %v1261
        %1263 = vdwg.mxu0
        %1264 = vmatprep.subr.bf16.mxu0 %v620
        %1265 = vmatpush1.bf16.msra.mxu0 %v619
        %1266 = vmatprep.subr.bf16.mxu0 %v612
        %1267 = vmatpush1.bf16.msra.mxu0 %v611
        %1268 = vmatprep.subr.bf16.mxu0 %v604
        %1269 = vmatpush1.bf16.msra.mxu0 %v603
        %1270 = vmatprep.subr.bf16.mxu0 %v596
        %1271 = vmatpush1.bf16.msra.mxu0 %v595
        %1272 = vmatprep.subr.bf16.mxu0 %v588
        %1273 = vmatpush1.bf16.msra.mxu0 %v587
        %1274 = vmatprep.subr.bf16.mxu0 %v580
        %1275 = vmatpush1.bf16.msra.mxu0 %v579
        %1276 = vmatprep.subr.bf16.mxu0 %v572
        %1277 = vmatpush1.bf16.msra.mxu0 %v571
        %1278 = vmatprep.subr.bf16.mxu0 %v564
        %1279 = vmatpush1.bf16.msra.mxu0 %v563
        %1280 = vmatprep.subr.bf16.mxu0 0
        %1281 = vmatpush2.bf16.msra.mxu0 0
        %1282 = vmatprep.subr.bf16.mxu0 0
        %1283 = vmatpush2.bf16.msra.mxu0 0
        %1284 = vmatprep.subr.bf16.mxu0 0
        %1285 = vmatpush2.bf16.msra.mxu0 0
        %1286 = vmatprep.subr.bf16.mxu0 0
        %1287 = vmatpush2.bf16.msra.mxu0 0
        %1288 = vmatprep.subr.bf16.mxu0 0
        %1289 = vmatpush2.bf16.msra.mxu0 0
        %1290 = vmatprep.subr.bf16.mxu0 0
        %1291 = vmatpush2.bf16.msra.mxu0 0
        %1292 = vmatprep.subr.bf16.mxu0 0
        %1293 = vmatpush2.bf16.msra.mxu0 0
        %1294 = vmatprep.subr.bf16.mxu0 0
        %1295 = vmatpush2.bf16.msra.mxu0 0
        %1296 = vmatprep.mubr.bf16.mxu0 0
        %1297 = vmatmul.mubr.bf16.gmra.mxu0 %v333
        %v1298 = vpop.f32.mrf.mxu0
        %v1299 = vadd.f32 0.0, %v1298
        %v1300 = vpop.f32.mrf.mxu0
        %v1301 = vadd.f32 0.0, %v1300
        %v1302 = vpop.f32.mrf.mxu0
        %v1303 = vadd.f32 0.0, %v1302
        %v1304 = vpop.f32.mrf.mxu0
        %v1305 = vadd.f32 0.0, %v1304
        %1306 = vmatprep.mubr.bf16.mxu0 0
        %1307 = vmatmul.mubr.bf16.gmra.mxu0 %v334
        %v1308 = vpop.f32.mrf.mxu0
        %v1309 = vadd.f32 0.0, %v1308
        %v1310 = vpop.f32.mrf.mxu0
        %v1311 = vadd.f32 0.0, %v1310
        %v1312 = vpop.f32.mrf.mxu0
        %v1313 = vadd.f32 0.0, %v1312
        %v1314 = vpop.f32.mrf.mxu0
        %v1315 = vadd.f32 0.0, %v1314
        %1316 = vmatprep.mubr.bf16.mxu0 0
        %1317 = vmatmul.mubr.bf16.gmra.mxu0 %v335
        %v1318 = vpop.f32.mrf.mxu0
        %v1319 = vadd.f32 0.0, %v1318
        %v1320 = vpop.f32.mrf.mxu0
        %v1321 = vadd.f32 0.0, %v1320
        %v1322 = vpop.f32.mrf.mxu0
        %v1323 = vadd.f32 0.0, %v1322
        %v1324 = vpop.f32.mrf.mxu0
        %v1325 = vadd.f32 0.0, %v1324
        %1326 = vmatprep.mubr.bf16.mxu0 0
        %1327 = vmatmul.mubr.bf16.gmra.mxu0 %v336
        %v1328 = vpop.f32.mrf.mxu0
        %v1329 = vadd.f32 0.0, %v1328
        %v1330 = vpop.f32.mrf.mxu0
        %v1331 = vadd.f32 0.0, %v1330
        %v1332 = vpop.f32.mrf.mxu0
        %v1333 = vadd.f32 0.0, %v1332
        %v1334 = vpop.f32.mrf.mxu0
        %v1335 = vadd.f32 0.0, %v1334
        %1336 = vmatprep.mubr.bf16.mxu0 0
        %1337 = vmatmul.mubr.bf16.gmra.mxu0 %v337
        %v1338 = vpop.f32.mrf.mxu0
        %v1339 = vadd.f32 0.0, %v1338
        %v1340 = vpop.f32.mrf.mxu0
        %v1341 = vadd.f32 0.0, %v1340
        %v1342 = vpop.f32.mrf.mxu0
        %v1343 = vadd.f32 0.0, %v1342
        %v1344 = vpop.f32.mrf.mxu0
        %v1345 = vadd.f32 0.0, %v1344
        %1346 = vmatprep.mubr.bf16.mxu0 0
        %1347 = vmatmul.mubr.bf16.gmra.mxu0 %v338
        %v1348 = vpop.f32.mrf.mxu0
        %v1349 = vadd.f32 0.0, %v1348
        %v1350 = vpop.f32.mrf.mxu0
        %v1351 = vadd.f32 0.0, %v1350
        %v1352 = vpop.f32.mrf.mxu0
        %v1353 = vadd.f32 0.0, %v1352
        %v1354 = vpop.f32.mrf.mxu0
        %v1355 = vadd.f32 0.0, %v1354
        %1356 = vmatprep.mubr.bf16.mxu0 0
        %1357 = vmatmul.mubr.bf16.gmra.mxu0 %v339
        %v1358 = vpop.f32.mrf.mxu0
        %v1359 = vadd.f32 0.0, %v1358
        %v1360 = vpop.f32.mrf.mxu0
        %v1361 = vadd.f32 0.0, %v1360
        %v1362 = vpop.f32.mrf.mxu0
        %v1363 = vadd.f32 0.0, %v1362
        %v1364 = vpop.f32.mrf.mxu0
        %v1365 = vadd.f32 0.0, %v1364
        %1366 = vmatprep.mubr.bf16.mxu0 0
        %1367 = vmatmul.mubr.bf16.gmra.mxu0 %v340
        %v1368 = vpop.f32.mrf.mxu0
        %v1369 = vadd.f32 0.0, %v1368
        %v1370 = vpop.f32.mrf.mxu0
        %v1371 = vadd.f32 0.0, %v1370
        %v1372 = vpop.f32.mrf.mxu0
        %v1373 = vadd.f32 0.0, %v1372
        %v1374 = vpop.f32.mrf.mxu0
        %v1375 = vadd.f32 0.0, %v1374
        %1376 = vmatprep.mubr.bf16.mxu0 0
        %1377 = vmatmul.mubr.bf16.gmra.mxu0 %v341
        %v1378 = vpop.f32.mrf.mxu0
        %v1379 = vadd.f32 0.0, %v1378
        %v1380 = vpop.f32.mrf.mxu0
        %v1381 = vadd.f32 0.0, %v1380
        %v1382 = vpop.f32.mrf.mxu0
        %v1383 = vadd.f32 0.0, %v1382
        %v1384 = vpop.f32.mrf.mxu0
        %v1385 = vadd.f32 0.0, %v1384
        %1386 = vmatprep.mubr.bf16.mxu0 0
        %1387 = vmatmul.mubr.bf16.gmra.mxu0 %v342
        %v1388 = vpop.f32.mrf.mxu0
        %v1389 = vadd.f32 0.0, %v1388
        %v1390 = vpop.f32.mrf.mxu0
        %v1391 = vadd.f32 0.0, %v1390
        %v1392 = vpop.f32.mrf.mxu0
        %v1393 = vadd.f32 0.0, %v1392
        %v1394 = vpop.f32.mrf.mxu0
        %v1395 = vadd.f32 0.0, %v1394
        %1396 = vmatprep.mubr.bf16.mxu0 0
        %1397 = vmatmul.mubr.bf16.gmra.mxu0 %v343
        %v1398 = vpop.f32.mrf.mxu0
        %v1399 = vadd.f32 0.0, %v1398
        %v1400 = vpop.f32.mrf.mxu0
        %v1401 = vadd.f32 0.0, %v1400
        %v1402 = vpop.f32.mrf.mxu0
        %v1403 = vadd.f32 0.0, %v1402
        %v1404 = vpop.f32.mrf.mxu0
        %v1405 = vadd.f32 0.0, %v1404
        %1406 = vmatprep.mubr.bf16.mxu0 0
        %1407 = vmatmul.mubr.bf16.gmra.mxu0 %v344
        %v1408 = vpop.f32.mrf.mxu0
        %v1409 = vadd.f32 0.0, %v1408
        %v1410 = vpop.f32.mrf.mxu0
        %v1411 = vadd.f32 0.0, %v1410
        %v1412 = vpop.f32.mrf.mxu0
        %v1413 = vadd.f32 0.0, %v1412
        %v1414 = vpop.f32.mrf.mxu0
        %v1415 = vadd.f32 0.0, %v1414
        %1416 = vmatprep.mubr.bf16.mxu0 0
        %1417 = vmatmul.mubr.bf16.gmra.mxu0 %v345
        %v1418 = vpop.f32.mrf.mxu0
        %v1419 = vadd.f32 0.0, %v1418
        %v1420 = vpop.f32.mrf.mxu0
        %v1421 = vadd.f32 0.0, %v1420
        %v1422 = vpop.f32.mrf.mxu0
        %v1423 = vadd.f32 0.0, %v1422
        %v1424 = vpop.f32.mrf.mxu0
        %v1425 = vadd.f32 0.0, %v1424
        %1426 = vmatprep.mubr.bf16.mxu0 0
        %1427 = vmatmul.mubr.bf16.gmra.mxu0 %v346
        %v1428 = vpop.f32.mrf.mxu0
        %v1429 = vadd.f32 0.0, %v1428
        %v1430 = vpop.f32.mrf.mxu0
        %v1431 = vadd.f32 0.0, %v1430
        %v1432 = vpop.f32.mrf.mxu0
        %v1433 = vadd.f32 0.0, %v1432
        %v1434 = vpop.f32.mrf.mxu0
        %v1435 = vadd.f32 0.0, %v1434
        %1436 = vmatprep.mubr.bf16.mxu0 0
        %1437 = vmatmul.mubr.bf16.gmra.mxu0 %v347
        %v1438 = vpop.f32.mrf.mxu0
        %v1439 = vadd.f32 0.0, %v1438
        %v1440 = vpop.f32.mrf.mxu0
        %v1441 = vadd.f32 0.0, %v1440
        %v1442 = vpop.f32.mrf.mxu0
        %v1443 = vadd.f32 0.0, %v1442
        %v1444 = vpop.f32.mrf.mxu0
        %v1445 = vadd.f32 0.0, %v1444
        %1446 = vmatprep.mubr.bf16.mxu0 0
        %1447 = vmatmul.mubr.bf16.gmra.mxu0 %v348
        %v1448 = vpop.f32.mrf.mxu0
        %v1449 = vadd.f32 0.0, %v1448
        %v1450 = vpop.f32.mrf.mxu0
        %v1451 = vadd.f32 0.0, %v1450
        %v1452 = vpop.f32.mrf.mxu0
        %v1453 = vadd.f32 0.0, %v1452
        %v1454 = vpop.f32.mrf.mxu0
        %v1455 = vadd.f32 0.0, %v1454
        %1456 = vdwg.mxu0
        %v1457 = vxor.u32 %v720, 2147483648
        %v1458 = vxor.u32 %v722, 2147483648
        %v1459 = vxor.u32 %v913, 2147483648
        %v1460 = vxor.u32 %v915, 2147483648
        %v1461 = vxor.u32 %v724, 2147483648
        %v1462 = vxor.u32 %v726, 2147483648
        %v1463 = vxor.u32 %v917, 2147483648
        %v1464 = vxor.u32 %v919, 2147483648
        %v1465 = vxor.u32 %v730, 2147483648
        %v1466 = vxor.u32 %v732, 2147483648
        %v1467 = vxor.u32 %v923, 2147483648
        %v1468 = vxor.u32 %v925, 2147483648
        %v1469 = vxor.u32 %v734, 2147483648
        %v1470 = vxor.u32 %v736, 2147483648
        %v1471 = vxor.u32 %v927, 2147483648
        %v1472 = vxor.u32 %v929, 2147483648
        %v1473 = vxor.u32 %v740, 2147483648
        %v1474 = vxor.u32 %v742, 2147483648
        %v1475 = vxor.u32 %v933, 2147483648
        %v1476 = vxor.u32 %v935, 2147483648
        %v1477 = vxor.u32 %v744, 2147483648
        %v1478 = vxor.u32 %v746, 2147483648
        %v1479 = vxor.u32 %v937, 2147483648
        %v1480 = vxor.u32 %v939, 2147483648
        %v1481 = vxor.u32 %v750, 2147483648
        %v1482 = vxor.u32 %v752, 2147483648
        %v1483 = vxor.u32 %v943, 2147483648
        %v1484 = vxor.u32 %v945, 2147483648
        %v1485 = vxor.u32 %v754, 2147483648
        %v1486 = vxor.u32 %v756, 2147483648
        %v1487 = vxor.u32 %v947, 2147483648
        %v1488 = vxor.u32 %v949, 2147483648
        %v1489 = vxor.u32 %v760, 2147483648
        %v1490 = vxor.u32 %v762, 2147483648
        %v1491 = vxor.u32 %v953, 2147483648
        %v1492 = vxor.u32 %v955, 2147483648
        %v1493 = vxor.u32 %v764, 2147483648
        %v1494 = vxor.u32 %v766, 2147483648
        %v1495 = vxor.u32 %v957, 2147483648
        %v1496 = vxor.u32 %v959, 2147483648
        %v1497 = vxor.u32 %v770, 2147483648
        %v1498 = vxor.u32 %v772, 2147483648
        %v1499 = vxor.u32 %v963, 2147483648
        %v1500 = vxor.u32 %v965, 2147483648
        %v1501 = vxor.u32 %v774, 2147483648
        %v1502 = vxor.u32 %v776, 2147483648
        %v1503 = vxor.u32 %v967, 2147483648
        %v1504 = vxor.u32 %v969, 2147483648
        %v1505 = vxor.u32 %v780, 2147483648
        %v1506 = vxor.u32 %v782, 2147483648
        %v1507 = vxor.u32 %v973, 2147483648
        %v1508 = vxor.u32 %v975, 2147483648
        %v1509 = vxor.u32 %v784, 2147483648
        %v1510 = vxor.u32 %v786, 2147483648
        %v1511 = vxor.u32 %v977, 2147483648
        %v1512 = vxor.u32 %v979, 2147483648
        %v1513 = vxor.u32 %v790, 2147483648
        %v1514 = vxor.u32 %v792, 2147483648
        %v1515 = vxor.u32 %v983, 2147483648
        %v1516 = vxor.u32 %v985, 2147483648
        %v1517 = vxor.u32 %v794, 2147483648
        %v1518 = vxor.u32 %v796, 2147483648
        %v1519 = vxor.u32 %v987, 2147483648
        %v1520 = vxor.u32 %v989, 2147483648
        %v1521 = vxor.u32 %v800, 2147483648
        %v1522 = vxor.u32 %v802, 2147483648
        %v1523 = vxor.u32 %v993, 2147483648
        %v1524 = vxor.u32 %v995, 2147483648
        %v1525 = vxor.u32 %v804, 2147483648
        %v1526 = vxor.u32 %v806, 2147483648
        %v1527 = vxor.u32 %v997, 2147483648
        %v1528 = vxor.u32 %v999, 2147483648
        %v1529 = vxor.u32 %v810, 2147483648
        %v1530 = vxor.u32 %v812, 2147483648
        %v1531 = vxor.u32 %v1003, 2147483648
        %v1532 = vxor.u32 %v1005, 2147483648
        %v1533 = vxor.u32 %v814, 2147483648
        %v1534 = vxor.u32 %v816, 2147483648
        %v1535 = vxor.u32 %v1007, 2147483648
        %v1536 = vxor.u32 %v1009, 2147483648
        %v1537 = vxor.u32 %v820, 2147483648
        %v1538 = vxor.u32 %v822, 2147483648
        %v1539 = vxor.u32 %v1013, 2147483648
        %v1540 = vxor.u32 %v1015, 2147483648
        %v1541 = vxor.u32 %v824, 2147483648
        %v1542 = vxor.u32 %v826, 2147483648
        %v1543 = vxor.u32 %v1017, 2147483648
        %v1544 = vxor.u32 %v1019, 2147483648
        %v1545 = vxor.u32 %v830, 2147483648
        %v1546 = vxor.u32 %v832, 2147483648
        %v1547 = vxor.u32 %v1023, 2147483648
        %v1548 = vxor.u32 %v1025, 2147483648
        %v1549 = vxor.u32 %v834, 2147483648
        %v1550 = vxor.u32 %v836, 2147483648
        %v1551 = vxor.u32 %v1027, 2147483648
        %v1552 = vxor.u32 %v1029, 2147483648
        %v1553 = vxor.u32 %v840, 2147483648
        %v1554 = vxor.u32 %v842, 2147483648
        %v1555 = vxor.u32 %v1033, 2147483648
        %v1556 = vxor.u32 %v1035, 2147483648
        %v1557 = vxor.u32 %v844, 2147483648
        %v1558 = vxor.u32 %v846, 2147483648
        %v1559 = vxor.u32 %v1037, 2147483648
        %v1560 = vxor.u32 %v1039, 2147483648
        %v1561 = vxor.u32 %v850, 2147483648
        %v1562 = vxor.u32 %v852, 2147483648
        %v1563 = vxor.u32 %v1043, 2147483648
        %v1564 = vxor.u32 %v1045, 2147483648
        %v1565 = vxor.u32 %v854, 2147483648
        %v1566 = vxor.u32 %v856, 2147483648
        %v1567 = vxor.u32 %v1047, 2147483648
        %v1568 = vxor.u32 %v1049, 2147483648
        %v1569 = vxor.u32 %v860, 2147483648
        %v1570 = vxor.u32 %v862, 2147483648
        %v1571 = vxor.u32 %v1053, 2147483648
        %v1572 = vxor.u32 %v1055, 2147483648
        %v1573 = vxor.u32 %v864, 2147483648
        %v1574 = vxor.u32 %v866, 2147483648
        %v1575 = vxor.u32 %v1057, 2147483648
        %v1576 = vxor.u32 %v1059, 2147483648
        %v1577 = vxor.u32 %v870, 2147483648
        %v1578 = vxor.u32 %v872, 2147483648
        %v1579 = vxor.u32 %v1063, 2147483648
        %v1580 = vxor.u32 %v1065, 2147483648
        %v1581 = vxor.u32 %v874, 2147483648
        %v1582 = vxor.u32 %v876, 2147483648
        %v1583 = vxor.u32 %v1067, 2147483648
        %v1584 = vxor.u32 %v1069, 2147483648
        %v1585 = vmul.f32 %v1457, 1.442695
        %v1586 = vpow.pop %v1585
        %v1587 = vmul.f32 %v1458, 1.442695
        %v1588 = vpow.pop %v1587
        %v1589 = vmul.f32 %v1459, 1.442695
        %v1590 = vpow.pop %v1589
        %v1591 = vmul.f32 %v1460, 1.442695
        %v1592 = vpow.pop %v1591
        %v1593 = vmul.f32 %v1461, 1.442695
        %v1594 = vpow.pop %v1593
        %v1595 = vmul.f32 %v1462, 1.442695
        %v1596 = vpow.pop %v1595
        %v1597 = vmul.f32 %v1463, 1.442695
        %v1598 = vpow.pop %v1597
        %v1599 = vmul.f32 %v1464, 1.442695
        %v1600 = vpow.pop %v1599
        %v1601 = vmul.f32 %v1465, 1.442695
        %v1602 = vpow.pop %v1601
        %v1603 = vmul.f32 %v1466, 1.442695
        %v1604 = vpow.pop %v1603
        %v1605 = vmul.f32 %v1467, 1.442695
        %v1606 = vpow.pop %v1605
        %v1607 = vmul.f32 %v1468, 1.442695
        %v1608 = vpow.pop %v1607
        %v1609 = vmul.f32 %v1469, 1.442695
        %v1610 = vpow.pop %v1609
        %v1611 = vmul.f32 %v1470, 1.442695
        %v1612 = vpow.pop %v1611
        %v1613 = vmul.f32 %v1471, 1.442695
        %v1614 = vpow.pop %v1613
        %v1615 = vmul.f32 %v1472, 1.442695
        %v1616 = vpow.pop %v1615
        %v1617 = vmul.f32 %v1473, 1.442695
        %v1618 = vpow.pop %v1617
        %v1619 = vmul.f32 %v1474, 1.442695
        %v1620 = vpow.pop %v1619
        %v1621 = vmul.f32 %v1475, 1.442695
        %v1622 = vpow.pop %v1621
        %v1623 = vmul.f32 %v1476, 1.442695
        %v1624 = vpow.pop %v1623
        %v1625 = vmul.f32 %v1477, 1.442695
        %v1626 = vpow.pop %v1625
        %v1627 = vmul.f32 %v1478, 1.442695
        %v1628 = vpow.pop %v1627
        %v1629 = vmul.f32 %v1479, 1.442695
        %v1630 = vpow.pop %v1629
        %v1631 = vmul.f32 %v1480, 1.442695
        %v1632 = vpow.pop %v1631
        %v1633 = vmul.f32 %v1481, 1.442695
        %v1634 = vpow.pop %v1633
        %v1635 = vmul.f32 %v1482, 1.442695
        %v1636 = vpow.pop %v1635
        %v1637 = vmul.f32 %v1483, 1.442695
        %v1638 = vpow.pop %v1637
        %v1639 = vmul.f32 %v1484, 1.442695
        %v1640 = vpow.pop %v1639
        %v1641 = vmul.f32 %v1485, 1.442695
        %v1642 = vpow.pop %v1641
        %v1643 = vmul.f32 %v1486, 1.442695
        %v1644 = vpow.pop %v1643
        %v1645 = vmul.f32 %v1487, 1.442695
        %v1646 = vpow.pop %v1645
        %v1647 = vmul.f32 %v1488, 1.442695
        %v1648 = vpow.pop %v1647
        %v1649 = vmul.f32 %v1489, 1.442695
        %v1650 = vpow.pop %v1649
        %v1651 = vmul.f32 %v1490, 1.442695
        %v1652 = vpow.pop %v1651
        %v1653 = vmul.f32 %v1491, 1.442695
        %v1654 = vpow.pop %v1653
        %v1655 = vmul.f32 %v1492, 1.442695
        %v1656 = vpow.pop %v1655
        %v1657 = vmul.f32 %v1493, 1.442695
        %v1658 = vpow.pop %v1657
        %v1659 = vmul.f32 %v1494, 1.442695
        %v1660 = vpow.pop %v1659
        %v1661 = vmul.f32 %v1495, 1.442695
        %v1662 = vpow.pop %v1661
        %v1663 = vmul.f32 %v1496, 1.442695
        %v1664 = vpow.pop %v1663
        %v1665 = vmul.f32 %v1497, 1.442695
        %v1666 = vpow.pop %v1665
        %v1667 = vmul.f32 %v1498, 1.442695
        %v1668 = vpow.pop %v1667
        %v1669 = vmul.f32 %v1499, 1.442695
        %v1670 = vpow.pop %v1669
        %v1671 = vmul.f32 %v1500, 1.442695
        %v1672 = vpow.pop %v1671
        %v1673 = vmul.f32 %v1501, 1.442695
        %v1674 = vpow.pop %v1673
        %v1675 = vmul.f32 %v1502, 1.442695
        %v1676 = vpow.pop %v1675
        %v1677 = vmul.f32 %v1503, 1.442695
        %v1678 = vpow.pop %v1677
        %v1679 = vmul.f32 %v1504, 1.442695
        %v1680 = vpow.pop %v1679
        %v1681 = vmul.f32 %v1505, 1.442695
        %v1682 = vpow.pop %v1681
        %v1683 = vmul.f32 %v1506, 1.442695
        %v1684 = vpow.pop %v1683
        %v1685 = vmul.f32 %v1507, 1.442695
        %v1686 = vpow.pop %v1685
        %v1687 = vmul.f32 %v1508, 1.442695
        %v1688 = vpow.pop %v1687
        %v1689 = vmul.f32 %v1509, 1.442695
        %v1690 = vpow.pop %v1689
        %v1691 = vmul.f32 %v1510, 1.442695
        %v1692 = vpow.pop %v1691
        %v1693 = vmul.f32 %v1511, 1.442695
        %v1694 = vpow.pop %v1693
        %v1695 = vmul.f32 %v1512, 1.442695
        %v1696 = vpow.pop %v1695
        %v1697 = vmul.f32 %v1513, 1.442695
        %v1698 = vpow.pop %v1697
        %v1699 = vmul.f32 %v1514, 1.442695
        %v1700 = vpow.pop %v1699
        %v1701 = vmul.f32 %v1515, 1.442695
        %v1702 = vpow.pop %v1701
        %v1703 = vmul.f32 %v1516, 1.442695
        %v1704 = vpow.pop %v1703
        %v1705 = vmul.f32 %v1517, 1.442695
        %v1706 = vpow.pop %v1705
        %v1707 = vmul.f32 %v1518, 1.442695
        %v1708 = vpow.pop %v1707
        %v1709 = vmul.f32 %v1519, 1.442695
        %v1710 = vpow.pop %v1709
        %v1711 = vmul.f32 %v1520, 1.442695
        %v1712 = vpow.pop %v1711
        %v1713 = vmul.f32 %v1521, 1.442695
        %v1714 = vpow.pop %v1713
        %v1715 = vmul.f32 %v1522, 1.442695
        %v1716 = vpow.pop %v1715
        %v1717 = vmul.f32 %v1523, 1.442695
        %v1718 = vpow.pop %v1717
        %v1719 = vmul.f32 %v1524, 1.442695
        %v1720 = vpow.pop %v1719
        %v1721 = vmul.f32 %v1525, 1.442695
        %v1722 = vpow.pop %v1721
        %v1723 = vmul.f32 %v1526, 1.442695
        %v1724 = vpow.pop %v1723
        %v1725 = vmul.f32 %v1527, 1.442695
        %v1726 = vpow.pop %v1725
        %v1727 = vmul.f32 %v1528, 1.442695
        %v1728 = vpow.pop %v1727
        %v1729 = vmul.f32 %v1529, 1.442695
        %v1730 = vpow.pop %v1729
        %v1731 = vmul.f32 %v1530, 1.442695
        %v1732 = vpow.pop %v1731
        %v1733 = vmul.f32 %v1531, 1.442695
        %v1734 = vpow.pop %v1733
        %v1735 = vmul.f32 %v1532, 1.442695
        %v1736 = vpow.pop %v1735
        %v1737 = vmul.f32 %v1533, 1.442695
        %v1738 = vpow.pop %v1737
        %v1739 = vmul.f32 %v1534, 1.442695
        %v1740 = vpow.pop %v1739
        %v1741 = vmul.f32 %v1535, 1.442695
        %v1742 = vpow.pop %v1741
        %v1743 = vmul.f32 %v1536, 1.442695
        %v1744 = vpow.pop %v1743
        %v1745 = vmul.f32 %v1537, 1.442695
        %v1746 = vpow.pop %v1745
        %v1747 = vmul.f32 %v1538, 1.442695
        %v1748 = vpow.pop %v1747
        %v1749 = vmul.f32 %v1539, 1.442695
        %v1750 = vpow.pop %v1749
        %v1751 = vmul.f32 %v1540, 1.442695
        %v1752 = vpow.pop %v1751
        %v1753 = vmul.f32 %v1541, 1.442695
        %v1754 = vpow.pop %v1753
        %v1755 = vmul.f32 %v1542, 1.442695
        %v1756 = vpow.pop %v1755
        %v1757 = vmul.f32 %v1543, 1.442695
        %v1758 = vpow.pop %v1757
        %v1759 = vmul.f32 %v1544, 1.442695
        %v1760 = vpow.pop %v1759
        %v1761 = vmul.f32 %v1545, 1.442695
        %v1762 = vpow.pop %v1761
        %v1763 = vmul.f32 %v1546, 1.442695
        %v1764 = vpow.pop %v1763
        %v1765 = vmul.f32 %v1547, 1.442695
        %v1766 = vpow.pop %v1765
        %v1767 = vmul.f32 %v1548, 1.442695
        %v1768 = vpow.pop %v1767
        %v1769 = vmul.f32 %v1549, 1.442695
        %v1770 = vpow.pop %v1769
        %v1771 = vmul.f32 %v1550, 1.442695
        %v1772 = vpow.pop %v1771
        %v1773 = vmul.f32 %v1551, 1.442695
        %v1774 = vpow.pop %v1773
        %v1775 = vmul.f32 %v1552, 1.442695
        %v1776 = vpow.pop %v1775
        %v1777 = vmul.f32 %v1553, 1.442695
        %v1778 = vpow.pop %v1777
        %v1779 = vmul.f32 %v1554, 1.442695
        %v1780 = vpow.pop %v1779
        %v1781 = vmul.f32 %v1555, 1.442695
        %v1782 = vpow.pop %v1781
        %v1783 = vmul.f32 %v1556, 1.442695
        %v1784 = vpow.pop %v1783
        %v1785 = vmul.f32 %v1557, 1.442695
        %v1786 = vpow.pop %v1785
        %v1787 = vmul.f32 %v1558, 1.442695
        %v1788 = vpow.pop %v1787
        %v1789 = vmul.f32 %v1559, 1.442695
        %v1790 = vpow.pop %v1789
        %v1791 = vmul.f32 %v1560, 1.442695
        %v1792 = vpow.pop %v1791
        %v1793 = vmul.f32 %v1561, 1.442695
        %v1794 = vpow.pop %v1793
        %v1795 = vmul.f32 %v1562, 1.442695
        %v1796 = vpow.pop %v1795
        %v1797 = vmul.f32 %v1563, 1.442695
        %v1798 = vpow.pop %v1797
        %v1799 = vmul.f32 %v1564, 1.442695
        %v1800 = vpow.pop %v1799
        %v1801 = vmul.f32 %v1565, 1.442695
        %v1802 = vpow.pop %v1801
        %v1803 = vmul.f32 %v1566, 1.442695
        %v1804 = vpow.pop %v1803
        %v1805 = vmul.f32 %v1567, 1.442695
        %v1806 = vpow.pop %v1805
        %v1807 = vmul.f32 %v1568, 1.442695
        %v1808 = vpow.pop %v1807
        %v1809 = vmul.f32 %v1569, 1.442695
        %v1810 = vpow.pop %v1809
        %v1811 = vmul.f32 %v1570, 1.442695
        %v1812 = vpow.pop %v1811
        %v1813 = vmul.f32 %v1571, 1.442695
        %v1814 = vpow.pop %v1813
        %v1815 = vmul.f32 %v1572, 1.442695
        %v1816 = vpow.pop %v1815
        %v1817 = vmul.f32 %v1573, 1.442695
        %v1818 = vpow.pop %v1817
        %v1819 = vmul.f32 %v1574, 1.442695
        %v1820 = vpow.pop %v1819
        %v1821 = vmul.f32 %v1575, 1.442695
        %v1822 = vpow.pop %v1821
        %v1823 = vmul.f32 %v1576, 1.442695
        %v1824 = vpow.pop %v1823
        %v1825 = vmul.f32 %v1577, 1.442695
        %v1826 = vpow.pop %v1825
        %v1827 = vmul.f32 %v1578, 1.442695
        %v1828 = vpow.pop %v1827
        %v1829 = vmul.f32 %v1579, 1.442695
        %v1830 = vpow.pop %v1829
        %v1831 = vmul.f32 %v1580, 1.442695
        %v1832 = vpow.pop %v1831
        %v1833 = vmul.f32 %v1581, 1.442695
        %v1834 = vpow.pop %v1833
        %v1835 = vmul.f32 %v1582, 1.442695
        %v1836 = vpow.pop %v1835
        %v1837 = vmul.f32 %v1583, 1.442695
        %v1838 = vpow.pop %v1837
        %v1839 = vmul.f32 %v1584, 1.442695
        %v1840 = vpow.pop %v1839
        %v1841 = vadd.f32 %v1586, 1.0
        %v1842 = vadd.f32 %v1588, 1.0
        %v1843 = vadd.f32 %v1590, 1.0
        %v1844 = vadd.f32 %v1592, 1.0
        %v1845 = vadd.f32 %v1594, 1.0
        %v1846 = vadd.f32 %v1596, 1.0
        %v1847 = vadd.f32 %v1598, 1.0
        %v1848 = vadd.f32 %v1600, 1.0
        %v1849 = vadd.f32 %v1602, 1.0
        %v1850 = vadd.f32 %v1604, 1.0
        %v1851 = vadd.f32 %v1606, 1.0
        %v1852 = vadd.f32 %v1608, 1.0
        %v1853 = vadd.f32 %v1610, 1.0
        %v1854 = vadd.f32 %v1612, 1.0
        %v1855 = vadd.f32 %v1614, 1.0
        %v1856 = vadd.f32 %v1616, 1.0
        %v1857 = vadd.f32 %v1618, 1.0
        %v1858 = vadd.f32 %v1620, 1.0
        %v1859 = vadd.f32 %v1622, 1.0
        %v1860 = vadd.f32 %v1624, 1.0
        %v1861 = vadd.f32 %v1626, 1.0
        %v1862 = vadd.f32 %v1628, 1.0
        %v1863 = vadd.f32 %v1630, 1.0
        %v1864 = vadd.f32 %v1632, 1.0
        %v1865 = vadd.f32 %v1634, 1.0
        %v1866 = vadd.f32 %v1636, 1.0
        %v1867 = vadd.f32 %v1638, 1.0
        %v1868 = vadd.f32 %v1640, 1.0
        %v1869 = vadd.f32 %v1642, 1.0
        %v1870 = vadd.f32 %v1644, 1.0
        %v1871 = vadd.f32 %v1646, 1.0
        %v1872 = vadd.f32 %v1648, 1.0
        %v1873 = vadd.f32 %v1650, 1.0
        %v1874 = vadd.f32 %v1652, 1.0
        %v1875 = vadd.f32 %v1654, 1.0
        %v1876 = vadd.f32 %v1656, 1.0
        %v1877 = vadd.f32 %v1658, 1.0
        %v1878 = vadd.f32 %v1660, 1.0
        %v1879 = vadd.f32 %v1662, 1.0
        %v1880 = vadd.f32 %v1664, 1.0
        %v1881 = vadd.f32 %v1666, 1.0
        %v1882 = vadd.f32 %v1668, 1.0
        %v1883 = vadd.f32 %v1670, 1.0
        %v1884 = vadd.f32 %v1672, 1.0
        %v1885 = vadd.f32 %v1674, 1.0
        %v1886 = vadd.f32 %v1676, 1.0
        %v1887 = vadd.f32 %v1678, 1.0
        %v1888 = vadd.f32 %v1680, 1.0
        %v1889 = vadd.f32 %v1682, 1.0
        %v1890 = vadd.f32 %v1684, 1.0
        %v1891 = vadd.f32 %v1686, 1.0
        %v1892 = vadd.f32 %v1688, 1.0
        %v1893 = vadd.f32 %v1690, 1.0
        %v1894 = vadd.f32 %v1692, 1.0
        %v1895 = vadd.f32 %v1694, 1.0
        %v1896 = vadd.f32 %v1696, 1.0
        %v1897 = vadd.f32 %v1698, 1.0
        %v1898 = vadd.f32 %v1700, 1.0
        %v1899 = vadd.f32 %v1702, 1.0
        %v1900 = vadd.f32 %v1704, 1.0
        %v1901 = vadd.f32 %v1706, 1.0
        %v1902 = vadd.f32 %v1708, 1.0
        %v1903 = vadd.f32 %v1710, 1.0
        %v1904 = vadd.f32 %v1712, 1.0
        %v1905 = vadd.f32 %v1714, 1.0
        %v1906 = vadd.f32 %v1716, 1.0
        %v1907 = vadd.f32 %v1718, 1.0
        %v1908 = vadd.f32 %v1720, 1.0
        %v1909 = vadd.f32 %v1722, 1.0
        %v1910 = vadd.f32 %v1724, 1.0
        %v1911 = vadd.f32 %v1726, 1.0
        %v1912 = vadd.f32 %v1728, 1.0
        %v1913 = vadd.f32 %v1730, 1.0
        %v1914 = vadd.f32 %v1732, 1.0
        %v1915 = vadd.f32 %v1734, 1.0
        %v1916 = vadd.f32 %v1736, 1.0
        %v1917 = vadd.f32 %v1738, 1.0
        %v1918 = vadd.f32 %v1740, 1.0
        %v1919 = vadd.f32 %v1742, 1.0
        %v1920 = vadd.f32 %v1744, 1.0
        %v1921 = vadd.f32 %v1746, 1.0
        %v1922 = vadd.f32 %v1748, 1.0
        %v1923 = vadd.f32 %v1750, 1.0
        %v1924 = vadd.f32 %v1752, 1.0
        %v1925 = vadd.f32 %v1754, 1.0
        %v1926 = vadd.f32 %v1756, 1.0
        %v1927 = vadd.f32 %v1758, 1.0
        %v1928 = vadd.f32 %v1760, 1.0
        %v1929 = vadd.f32 %v1762, 1.0
        %v1930 = vadd.f32 %v1764, 1.0
        %v1931 = vadd.f32 %v1766, 1.0
        %v1932 = vadd.f32 %v1768, 1.0
        %v1933 = vadd.f32 %v1770, 1.0
        %v1934 = vadd.f32 %v1772, 1.0
        %v1935 = vadd.f32 %v1774, 1.0
        %v1936 = vadd.f32 %v1776, 1.0
        %v1937 = vadd.f32 %v1778, 1.0
        %v1938 = vadd.f32 %v1780, 1.0
        %v1939 = vadd.f32 %v1782, 1.0
        %v1940 = vadd.f32 %v1784, 1.0
        %v1941 = vadd.f32 %v1786, 1.0
        %v1942 = vadd.f32 %v1788, 1.0
        %v1943 = vadd.f32 %v1790, 1.0
        %v1944 = vadd.f32 %v1792, 1.0
        %v1945 = vadd.f32 %v1794, 1.0
        %v1946 = vadd.f32 %v1796, 1.0
        %v1947 = vadd.f32 %v1798, 1.0
        %v1948 = vadd.f32 %v1800, 1.0
        %v1949 = vadd.f32 %v1802, 1.0
        %v1950 = vadd.f32 %v1804, 1.0
        %v1951 = vadd.f32 %v1806, 1.0
        %v1952 = vadd.f32 %v1808, 1.0
        %v1953 = vadd.f32 %v1810, 1.0
        %v1954 = vadd.f32 %v1812, 1.0
        %v1955 = vadd.f32 %v1814, 1.0
        %v1956 = vadd.f32 %v1816, 1.0
        %v1957 = vadd.f32 %v1818, 1.0
        %v1958 = vadd.f32 %v1820, 1.0
        %v1959 = vadd.f32 %v1822, 1.0
        %v1960 = vadd.f32 %v1824, 1.0
        %v1961 = vadd.f32 %v1826, 1.0
        %v1962 = vadd.f32 %v1828, 1.0
        %v1963 = vadd.f32 %v1830, 1.0
        %v1964 = vadd.f32 %v1832, 1.0
        %v1965 = vadd.f32 %v1834, 1.0
        %v1966 = vadd.f32 %v1836, 1.0
        %v1967 = vadd.f32 %v1838, 1.0
        %v1968 = vadd.f32 %v1840, 1.0
        %v1969 = vrcp.pop %v1841
        %v1970 = vmul.f32 1.0, %v1969
        %v1971 = vrcp.pop %v1842
        %v1972 = vmul.f32 1.0, %v1971
        %v1973 = vrcp.pop %v1843
        %v1974 = vmul.f32 1.0, %v1973
        %v1975 = vrcp.pop %v1844
        %v1976 = vmul.f32 1.0, %v1975
        %v1977 = vrcp.pop %v1845
        %v1978 = vmul.f32 1.0, %v1977
        %v1979 = vrcp.pop %v1846
        %v1980 = vmul.f32 1.0, %v1979
        %v1981 = vrcp.pop %v1847
        %v1982 = vmul.f32 1.0, %v1981
        %v1983 = vrcp.pop %v1848
        %v1984 = vmul.f32 1.0, %v1983
        %v1985 = vrcp.pop %v1849
        %v1986 = vmul.f32 1.0, %v1985
        %v1987 = vrcp.pop %v1850
        %v1988 = vmul.f32 1.0, %v1987
        %v1989 = vrcp.pop %v1851
        %v1990 = vmul.f32 1.0, %v1989
        %v1991 = vrcp.pop %v1852
        %v1992 = vmul.f32 1.0, %v1991
        %v1993 = vrcp.pop %v1853
        %v1994 = vmul.f32 1.0, %v1993
        %v1995 = vrcp.pop %v1854
        %v1996 = vmul.f32 1.0, %v1995
        %v1997 = vrcp.pop %v1855
        %v1998 = vmul.f32 1.0, %v1997
        %v1999 = vrcp.pop %v1856
        %v2000 = vmul.f32 1.0, %v1999
        %v2001 = vrcp.pop %v1857
        %v2002 = vmul.f32 1.0, %v2001
        %v2003 = vrcp.pop %v1858
        %v2004 = vmul.f32 1.0, %v2003
        %v2005 = vrcp.pop %v1859
        %v2006 = vmul.f32 1.0, %v2005
        %v2007 = vrcp.pop %v1860
        %v2008 = vmul.f32 1.0, %v2007
        %v2009 = vrcp.pop %v1861
        %v2010 = vmul.f32 1.0, %v2009
        %v2011 = vrcp.pop %v1862
        %v2012 = vmul.f32 1.0, %v2011
        %v2013 = vrcp.pop %v1863
        %v2014 = vmul.f32 1.0, %v2013
        %v2015 = vrcp.pop %v1864
        %v2016 = vmul.f32 1.0, %v2015
        %v2017 = vrcp.pop %v1865
        %v2018 = vmul.f32 1.0, %v2017
        %v2019 = vrcp.pop %v1866
        %v2020 = vmul.f32 1.0, %v2019
        %v2021 = vrcp.pop %v1867
        %v2022 = vmul.f32 1.0, %v2021
        %v2023 = vrcp.pop %v1868
        %v2024 = vmul.f32 1.0, %v2023
        %v2025 = vrcp.pop %v1869
        %v2026 = vmul.f32 1.0, %v2025
        %v2027 = vrcp.pop %v1870
        %v2028 = vmul.f32 1.0, %v2027
        %v2029 = vrcp.pop %v1871
        %v2030 = vmul.f32 1.0, %v2029
        %v2031 = vrcp.pop %v1872
        %v2032 = vmul.f32 1.0, %v2031
        %v2033 = vrcp.pop %v1873
        %v2034 = vmul.f32 1.0, %v2033
        %v2035 = vrcp.pop %v1874
        %v2036 = vmul.f32 1.0, %v2035
        %v2037 = vrcp.pop %v1875
        %v2038 = vmul.f32 1.0, %v2037
        %v2039 = vrcp.pop %v1876
        %v2040 = vmul.f32 1.0, %v2039
        %v2041 = vrcp.pop %v1877
        %v2042 = vmul.f32 1.0, %v2041
        %v2043 = vrcp.pop %v1878
        %v2044 = vmul.f32 1.0, %v2043
        %v2045 = vrcp.pop %v1879
        %v2046 = vmul.f32 1.0, %v2045
        %v2047 = vrcp.pop %v1880
        %v2048 = vmul.f32 1.0, %v2047
        %v2049 = vrcp.pop %v1881
        %v2050 = vmul.f32 1.0, %v2049
        %v2051 = vrcp.pop %v1882
        %v2052 = vmul.f32 1.0, %v2051
        %v2053 = vrcp.pop %v1883
        %v2054 = vmul.f32 1.0, %v2053
        %v2055 = vrcp.pop %v1884
        %v2056 = vmul.f32 1.0, %v2055
        %v2057 = vrcp.pop %v1885
        %v2058 = vmul.f32 1.0, %v2057
        %v2059 = vrcp.pop %v1886
        %v2060 = vmul.f32 1.0, %v2059
        %v2061 = vrcp.pop %v1887
        %v2062 = vmul.f32 1.0, %v2061
        %v2063 = vrcp.pop %v1888
        %v2064 = vmul.f32 1.0, %v2063
        %v2065 = vrcp.pop %v1889
        %v2066 = vmul.f32 1.0, %v2065
        %v2067 = vrcp.pop %v1890
        %v2068 = vmul.f32 1.0, %v2067
        %v2069 = vrcp.pop %v1891
        %v2070 = vmul.f32 1.0, %v2069
        %v2071 = vrcp.pop %v1892
        %v2072 = vmul.f32 1.0, %v2071
        %v2073 = vrcp.pop %v1893
        %v2074 = vmul.f32 1.0, %v2073
        %v2075 = vrcp.pop %v1894
        %v2076 = vmul.f32 1.0, %v2075
        %v2077 = vrcp.pop %v1895
        %v2078 = vmul.f32 1.0, %v2077
        %v2079 = vrcp.pop %v1896
        %v2080 = vmul.f32 1.0, %v2079
        %v2081 = vrcp.pop %v1897
        %v2082 = vmul.f32 1.0, %v2081
        %v2083 = vrcp.pop %v1898
        %v2084 = vmul.f32 1.0, %v2083
        %v2085 = vrcp.pop %v1899
        %v2086 = vmul.f32 1.0, %v2085
        %v2087 = vrcp.pop %v1900
        %v2088 = vmul.f32 1.0, %v2087
        %v2089 = vrcp.pop %v1901
        %v2090 = vmul.f32 1.0, %v2089
        %v2091 = vrcp.pop %v1902
        %v2092 = vmul.f32 1.0, %v2091
        %v2093 = vrcp.pop %v1903
        %v2094 = vmul.f32 1.0, %v2093
        %v2095 = vrcp.pop %v1904
        %v2096 = vmul.f32 1.0, %v2095
        %v2097 = vrcp.pop %v1905
        %v2098 = vmul.f32 1.0, %v2097
        %v2099 = vrcp.pop %v1906
        %v2100 = vmul.f32 1.0, %v2099
        %v2101 = vrcp.pop %v1907
        %v2102 = vmul.f32 1.0, %v2101
        %v2103 = vrcp.pop %v1908
        %v2104 = vmul.f32 1.0, %v2103
        %v2105 = vrcp.pop %v1909
        %v2106 = vmul.f32 1.0, %v2105
        %v2107 = vrcp.pop %v1910
        %v2108 = vmul.f32 1.0, %v2107
        %v2109 = vrcp.pop %v1911
        %v2110 = vmul.f32 1.0, %v2109
        %v2111 = vrcp.pop %v1912
        %v2112 = vmul.f32 1.0, %v2111
        %v2113 = vrcp.pop %v1913
        %v2114 = vmul.f32 1.0, %v2113
        %v2115 = vrcp.pop %v1914
        %v2116 = vmul.f32 1.0, %v2115
        %v2117 = vrcp.pop %v1915
        %v2118 = vmul.f32 1.0, %v2117
        %v2119 = vrcp.pop %v1916
        %v2120 = vmul.f32 1.0, %v2119
        %v2121 = vrcp.pop %v1917
        %v2122 = vmul.f32 1.0, %v2121
        %v2123 = vrcp.pop %v1918
        %v2124 = vmul.f32 1.0, %v2123
        %v2125 = vrcp.pop %v1919
        %v2126 = vmul.f32 1.0, %v2125
        %v2127 = vrcp.pop %v1920
        %v2128 = vmul.f32 1.0, %v2127
        %v2129 = vrcp.pop %v1921
        %v2130 = vmul.f32 1.0, %v2129
        %v2131 = vrcp.pop %v1922
        %v2132 = vmul.f32 1.0, %v2131
        %v2133 = vrcp.pop %v1923
        %v2134 = vmul.f32 1.0, %v2133
        %v2135 = vrcp.pop %v1924
        %v2136 = vmul.f32 1.0, %v2135
        %v2137 = vrcp.pop %v1925
        %v2138 = vmul.f32 1.0, %v2137
        %v2139 = vrcp.pop %v1926
        %v2140 = vmul.f32 1.0, %v2139
        %v2141 = vrcp.pop %v1927
        %v2142 = vmul.f32 1.0, %v2141
        %v2143 = vrcp.pop %v1928
        %v2144 = vmul.f32 1.0, %v2143
        %v2145 = vrcp.pop %v1929
        %v2146 = vmul.f32 1.0, %v2145
        %v2147 = vrcp.pop %v1930
        %v2148 = vmul.f32 1.0, %v2147
        %v2149 = vrcp.pop %v1931
        %v2150 = vmul.f32 1.0, %v2149
        %v2151 = vrcp.pop %v1932
        %v2152 = vmul.f32 1.0, %v2151
        %v2153 = vrcp.pop %v1933
        %v2154 = vmul.f32 1.0, %v2153
        %v2155 = vrcp.pop %v1934
        %v2156 = vmul.f32 1.0, %v2155
        %v2157 = vrcp.pop %v1935
        %v2158 = vmul.f32 1.0, %v2157
        %v2159 = vrcp.pop %v1936
        %v2160 = vmul.f32 1.0, %v2159
        %v2161 = vrcp.pop %v1937
        %v2162 = vmul.f32 1.0, %v2161
        %v2163 = vrcp.pop %v1938
        %v2164 = vmul.f32 1.0, %v2163
        %v2165 = vrcp.pop %v1939
        %v2166 = vmul.f32 1.0, %v2165
        %v2167 = vrcp.pop %v1940
        %v2168 = vmul.f32 1.0, %v2167
        %v2169 = vrcp.pop %v1941
        %v2170 = vmul.f32 1.0, %v2169
        %v2171 = vrcp.pop %v1942
        %v2172 = vmul.f32 1.0, %v2171
        %v2173 = vrcp.pop %v1943
        %v2174 = vmul.f32 1.0, %v2173
        %v2175 = vrcp.pop %v1944
        %v2176 = vmul.f32 1.0, %v2175
        %v2177 = vrcp.pop %v1945
        %v2178 = vmul.f32 1.0, %v2177
        %v2179 = vrcp.pop %v1946
        %v2180 = vmul.f32 1.0, %v2179
        %v2181 = vrcp.pop %v1947
        %v2182 = vmul.f32 1.0, %v2181
        %v2183 = vrcp.pop %v1948
        %v2184 = vmul.f32 1.0, %v2183
        %v2185 = vrcp.pop %v1949
        %v2186 = vmul.f32 1.0, %v2185
        %v2187 = vrcp.pop %v1950
        %v2188 = vmul.f32 1.0, %v2187
        %v2189 = vrcp.pop %v1951
        %v2190 = vmul.f32 1.0, %v2189
        %v2191 = vrcp.pop %v1952
        %v2192 = vmul.f32 1.0, %v2191
        %v2193 = vrcp.pop %v1953
        %v2194 = vmul.f32 1.0, %v2193
        %v2195 = vrcp.pop %v1954
        %v2196 = vmul.f32 1.0, %v2195
        %v2197 = vrcp.pop %v1955
        %v2198 = vmul.f32 1.0, %v2197
        %v2199 = vrcp.pop %v1956
        %v2200 = vmul.f32 1.0, %v2199
        %v2201 = vrcp.pop %v1957
        %v2202 = vmul.f32 1.0, %v2201
        %v2203 = vrcp.pop %v1958
        %v2204 = vmul.f32 1.0, %v2203
        %v2205 = vrcp.pop %v1959
        %v2206 = vmul.f32 1.0, %v2205
        %v2207 = vrcp.pop %v1960
        %v2208 = vmul.f32 1.0, %v2207
        %v2209 = vrcp.pop %v1961
        %v2210 = vmul.f32 1.0, %v2209
        %v2211 = vrcp.pop %v1962
        %v2212 = vmul.f32 1.0, %v2211
        %v2213 = vrcp.pop %v1963
        %v2214 = vmul.f32 1.0, %v2213
        %v2215 = vrcp.pop %v1964
        %v2216 = vmul.f32 1.0, %v2215
        %v2217 = vrcp.pop %v1965
        %v2218 = vmul.f32 1.0, %v2217
        %v2219 = vrcp.pop %v1966
        %v2220 = vmul.f32 1.0, %v2219
        %v2221 = vrcp.pop %v1967
        %v2222 = vmul.f32 1.0, %v2221
        %v2223 = vrcp.pop %v1968
        %v2224 = vmul.f32 1.0, %v2223
        %v2225 = vmul.f32 %v720, %v1970
        %v2226 = vmul.f32 %v722, %v1972
        %v2227 = vmul.f32 %v913, %v1974
        %v2228 = vmul.f32 %v915, %v1976
        %v2229 = vmul.f32 %v724, %v1978
        %v2230 = vmul.f32 %v726, %v1980
        %v2231 = vmul.f32 %v917, %v1982
        %v2232 = vmul.f32 %v919, %v1984
        %v2233 = vmul.f32 %v730, %v1986
        %v2234 = vmul.f32 %v732, %v1988
        %v2235 = vmul.f32 %v923, %v1990
        %v2236 = vmul.f32 %v925, %v1992
        %v2237 = vmul.f32 %v734, %v1994
        %v2238 = vmul.f32 %v736, %v1996
        %v2239 = vmul.f32 %v927, %v1998
        %v2240 = vmul.f32 %v929, %v2000
        %v2241 = vmul.f32 %v740, %v2002
        %v2242 = vmul.f32 %v742, %v2004
        %v2243 = vmul.f32 %v933, %v2006
        %v2244 = vmul.f32 %v935, %v2008
        %v2245 = vmul.f32 %v744, %v2010
        %v2246 = vmul.f32 %v746, %v2012
        %v2247 = vmul.f32 %v937, %v2014
        %v2248 = vmul.f32 %v939, %v2016
        %v2249 = vmul.f32 %v750, %v2018
        %v2250 = vmul.f32 %v752, %v2020
        %v2251 = vmul.f32 %v943, %v2022
        %v2252 = vmul.f32 %v945, %v2024
        %v2253 = vmul.f32 %v754, %v2026
        %v2254 = vmul.f32 %v756, %v2028
        %v2255 = vmul.f32 %v947, %v2030
        %v2256 = vmul.f32 %v949, %v2032
        %v2257 = vmul.f32 %v760, %v2034
        %v2258 = vmul.f32 %v762, %v2036
        %v2259 = vmul.f32 %v953, %v2038
        %v2260 = vmul.f32 %v955, %v2040
        %v2261 = vmul.f32 %v764, %v2042
        %v2262 = vmul.f32 %v766, %v2044
        %v2263 = vmul.f32 %v957, %v2046
        %v2264 = vmul.f32 %v959, %v2048
        %v2265 = vmul.f32 %v770, %v2050
        %v2266 = vmul.f32 %v772, %v2052
        %v2267 = vmul.f32 %v963, %v2054
        %v2268 = vmul.f32 %v965, %v2056
        %v2269 = vmul.f32 %v774, %v2058
        %v2270 = vmul.f32 %v776, %v2060
        %v2271 = vmul.f32 %v967, %v2062
        %v2272 = vmul.f32 %v969, %v2064
        %v2273 = vmul.f32 %v780, %v2066
        %v2274 = vmul.f32 %v782, %v2068
        %v2275 = vmul.f32 %v973, %v2070
        %v2276 = vmul.f32 %v975, %v2072
        %v2277 = vmul.f32 %v784, %v2074
        %v2278 = vmul.f32 %v786, %v2076
        %v2279 = vmul.f32 %v977, %v2078
        %v2280 = vmul.f32 %v979, %v2080
        %v2281 = vmul.f32 %v790, %v2082
        %v2282 = vmul.f32 %v792, %v2084
        %v2283 = vmul.f32 %v983, %v2086
        %v2284 = vmul.f32 %v985, %v2088
        %v2285 = vmul.f32 %v794, %v2090
        %v2286 = vmul.f32 %v796, %v2092
        %v2287 = vmul.f32 %v987, %v2094
        %v2288 = vmul.f32 %v989, %v2096
        %v2289 = vmul.f32 %v800, %v2098
        %v2290 = vmul.f32 %v802, %v2100
        %v2291 = vmul.f32 %v993, %v2102
        %v2292 = vmul.f32 %v995, %v2104
        %v2293 = vmul.f32 %v804, %v2106
        %v2294 = vmul.f32 %v806, %v2108
        %v2295 = vmul.f32 %v997, %v2110
        %v2296 = vmul.f32 %v999, %v2112
        %v2297 = vmul.f32 %v810, %v2114
        %v2298 = vmul.f32 %v812, %v2116
        %v2299 = vmul.f32 %v1003, %v2118
        %v2300 = vmul.f32 %v1005, %v2120
        %v2301 = vmul.f32 %v814, %v2122
        %v2302 = vmul.f32 %v816, %v2124
        %v2303 = vmul.f32 %v1007, %v2126
        %v2304 = vmul.f32 %v1009, %v2128
        %v2305 = vmul.f32 %v820, %v2130
        %v2306 = vmul.f32 %v822, %v2132
        %v2307 = vmul.f32 %v1013, %v2134
        %v2308 = vmul.f32 %v1015, %v2136
        %v2309 = vmul.f32 %v824, %v2138
        %v2310 = vmul.f32 %v826, %v2140
        %v2311 = vmul.f32 %v1017, %v2142
        %v2312 = vmul.f32 %v1019, %v2144
        %v2313 = vmul.f32 %v830, %v2146
        %v2314 = vmul.f32 %v832, %v2148
        %v2315 = vmul.f32 %v1023, %v2150
        %v2316 = vmul.f32 %v1025, %v2152
        %v2317 = vmul.f32 %v834, %v2154
        %v2318 = vmul.f32 %v836, %v2156
        %v2319 = vmul.f32 %v1027, %v2158
        %v2320 = vmul.f32 %v1029, %v2160
        %v2321 = vmul.f32 %v840, %v2162
        %v2322 = vmul.f32 %v842, %v2164
        %v2323 = vmul.f32 %v1033, %v2166
        %v2324 = vmul.f32 %v1035, %v2168
        %v2325 = vmul.f32 %v844, %v2170
        %v2326 = vmul.f32 %v846, %v2172
        %v2327 = vmul.f32 %v1037, %v2174
        %v2328 = vmul.f32 %v1039, %v2176
        %v2329 = vmul.f32 %v850, %v2178
        %v2330 = vmul.f32 %v852, %v2180
        %v2331 = vmul.f32 %v1043, %v2182
        %v2332 = vmul.f32 %v1045, %v2184
        %v2333 = vmul.f32 %v854, %v2186
        %v2334 = vmul.f32 %v856, %v2188
        %v2335 = vmul.f32 %v1047, %v2190
        %v2336 = vmul.f32 %v1049, %v2192
        %v2337 = vmul.f32 %v860, %v2194
        %v2338 = vmul.f32 %v862, %v2196
        %v2339 = vmul.f32 %v1053, %v2198
        %v2340 = vmul.f32 %v1055, %v2200
        %v2341 = vmul.f32 %v864, %v2202
        %v2342 = vmul.f32 %v866, %v2204
        %v2343 = vmul.f32 %v1057, %v2206
        %v2344 = vmul.f32 %v1059, %v2208
        %v2345 = vmul.f32 %v870, %v2210
        %v2346 = vmul.f32 %v872, %v2212
        %v2347 = vmul.f32 %v1063, %v2214
        %v2348 = vmul.f32 %v1065, %v2216
        %v2349 = vmul.f32 %v874, %v2218
        %v2350 = vmul.f32 %v876, %v2220
        %v2351 = vmul.f32 %v1067, %v2222
        %v2352 = vmul.f32 %v1069, %v2224
        %v2353 = vmul.f32 %v2225, %v1106
        %v2354 = vmul.f32 %v2226, %v1108
        %v2355 = vmul.f32 %v2227, %v1299
        %v2356 = vmul.f32 %v2228, %v1301
        %v2357 = vmul.f32 %v2229, %v1110
        %v2358 = vmul.f32 %v2230, %v1112
        %v2359 = vmul.f32 %v2231, %v1303
        %v2360 = vmul.f32 %v2232, %v1305
        %v2361 = vmul.f32 %v2233, %v1116
        %v2362 = vmul.f32 %v2234, %v1118
        %v2363 = vmul.f32 %v2235, %v1309
        %v2364 = vmul.f32 %v2236, %v1311
        %v2365 = vmul.f32 %v2237, %v1120
        %v2366 = vmul.f32 %v2238, %v1122
        %v2367 = vmul.f32 %v2239, %v1313
        %v2368 = vmul.f32 %v2240, %v1315
        %v2369 = vmul.f32 %v2241, %v1126
        %v2370 = vmul.f32 %v2242, %v1128
        %v2371 = vmul.f32 %v2243, %v1319
        %v2372 = vmul.f32 %v2244, %v1321
        %v2373 = vmul.f32 %v2245, %v1130
        %v2374 = vmul.f32 %v2246, %v1132
        %v2375 = vmul.f32 %v2247, %v1323
        %v2376 = vmul.f32 %v2248, %v1325
        %v2377 = vmul.f32 %v2249, %v1136
        %v2378 = vmul.f32 %v2250, %v1138
        %v2379 = vmul.f32 %v2251, %v1329
        %v2380 = vmul.f32 %v2252, %v1331
        %v2381 = vmul.f32 %v2253, %v1140
        %v2382 = vmul.f32 %v2254, %v1142
        %v2383 = vmul.f32 %v2255, %v1333
        %v2384 = vmul.f32 %v2256, %v1335
        %v2385 = vmul.f32 %v2257, %v1146
        %v2386 = vmul.f32 %v2258, %v1148
        %v2387 = vmul.f32 %v2259, %v1339
        %v2388 = vmul.f32 %v2260, %v1341
        %v2389 = vmul.f32 %v2261, %v1150
        %v2390 = vmul.f32 %v2262, %v1152
        %v2391 = vmul.f32 %v2263, %v1343
        %v2392 = vmul.f32 %v2264, %v1345
        %v2393 = vmul.f32 %v2265, %v1156
        %v2394 = vmul.f32 %v2266, %v1158
        %v2395 = vmul.f32 %v2267, %v1349
        %v2396 = vmul.f32 %v2268, %v1351
        %v2397 = vmul.f32 %v2269, %v1160
        %v2398 = vmul.f32 %v2270, %v1162
        %v2399 = vmul.f32 %v2271, %v1353
        %v2400 = vmul.f32 %v2272, %v1355
        %v2401 = vmul.f32 %v2273, %v1166
        %v2402 = vmul.f32 %v2274, %v1168
        %v2403 = vmul.f32 %v2275, %v1359
        %v2404 = vmul.f32 %v2276, %v1361
        %v2405 = vmul.f32 %v2277, %v1170
        %v2406 = vmul.f32 %v2278, %v1172
        %v2407 = vmul.f32 %v2279, %v1363
        %v2408 = vmul.f32 %v2280, %v1365
        %v2409 = vmul.f32 %v2281, %v1176
        %v2410 = vmul.f32 %v2282, %v1178
        %v2411 = vmul.f32 %v2283, %v1369
        %v2412 = vmul.f32 %v2284, %v1371
        %v2413 = vmul.f32 %v2285, %v1180
        %v2414 = vmul.f32 %v2286, %v1182
        %v2415 = vmul.f32 %v2287, %v1373
        %v2416 = vmul.f32 %v2288, %v1375
        %v2417 = vmul.f32 %v2289, %v1186
        %v2418 = vmul.f32 %v2290, %v1188
        %v2419 = vmul.f32 %v2291, %v1379
        %v2420 = vmul.f32 %v2292, %v1381
        %v2421 = vmul.f32 %v2293, %v1190
        %v2422 = vmul.f32 %v2294, %v1192
        %v2423 = vmul.f32 %v2295, %v1383
        %v2424 = vmul.f32 %v2296, %v1385
        %v2425 = vmul.f32 %v2297, %v1196
        %v2426 = vmul.f32 %v2298, %v1198
        %v2427 = vmul.f32 %v2299, %v1389
        %v2428 = vmul.f32 %v2300, %v1391
        %v2429 = vmul.f32 %v2301, %v1200
        %v2430 = vmul.f32 %v2302, %v1202
        %v2431 = vmul.f32 %v2303, %v1393
        %v2432 = vmul.f32 %v2304, %v1395
        %v2433 = vmul.f32 %v2305, %v1206
        %v2434 = vmul.f32 %v2306, %v1208
        %v2435 = vmul.f32 %v2307, %v1399
        %v2436 = vmul.f32 %v2308, %v1401
        %v2437 = vmul.f32 %v2309, %v1210
        %v2438 = vmul.f32 %v2310, %v1212
        %v2439 = vmul.f32 %v2311, %v1403
        %v2440 = vmul.f32 %v2312, %v1405
        %v2441 = vmul.f32 %v2313, %v1216
        %v2442 = vmul.f32 %v2314, %v1218
        %v2443 = vmul.f32 %v2315, %v1409
        %v2444 = vmul.f32 %v2316, %v1411
        %v2445 = vmul.f32 %v2317, %v1220
        %v2446 = vmul.f32 %v2318, %v1222
        %v2447 = vmul.f32 %v2319, %v1413
        %v2448 = vmul.f32 %v2320, %v1415
        %v2449 = vmul.f32 %v2321, %v1226
        %v2450 = vmul.f32 %v2322, %v1228
        %v2451 = vmul.f32 %v2323, %v1419
        %v2452 = vmul.f32 %v2324, %v1421
        %v2453 = vmul.f32 %v2325, %v1230
        %v2454 = vmul.f32 %v2326, %v1232
        %v2455 = vmul.f32 %v2327, %v1423
        %v2456 = vmul.f32 %v2328, %v1425
        %v2457 = vmul.f32 %v2329, %v1236
        %v2458 = vmul.f32 %v2330, %v1238
        %v2459 = vmul.f32 %v2331, %v1429
        %v2460 = vmul.f32 %v2332, %v1431
        %v2461 = vmul.f32 %v2333, %v1240
        %v2462 = vmul.f32 %v2334, %v1242
        %v2463 = vmul.f32 %v2335, %v1433
        %v2464 = vmul.f32 %v2336, %v1435
        %v2465 = vmul.f32 %v2337, %v1246
        %v2466 = vmul.f32 %v2338, %v1248
        %v2467 = vmul.f32 %v2339, %v1439
        %v2468 = vmul.f32 %v2340, %v1441
        %v2469 = vmul.f32 %v2341, %v1250
        %v2470 = vmul.f32 %v2342, %v1252
        %v2471 = vmul.f32 %v2343, %v1443
        %v2472 = vmul.f32 %v2344, %v1445
        %v2473 = vmul.f32 %v2345, %v1256
        %v2474 = vmul.f32 %v2346, %v1258
        %v2475 = vmul.f32 %v2347, %v1449
        %v2476 = vmul.f32 %v2348, %v1451
        %v2477 = vmul.f32 %v2349, %v1260
        %v2478 = vmul.f32 %v2350, %v1262
        %v2479 = vmul.f32 %v2351, %v1453
        %v2480 = vmul.f32 %v2352, %v1455
        %v2481 = vpack.c.bf16 %v2357, %v2353
        %v2482 = vpack.c.bf16 %v2358, %v2354
        %v2483 = vpack.c.bf16 %v2359, %v2355
        %v2484 = vpack.c.bf16 %v2360, %v2356
        %v2485 = vpack.c.bf16 %v2365, %v2361
        %v2486 = vpack.c.bf16 %v2366, %v2362
        %v2487 = vpack.c.bf16 %v2367, %v2363
        %v2488 = vpack.c.bf16 %v2368, %v2364
        %v2489 = vpack.c.bf16 %v2373, %v2369
        %v2490 = vpack.c.bf16 %v2374, %v2370
        %v2491 = vpack.c.bf16 %v2375, %v2371
        %v2492 = vpack.c.bf16 %v2376, %v2372
        %v2493 = vpack.c.bf16 %v2381, %v2377
        %v2494 = vpack.c.bf16 %v2382, %v2378
        %v2495 = vpack.c.bf16 %v2383, %v2379
        %v2496 = vpack.c.bf16 %v2384, %v2380
        %v2497 = vpack.c.bf16 %v2389, %v2385
        %v2498 = vpack.c.bf16 %v2390, %v2386
        %v2499 = vpack.c.bf16 %v2391, %v2387
        %v2500 = vpack.c.bf16 %v2392, %v2388
        %v2501 = vpack.c.bf16 %v2397, %v2393
        %v2502 = vpack.c.bf16 %v2398, %v2394
        %v2503 = vpack.c.bf16 %v2399, %v2395
        %v2504 = vpack.c.bf16 %v2400, %v2396
        %v2505 = vpack.c.bf16 %v2405, %v2401
        %v2506 = vpack.c.bf16 %v2406, %v2402
        %v2507 = vpack.c.bf16 %v2407, %v2403
        %v2508 = vpack.c.bf16 %v2408, %v2404
        %v2509 = vpack.c.bf16 %v2413, %v2409
        %v2510 = vpack.c.bf16 %v2414, %v2410
        %v2511 = vpack.c.bf16 %v2415, %v2411
        %v2512 = vpack.c.bf16 %v2416, %v2412
        %v2513 = vpack.c.bf16 %v2421, %v2417
        %v2514 = vpack.c.bf16 %v2422, %v2418
        %v2515 = vpack.c.bf16 %v2423, %v2419
        %v2516 = vpack.c.bf16 %v2424, %v2420
        %v2517 = vpack.c.bf16 %v2429, %v2425
        %v2518 = vpack.c.bf16 %v2430, %v2426
        %v2519 = vpack.c.bf16 %v2431, %v2427
        %v2520 = vpack.c.bf16 %v2432, %v2428
        %v2521 = vpack.c.bf16 %v2437, %v2433
        %v2522 = vpack.c.bf16 %v2438, %v2434
        %v2523 = vpack.c.bf16 %v2439, %v2435
        %v2524 = vpack.c.bf16 %v2440, %v2436
        %v2525 = vpack.c.bf16 %v2445, %v2441
        %v2526 = vpack.c.bf16 %v2446, %v2442
        %v2527 = vpack.c.bf16 %v2447, %v2443
        %v2528 = vpack.c.bf16 %v2448, %v2444
        %v2529 = vpack.c.bf16 %v2453, %v2449
        %v2530 = vpack.c.bf16 %v2454, %v2450
        %v2531 = vpack.c.bf16 %v2455, %v2451
        %v2532 = vpack.c.bf16 %v2456, %v2452
        %v2533 = vpack.c.bf16 %v2461, %v2457
        %v2534 = vpack.c.bf16 %v2462, %v2458
        %v2535 = vpack.c.bf16 %v2463, %v2459
        %v2536 = vpack.c.bf16 %v2464, %v2460
        %v2537 = vpack.c.bf16 %v2469, %v2465
        %v2538 = vpack.c.bf16 %v2470, %v2466
        %v2539 = vpack.c.bf16 %v2471, %v2467
        %v2540 = vpack.c.bf16 %v2472, %v2468
        %v2541 = vpack.c.bf16 %v2477, %v2473
        %v2542 = vpack.c.bf16 %v2478, %v2474
        %v2543 = vpack.c.bf16 %v2479, %v2475
        %v2544 = vpack.c.bf16 %v2480, %v2476
        %v2545 = vld [vmem:[%s2] sm:$0xf]
        %v2546 = vld [vmem:[%s2 + $0x4] sm:$0xf]
        %v2547 = vld [vmem:[%s2 + $0x8] sm:$0xf]
        %v2548 = vld [vmem:[%s2 + $0xc] sm:$0xf]
        %v2549 = vld [vmem:[%s2 + $0x10] sm:$0xf]
        %v2550 = vld [vmem:[%s2 + $0x14] sm:$0xf]
        %v2551 = vld [vmem:[%s2 + $0x18] sm:$0xf]
        %v2552 = vld [vmem:[%s2 + $0x1c] sm:$0xf]
        %v2553 = vld [vmem:[%s2 + $0x20] sm:$0xf]
        %v2554 = vld [vmem:[%s2 + $0x24] sm:$0xf]
        %v2555 = vld [vmem:[%s2 + $0x28] sm:$0xf]
        %v2556 = vld [vmem:[%s2 + $0x2c] sm:$0xf]
        %v2557 = vld [vmem:[%s2 + $0x30] sm:$0xf]
        %v2558 = vld [vmem:[%s2 + $0x34] sm:$0xf]
        %v2559 = vld [vmem:[%s2 + $0x38] sm:$0xf]
        %v2560 = vld [vmem:[%s2 + $0x3c] sm:$0xf]
        %v2561 = vld [vmem:[%s2 + $0x40] sm:$0xf]
        %v2562 = vld [vmem:[%s2 + $0x44] sm:$0xf]
        %v2563 = vld [vmem:[%s2 + $0x48] sm:$0xf]
        %v2564 = vld [vmem:[%s2 + $0x4c] sm:$0xf]
        %v2565 = vld [vmem:[%s2 + $0x50] sm:$0xf]
        %v2566 = vld [vmem:[%s2 + $0x54] sm:$0xf]
        %v2567 = vld [vmem:[%s2 + $0x58] sm:$0xf]
        %v2568 = vld [vmem:[%s2 + $0x5c] sm:$0xf]
        %v2569 = vld [vmem:[%s2 + $0x60] sm:$0xf]
        %v2570 = vld [vmem:[%s2 + $0x64] sm:$0xf]
        %v2571 = vld [vmem:[%s2 + $0x68] sm:$0xf]
        %v2572 = vld [vmem:[%s2 + $0x6c] sm:$0xf]
        %v2573 = vld [vmem:[%s2 + $0x70] sm:$0xf]
        %v2574 = vld [vmem:[%s2 + $0x74] sm:$0xf]
        %v2575 = vld [vmem:[%s2 + $0x78] sm:$0xf]
        %v2576 = vld [vmem:[%s2 + $0x7c] sm:$0xf]
        %v2577 = vld [vmem:[%s2 + $0x80] sm:$0xf]
        %v2578 = vld [vmem:[%s2 + $0x84] sm:$0xf]
        %v2579 = vld [vmem:[%s2 + $0x88] sm:$0xf]
        %v2580 = vld [vmem:[%s2 + $0x8c] sm:$0xf]
        %v2581 = vld [vmem:[%s2 + $0x90] sm:$0xf]
        %v2582 = vld [vmem:[%s2 + $0x94] sm:$0xf]
        %v2583 = vld [vmem:[%s2 + $0x98] sm:$0xf]
        %v2584 = vld [vmem:[%s2 + $0x9c] sm:$0xf]
        %v2585 = vld [vmem:[%s2 + $0xa0] sm:$0xf]
        %v2586 = vld [vmem:[%s2 + $0xa4] sm:$0xf]
        %v2587 = vld [vmem:[%s2 + $0xa8] sm:$0xf]
        %v2588 = vld [vmem:[%s2 + $0xac] sm:$0xf]
        %v2589 = vld [vmem:[%s2 + $0xb0] sm:$0xf]
        %v2590 = vld [vmem:[%s2 + $0xb4] sm:$0xf]
        %v2591 = vld [vmem:[%s2 + $0xb8] sm:$0xf]
        %v2592 = vld [vmem:[%s2 + $0xbc] sm:$0xf]
        %v2593 = vld [vmem:[%s2 + $0xc0] sm:$0xf]
        %v2594 = vld [vmem:[%s2 + $0xc4] sm:$0xf]
        %v2595 = vld [vmem:[%s2 + $0xc8] sm:$0xf]
        %v2596 = vld [vmem:[%s2 + $0xcc] sm:$0xf]
        %v2597 = vld [vmem:[%s2 + $0xd0] sm:$0xf]
        %v2598 = vld [vmem:[%s2 + $0xd4] sm:$0xf]
        %v2599 = vld [vmem:[%s2 + $0xd8] sm:$0xf]
        %v2600 = vld [vmem:[%s2 + $0xdc] sm:$0xf]
        %v2601 = vld [vmem:[%s2 + $0xe0] sm:$0xf]
        %v2602 = vld [vmem:[%s2 + $0xe4] sm:$0xf]
        %v2603 = vld [vmem:[%s2 + $0xe8] sm:$0xf]
        %v2604 = vld [vmem:[%s2 + $0xec] sm:$0xf]
        %v2605 = vld [vmem:[%s2 + $0xf0] sm:$0xf]
        %v2606 = vld [vmem:[%s2 + $0xf4] sm:$0xf]
        %v2607 = vld [vmem:[%s2 + $0xf8] sm:$0xf]
        %v2608 = vld [vmem:[%s2 + $0xfc] sm:$0xf]
        %v2673 = vunpack.c.l.b16 %v2545
        %v2674 = vunpack.c.l.b16 %v2546
        %v2675 = vunpack.c.l.b16 %v2547
        %v2676 = vunpack.c.l.b16 %v2548
        %v2677 = vunpack.c.l.b16 %v2549
        %v2678 = vunpack.c.l.b16 %v2550
        %v2679 = vunpack.c.l.b16 %v2551
        %v2680 = vunpack.c.l.b16 %v2552
        %v2681 = vunpack.c.l.b16 %v2553
        %v2682 = vunpack.c.l.b16 %v2554
        %v2683 = vunpack.c.l.b16 %v2555
        %v2684 = vunpack.c.l.b16 %v2556
        %v2685 = vunpack.c.l.b16 %v2557
        %v2686 = vunpack.c.l.b16 %v2558
        %v2687 = vunpack.c.l.b16 %v2559
        %v2688 = vunpack.c.l.b16 %v2560
        %v2689 = vunpack.c.l.b16 %v2561
        %v2690 = vunpack.c.l.b16 %v2562
        %v2691 = vunpack.c.l.b16 %v2563
        %v2692 = vunpack.c.l.b16 %v2564
        %v2693 = vunpack.c.l.b16 %v2565
        %v2694 = vunpack.c.l.b16 %v2566
        %v2695 = vunpack.c.l.b16 %v2567
        %v2696 = vunpack.c.l.b16 %v2568
        %v2697 = vunpack.c.l.b16 %v2569
        %v2698 = vunpack.c.l.b16 %v2570
        %v2699 = vunpack.c.l.b16 %v2571
        %v2700 = vunpack.c.l.b16 %v2572
        %v2701 = vunpack.c.l.b16 %v2573
        %v2702 = vunpack.c.l.b16 %v2574
        %v2703 = vunpack.c.l.b16 %v2575
        %v2704 = vunpack.c.l.b16 %v2576
        %v2705 = vunpack.c.l.b16 %v2577
        %v2706 = vunpack.c.l.b16 %v2578
        %v2707 = vunpack.c.l.b16 %v2579
        %v2708 = vunpack.c.l.b16 %v2580
        %v2709 = vunpack.c.l.b16 %v2581
        %v2710 = vunpack.c.l.b16 %v2582
        %v2711 = vunpack.c.l.b16 %v2583
        %v2712 = vunpack.c.l.b16 %v2584
        %v2713 = vunpack.c.l.b16 %v2585
        %v2714 = vunpack.c.l.b16 %v2586
        %v2715 = vunpack.c.l.b16 %v2587
        %v2716 = vunpack.c.l.b16 %v2588
        %v2717 = vunpack.c.l.b16 %v2589
        %v2718 = vunpack.c.l.b16 %v2590
        %v2719 = vunpack.c.l.b16 %v2591
        %v2720 = vunpack.c.l.b16 %v2592
        %v2721 = vunpack.c.l.b16 %v2593
        %v2722 = vunpack.c.l.b16 %v2594
        %v2723 = vunpack.c.l.b16 %v2595
        %v2724 = vunpack.c.l.b16 %v2596
        %v2725 = vunpack.c.l.b16 %v2597
        %v2726 = vunpack.c.l.b16 %v2598
        %v2727 = vunpack.c.l.b16 %v2599
        %v2728 = vunpack.c.l.b16 %v2600
        %v2729 = vunpack.c.l.b16 %v2601
        %v2730 = vunpack.c.l.b16 %v2602
        %v2731 = vunpack.c.l.b16 %v2603
        %v2732 = vunpack.c.l.b16 %v2604
        %v2733 = vunpack.c.l.b16 %v2605
        %v2734 = vunpack.c.l.b16 %v2606
        %v2735 = vunpack.c.l.b16 %v2607
        %v2736 = vunpack.c.l.b16 %v2608
        %v2737 = vpack.c.b16 %v2674, %v2673
        %v2738 = vpack.c.b16 %v2676, %v2675
        %v2739 = vpack.c.b16 %v2678, %v2677
        %v2740 = vpack.c.b16 %v2680, %v2679
        %v2741 = vpack.c.b16 %v2682, %v2681
        %v2742 = vpack.c.b16 %v2684, %v2683
        %v2743 = vpack.c.b16 %v2686, %v2685
        %v2744 = vpack.c.b16 %v2688, %v2687
        %v2745 = vpack.c.b16 %v2690, %v2689
        %v2746 = vpack.c.b16 %v2692, %v2691
        %v2747 = vpack.c.b16 %v2694, %v2693
        %v2748 = vpack.c.b16 %v2696, %v2695
        %v2749 = vpack.c.b16 %v2698, %v2697
        %v2750 = vpack.c.b16 %v2700, %v2699
        %v2751 = vpack.c.b16 %v2702, %v2701
        %v2752 = vpack.c.b16 %v2704, %v2703
        %v2753 = vpack.c.b16 %v2706, %v2705
        %v2754 = vpack.c.b16 %v2708, %v2707
        %v2755 = vpack.c.b16 %v2710, %v2709
        %v2756 = vpack.c.b16 %v2712, %v2711
        %v2757 = vpack.c.b16 %v2714, %v2713
        %v2758 = vpack.c.b16 %v2716, %v2715
        %v2759 = vpack.c.b16 %v2718, %v2717
        %v2760 = vpack.c.b16 %v2720, %v2719
        %v2761 = vpack.c.b16 %v2722, %v2721
        %v2762 = vpack.c.b16 %v2724, %v2723
        %v2763 = vpack.c.b16 %v2726, %v2725
        %v2764 = vpack.c.b16 %v2728, %v2727
        %v2765 = vpack.c.b16 %v2730, %v2729
        %v2766 = vpack.c.b16 %v2732, %v2731
        %v2767 = vpack.c.b16 %v2734, %v2733
        %v2768 = vpack.c.b16 %v2736, %v2735
        %2801 = vmatprep.subr.bf16.mxu0 0
        %2802 = vmatpush1.bf16.msra.mxu0 %v2744
        %2803 = vmatprep.subr.bf16.mxu0 0
        %2804 = vmatpush1.bf16.msra.mxu0 %v2743
        %2805 = vmatprep.subr.bf16.mxu0 0
        %2806 = vmatpush1.bf16.msra.mxu0 %v2742
        %2807 = vmatprep.subr.bf16.mxu0 0
        %2808 = vmatpush1.bf16.msra.mxu0 %v2741
        %2809 = vmatprep.subr.bf16.mxu0 0
        %2810 = vmatpush1.bf16.msra.mxu0 %v2740
        %2811 = vmatprep.subr.bf16.mxu0 0
        %2812 = vmatpush1.bf16.msra.mxu0 %v2739
        %2813 = vmatprep.subr.bf16.mxu0 0
        %2814 = vmatpush1.bf16.msra.mxu0 %v2738
        %2815 = vmatprep.subr.bf16.mxu0 0
        %2816 = vmatpush1.bf16.msra.mxu0 %v2737
        %2817 = vmatprep.subr.bf16.mxu0 0
        %2818 = vmatpush2.bf16.msra.mxu0 %v2752
        %2819 = vmatprep.subr.bf16.mxu0 0
        %2820 = vmatpush2.bf16.msra.mxu0 %v2751
        %2821 = vmatprep.subr.bf16.mxu0 0
        %2822 = vmatpush2.bf16.msra.mxu0 %v2750
        %2823 = vmatprep.subr.bf16.mxu0 0
        %2824 = vmatpush2.bf16.msra.mxu0 %v2749
        %2825 = vmatprep.subr.bf16.mxu0 0
        %2826 = vmatpush2.bf16.msra.mxu0 %v2748
        %2827 = vmatprep.subr.bf16.mxu0 0
        %2828 = vmatpush2.bf16.msra.mxu0 %v2747
        %2829 = vmatprep.subr.bf16.mxu0 0
        %2830 = vmatpush2.bf16.msra.mxu0 %v2746
        %2831 = vmatprep.subr.bf16.mxu0 0
        %2832 = vmatpush2.bf16.msra.mxu0 %v2745
        %2833 = vmatprep.mubr.bf16.mxu0 %v2482
        %2834 = vmatmul.mubr.bf16.gmra.mxu0 %v2481
        %v2835 = vpop.f32.mrf.mxu0
        %v2836 = vadd.f32 0.0, %v2835
        %v2837 = vpop.f32.mrf.mxu0
        %v2838 = vpop.f32.mrf.mxu0
        %v2839 = vadd.f32 0.0, %v2838
        %v2840 = vpop.f32.mrf.mxu0
        %2841 = vmatprep.mubr.bf16.mxu0 %v2486
        %2842 = vmatmul.mubr.bf16.gmra.mxu0 %v2485
        %v2843 = vpop.f32.mrf.mxu0
        %v2844 = vadd.f32 0.0, %v2843
        %v2845 = vpop.f32.mrf.mxu0
        %v2846 = vpop.f32.mrf.mxu0
        %v2847 = vadd.f32 0.0, %v2846
        %v2848 = vpop.f32.mrf.mxu0
        %2849 = vmatprep.mubr.bf16.mxu0 %v2490
        %2850 = vmatmul.mubr.bf16.gmra.mxu0 %v2489
        %v2851 = vpop.f32.mrf.mxu0
        %v2852 = vadd.f32 0.0, %v2851
        %v2853 = vpop.f32.mrf.mxu0
        %v2854 = vpop.f32.mrf.mxu0
        %v2855 = vadd.f32 0.0, %v2854
        %v2856 = vpop.f32.mrf.mxu0
        %2857 = vmatprep.mubr.bf16.mxu0 %v2494
        %2858 = vmatmul.mubr.bf16.gmra.mxu0 %v2493
        %v2859 = vpop.f32.mrf.mxu0
        %v2860 = vadd.f32 0.0, %v2859
        %v2861 = vpop.f32.mrf.mxu0
        %v2862 = vpop.f32.mrf.mxu0
        %v2863 = vadd.f32 0.0, %v2862
        %v2864 = vpop.f32.mrf.mxu0
        %2865 = vmatprep.mubr.bf16.mxu0 %v2498
        %2866 = vmatmul.mubr.bf16.gmra.mxu0 %v2497
        %v2867 = vpop.f32.mrf.mxu0
        %v2868 = vadd.f32 0.0, %v2867
        %v2869 = vpop.f32.mrf.mxu0
        %v2870 = vpop.f32.mrf.mxu0
        %v2871 = vadd.f32 0.0, %v2870
        %v2872 = vpop.f32.mrf.mxu0
        %2873 = vmatprep.mubr.bf16.mxu0 %v2502
        %2874 = vmatmul.mubr.bf16.gmra.mxu0 %v2501
        %v2875 = vpop.f32.mrf.mxu0
        %v2876 = vadd.f32 0.0, %v2875
        %v2877 = vpop.f32.mrf.mxu0
        %v2878 = vpop.f32.mrf.mxu0
        %v2879 = vadd.f32 0.0, %v2878
        %v2880 = vpop.f32.mrf.mxu0
        %2881 = vmatprep.mubr.bf16.mxu0 %v2506
        %2882 = vmatmul.mubr.bf16.gmra.mxu0 %v2505
        %v2883 = vpop.f32.mrf.mxu0
        %v2884 = vadd.f32 0.0, %v2883
        %v2885 = vpop.f32.mrf.mxu0
        %v2886 = vpop.f32.mrf.mxu0
        %v2887 = vadd.f32 0.0, %v2886
        %v2888 = vpop.f32.mrf.mxu0
        %2889 = vmatprep.mubr.bf16.mxu0 %v2510
        %2890 = vmatmul.mubr.bf16.gmra.mxu0 %v2509
        %v2891 = vpop.f32.mrf.mxu0
        %v2892 = vadd.f32 0.0, %v2891
        %v2893 = vpop.f32.mrf.mxu0
        %v2894 = vpop.f32.mrf.mxu0
        %v2895 = vadd.f32 0.0, %v2894
        %v2896 = vpop.f32.mrf.mxu0
        %2897 = vmatprep.mubr.bf16.mxu0 %v2514
        %2898 = vmatmul.mubr.bf16.gmra.mxu0 %v2513
        %v2899 = vpop.f32.mrf.mxu0
        %v2900 = vadd.f32 0.0, %v2899
        %v2901 = vpop.f32.mrf.mxu0
        %v2902 = vpop.f32.mrf.mxu0
        %v2903 = vadd.f32 0.0, %v2902
        %v2904 = vpop.f32.mrf.mxu0
        %2905 = vmatprep.mubr.bf16.mxu0 %v2518
        %2906 = vmatmul.mubr.bf16.gmra.mxu0 %v2517
        %v2907 = vpop.f32.mrf.mxu0
        %v2908 = vadd.f32 0.0, %v2907
        %v2909 = vpop.f32.mrf.mxu0
        %v2910 = vpop.f32.mrf.mxu0
        %v2911 = vadd.f32 0.0, %v2910
        %v2912 = vpop.f32.mrf.mxu0
        %2913 = vmatprep.mubr.bf16.mxu0 %v2522
        %2914 = vmatmul.mubr.bf16.gmra.mxu0 %v2521
        %v2915 = vpop.f32.mrf.mxu0
        %v2916 = vadd.f32 0.0, %v2915
        %v2917 = vpop.f32.mrf.mxu0
        %v2918 = vpop.f32.mrf.mxu0
        %v2919 = vadd.f32 0.0, %v2918
        %v2920 = vpop.f32.mrf.mxu0
        %2921 = vmatprep.mubr.bf16.mxu0 %v2526
        %2922 = vmatmul.mubr.bf16.gmra.mxu0 %v2525
        %v2923 = vpop.f32.mrf.mxu0
        %v2924 = vadd.f32 0.0, %v2923
        %v2925 = vpop.f32.mrf.mxu0
        %v2926 = vpop.f32.mrf.mxu0
        %v2927 = vadd.f32 0.0, %v2926
        %v2928 = vpop.f32.mrf.mxu0
        %2929 = vmatprep.mubr.bf16.mxu0 %v2530
        %2930 = vmatmul.mubr.bf16.gmra.mxu0 %v2529
        %v2931 = vpop.f32.mrf.mxu0
        %v2932 = vadd.f32 0.0, %v2931
        %v2933 = vpop.f32.mrf.mxu0
        %v2934 = vpop.f32.mrf.mxu0
        %v2935 = vadd.f32 0.0, %v2934
        %v2936 = vpop.f32.mrf.mxu0
        %2937 = vmatprep.mubr.bf16.mxu0 %v2534
        %2938 = vmatmul.mubr.bf16.gmra.mxu0 %v2533
        %v2939 = vpop.f32.mrf.mxu0
        %v2940 = vadd.f32 0.0, %v2939
        %v2941 = vpop.f32.mrf.mxu0
        %v2942 = vpop.f32.mrf.mxu0
        %v2943 = vadd.f32 0.0, %v2942
        %v2944 = vpop.f32.mrf.mxu0
        %2945 = vmatprep.mubr.bf16.mxu0 %v2538
        %2946 = vmatmul.mubr.bf16.gmra.mxu0 %v2537
        %v2947 = vpop.f32.mrf.mxu0
        %v2948 = vadd.f32 0.0, %v2947
        %v2949 = vpop.f32.mrf.mxu0
        %v2950 = vpop.f32.mrf.mxu0
        %v2951 = vadd.f32 0.0, %v2950
        %v2952 = vpop.f32.mrf.mxu0
        %2953 = vmatprep.mubr.bf16.mxu0 %v2542
        %2954 = vmatmul.mubr.bf16.gmra.mxu0 %v2541
        %v2955 = vpop.f32.mrf.mxu0
        %v2956 = vadd.f32 0.0, %v2955
        %v2957 = vpop.f32.mrf.mxu0
        %v2958 = vpop.f32.mrf.mxu0
        %v2959 = vadd.f32 0.0, %v2958
        %v2960 = vpop.f32.mrf.mxu0
        %2961 = vdwg.mxu0
        %2962 = vmatprep.subr.bf16.mxu0 0
        %2963 = vmatpush1.bf16.msra.mxu0 %v2760
        %2964 = vmatprep.subr.bf16.mxu0 0
        %2965 = vmatpush1.bf16.msra.mxu0 %v2759
        %2966 = vmatprep.subr.bf16.mxu0 0
        %2967 = vmatpush1.bf16.msra.mxu0 %v2758
        %2968 = vmatprep.subr.bf16.mxu0 0
        %2969 = vmatpush1.bf16.msra.mxu0 %v2757
        %2970 = vmatprep.subr.bf16.mxu0 0
        %2971 = vmatpush1.bf16.msra.mxu0 %v2756
        %2972 = vmatprep.subr.bf16.mxu0 0
        %2973 = vmatpush1.bf16.msra.mxu0 %v2755
        %2974 = vmatprep.subr.bf16.mxu0 0
        %2975 = vmatpush1.bf16.msra.mxu0 %v2754
        %2976 = vmatprep.subr.bf16.mxu0 0
        %2977 = vmatpush1.bf16.msra.mxu0 %v2753
        %2978 = vmatprep.subr.bf16.mxu0 0
        %2979 = vmatpush2.bf16.msra.mxu0 %v2768
        %2980 = vmatprep.subr.bf16.mxu0 0
        %2981 = vmatpush2.bf16.msra.mxu0 %v2767
        %2982 = vmatprep.subr.bf16.mxu0 0
        %2983 = vmatpush2.bf16.msra.mxu0 %v2766
        %2984 = vmatprep.subr.bf16.mxu0 0
        %2985 = vmatpush2.bf16.msra.mxu0 %v2765
        %2986 = vmatprep.subr.bf16.mxu0 0
        %2987 = vmatpush2.bf16.msra.mxu0 %v2764
        %2988 = vmatprep.subr.bf16.mxu0 0
        %2989 = vmatpush2.bf16.msra.mxu0 %v2763
        %2990 = vmatprep.subr.bf16.mxu0 0
        %2991 = vmatpush2.bf16.msra.mxu0 %v2762
        %2992 = vmatprep.subr.bf16.mxu0 0
        %2993 = vmatpush2.bf16.msra.mxu0 %v2761
        %2994 = vmatprep.mubr.bf16.mxu0 %v2484
        %2995 = vmatmul.mubr.bf16.gmra.mxu0 %v2483
        %v2996 = vpop.f32.mrf.mxu0
        %v2997 = vadd.f32 %v2836, %v2996
        %v2998 = vpop.f32.mrf.mxu0
        %v2999 = vpop.f32.mrf.mxu0
        %v3000 = vadd.f32 %v2839, %v2999
        %v3001 = vpop.f32.mrf.mxu0
        %3002 = vmatprep.mubr.bf16.mxu0 %v2488
        %3003 = vmatmul.mubr.bf16.gmra.mxu0 %v2487
        %v3004 = vpop.f32.mrf.mxu0
        %v3005 = vadd.f32 %v2844, %v3004
        %v3006 = vpop.f32.mrf.mxu0
        %v3007 = vpop.f32.mrf.mxu0
        %v3008 = vadd.f32 %v2847, %v3007
        %v3009 = vpop.f32.mrf.mxu0
        %3010 = vmatprep.mubr.bf16.mxu0 %v2492
        %3011 = vmatmul.mubr.bf16.gmra.mxu0 %v2491
        %v3012 = vpop.f32.mrf.mxu0
        %v3013 = vadd.f32 %v2852, %v3012
        %v3014 = vpop.f32.mrf.mxu0
        %v3015 = vpop.f32.mrf.mxu0
        %v3016 = vadd.f32 %v2855, %v3015
        %v3017 = vpop.f32.mrf.mxu0
        %3018 = vmatprep.mubr.bf16.mxu0 %v2496
        %3019 = vmatmul.mubr.bf16.gmra.mxu0 %v2495
        %v3020 = vpop.f32.mrf.mxu0
        %v3021 = vadd.f32 %v2860, %v3020
        %v3022 = vpop.f32.mrf.mxu0
        %v3023 = vpop.f32.mrf.mxu0
        %v3024 = vadd.f32 %v2863, %v3023
        %v3025 = vpop.f32.mrf.mxu0
        %3026 = vmatprep.mubr.bf16.mxu0 %v2500
        %3027 = vmatmul.mubr.bf16.gmra.mxu0 %v2499
        %v3028 = vpop.f32.mrf.mxu0
        %v3029 = vadd.f32 %v2868, %v3028
        %v3030 = vpop.f32.mrf.mxu0
        %v3031 = vpop.f32.mrf.mxu0
        %v3032 = vadd.f32 %v2871, %v3031
        %v3033 = vpop.f32.mrf.mxu0
        %3034 = vmatprep.mubr.bf16.mxu0 %v2504
        %3035 = vmatmul.mubr.bf16.gmra.mxu0 %v2503
        %v3036 = vpop.f32.mrf.mxu0
        %v3037 = vadd.f32 %v2876, %v3036
        %v3038 = vpop.f32.mrf.mxu0
        %v3039 = vpop.f32.mrf.mxu0
        %v3040 = vadd.f32 %v2879, %v3039
        %v3041 = vpop.f32.mrf.mxu0
        %3042 = vmatprep.mubr.bf16.mxu0 %v2508
        %3043 = vmatmul.mubr.bf16.gmra.mxu0 %v2507
        %v3044 = vpop.f32.mrf.mxu0
        %v3045 = vadd.f32 %v2884, %v3044
        %v3046 = vpop.f32.mrf.mxu0
        %v3047 = vpop.f32.mrf.mxu0
        %v3048 = vadd.f32 %v2887, %v3047
        %v3049 = vpop.f32.mrf.mxu0
        %3050 = vmatprep.mubr.bf16.mxu0 %v2512
        %3051 = vmatmul.mubr.bf16.gmra.mxu0 %v2511
        %v3052 = vpop.f32.mrf.mxu0
        %v3053 = vadd.f32 %v2892, %v3052
        %v3054 = vpop.f32.mrf.mxu0
        %v3055 = vpop.f32.mrf.mxu0
        %v3056 = vadd.f32 %v2895, %v3055
        %v3057 = vpop.f32.mrf.mxu0
        %3058 = vmatprep.mubr.bf16.mxu0 %v2516
        %3059 = vmatmul.mubr.bf16.gmra.mxu0 %v2515
        %v3060 = vpop.f32.mrf.mxu0
        %v3061 = vadd.f32 %v2900, %v3060
        %v3062 = vpop.f32.mrf.mxu0
        %v3063 = vpop.f32.mrf.mxu0
        %v3064 = vadd.f32 %v2903, %v3063
        %v3065 = vpop.f32.mrf.mxu0
        %3066 = vmatprep.mubr.bf16.mxu0 %v2520
        %3067 = vmatmul.mubr.bf16.gmra.mxu0 %v2519
        %v3068 = vpop.f32.mrf.mxu0
        %v3069 = vadd.f32 %v2908, %v3068
        %v3070 = vpop.f32.mrf.mxu0
        %v3071 = vpop.f32.mrf.mxu0
        %v3072 = vadd.f32 %v2911, %v3071
        %v3073 = vpop.f32.mrf.mxu0
        %3074 = vmatprep.mubr.bf16.mxu0 %v2524
        %3075 = vmatmul.mubr.bf16.gmra.mxu0 %v2523
        %v3076 = vpop.f32.mrf.mxu0
        %v3077 = vadd.f32 %v2916, %v3076
        %v3078 = vpop.f32.mrf.mxu0
        %v3079 = vpop.f32.mrf.mxu0
        %v3080 = vadd.f32 %v2919, %v3079
        %v3081 = vpop.f32.mrf.mxu0
        %3082 = vmatprep.mubr.bf16.mxu0 %v2528
        %3083 = vmatmul.mubr.bf16.gmra.mxu0 %v2527
        %v3084 = vpop.f32.mrf.mxu0
        %v3085 = vadd.f32 %v2924, %v3084
        %v3086 = vpop.f32.mrf.mxu0
        %v3087 = vpop.f32.mrf.mxu0
        %v3088 = vadd.f32 %v2927, %v3087
        %v3089 = vpop.f32.mrf.mxu0
        %3090 = vmatprep.mubr.bf16.mxu0 %v2532
        %3091 = vmatmul.mubr.bf16.gmra.mxu0 %v2531
        %v3092 = vpop.f32.mrf.mxu0
        %v3093 = vadd.f32 %v2932, %v3092
        %v3094 = vpop.f32.mrf.mxu0
        %v3095 = vpop.f32.mrf.mxu0
        %v3096 = vadd.f32 %v2935, %v3095
        %v3097 = vpop.f32.mrf.mxu0
        %3098 = vmatprep.mubr.bf16.mxu0 %v2536
        %3099 = vmatmul.mubr.bf16.gmra.mxu0 %v2535
        %v3100 = vpop.f32.mrf.mxu0
        %v3101 = vadd.f32 %v2940, %v3100
        %v3102 = vpop.f32.mrf.mxu0
        %v3103 = vpop.f32.mrf.mxu0
        %v3104 = vadd.f32 %v2943, %v3103
        %v3105 = vpop.f32.mrf.mxu0
        %3106 = vmatprep.mubr.bf16.mxu0 %v2540
        %3107 = vmatmul.mubr.bf16.gmra.mxu0 %v2539
        %v3108 = vpop.f32.mrf.mxu0
        %v3109 = vadd.f32 %v2948, %v3108
        %v3110 = vpop.f32.mrf.mxu0
        %v3111 = vpop.f32.mrf.mxu0
        %v3112 = vadd.f32 %v2951, %v3111
        %v3113 = vpop.f32.mrf.mxu0
        %3114 = vmatprep.mubr.bf16.mxu0 %v2544
        %3115 = vmatmul.mubr.bf16.gmra.mxu0 %v2543
        %v3116 = vpop.f32.mrf.mxu0
        %v3117 = vadd.f32 %v2956, %v3116
        %v3118 = vpop.f32.mrf.mxu0
        %v3119 = vpop.f32.mrf.mxu0
        %v3120 = vadd.f32 %v2959, %v3119
        %v3121 = vpop.f32.mrf.mxu0
        %3122 = vdwg.mxu0
        %3123 = vst [vmem:[%s164] sm:$0xff] %v2997
        %3124 = vst [vmem:[%s164 + $0x8] sm:$0xff] %v3000
        %3125 = vst [vmem:[%s164 + $0x10] sm:$0xff] %v3005
        %3126 = vst [vmem:[%s164 + $0x18] sm:$0xff] %v3008
        %3127 = vst [vmem:[%s164 + $0x20] sm:$0xff] %v3013
        %3128 = vst [vmem:[%s164 + $0x28] sm:$0xff] %v3016
        %3129 = vst [vmem:[%s164 + $0x30] sm:$0xff] %v3021
        %3130 = vst [vmem:[%s164 + $0x38] sm:$0xff] %v3024
        %3131 = vst [vmem:[%s164 + $0x40] sm:$0xff] %v3029
        %3132 = vst [vmem:[%s164 + $0x48] sm:$0xff] %v3032
        %3133 = vst [vmem:[%s164 + $0x50] sm:$0xff] %v3037
        %3134 = vst [vmem:[%s164 + $0x58] sm:$0xff] %v3040
        %3135 = vst [vmem:[%s164 + $0x60] sm:$0xff] %v3045
        %3136 = vst [vmem:[%s164 + $0x68] sm:$0xff] %v3048
        %3137 = vst [vmem:[%s164 + $0x70] sm:$0xff] %v3053
        %3138 = vst [vmem:[%s164 + $0x78] sm:$0xff] %v3056
        %3139 = vst [vmem:[%s164 + $0x80] sm:$0xff] %v3061
        %3140 = vst [vmem:[%s164 + $0x88] sm:$0xff] %v3064
        %3141 = vst [vmem:[%s164 + $0x90] sm:$0xff] %v3069
        %3142 = vst [vmem:[%s164 + $0x98] sm:$0xff] %v3072
        %3143 = vst [vmem:[%s164 + $0xa0] sm:$0xff] %v3077
        %3144 = vst [vmem:[%s164 + $0xa8] sm:$0xff] %v3080
        %3145 = vst [vmem:[%s164 + $0xb0] sm:$0xff] %v3085
        %3146 = vst [vmem:[%s164 + $0xb8] sm:$0xff] %v3088
        %3147 = vst [vmem:[%s164 + $0xc0] sm:$0xff] %v3093
        %3148 = vst [vmem:[%s164 + $0xc8] sm:$0xff] %v3096
        %3149 = vst [vmem:[%s164 + $0xd0] sm:$0xff] %v3101
        %3150 = vst [vmem:[%s164 + $0xd8] sm:$0xff] %v3104
        %3151 = vst [vmem:[%s164 + $0xe0] sm:$0xff] %v3109
        %3152 = vst [vmem:[%s164 + $0xe8] sm:$0xff] %v3112
        %3153 = vst [vmem:[%s164 + $0xf0] sm:$0xff] %v3117
        %3154 = vst [vmem:[%s164 + $0xf8] sm:$0xff] %v3120
        %s3155 = sand.u32 %s93, 1
        %s3156 = scalar_lea.sflag [#allocation3], %s3155
        %s3157 = sand.u32 %s93, 1
        %s3158 = smul.addr %s3157, 256
        %s3159 = scalar_lea.vmem [#allocation2], %s3158
        // Predicated region
        $region33: #{feed_forward.1} parent=31 // pred_check
          %p3160 = pneg %p103
        $region34: #{feed_forward.1} parent=31 // pred_check_branch
          %3162 = sbr.rel (%p3160) target = $region36
        $region35: #{feed_forward.1} parent=31 // pred_region
          %s3163 = smul.u32 32, %s17
          %s3165 = ssub.s32 4096, 4096
          %3166 = vsyncadd %s3156, %s3165
          %s3167 = smul.addr %s3163, 128
          %s3168 = scalar_lea.hbm %s3, %s3167
          %s3169 = sshll.u32 %s3159, 4
          %s3170 = int_to_ptr.vmem [resolvable:$true] %s3169
          %3175 = dma.vmem_to_hbm [thread:$0]  %s3170, 4096, %s3168, %s3156, 128, 128, 8
        $region36: #{feed_forward.1} parent=31 // pred_fallthru
          _
      $region32: #{feed_forward.1} parent=5 // pred_fallthru
        _
      %p3176 = scmp.le.s32.totalorder 2, %s12
      // Predicated region
      $region37: #{feed_forward.1} parent=5 // pred_check
        %p3177 = pneg %p3176
      $region38: #{feed_forward.1} parent=5 // pred_check_branch
        %3179 = sbr.rel (%p3177) target = $region40
      $region39: #{feed_forward.1} parent=5 // pred_region
        %s3180 = ssub.s32 %s12, 2
        // Predicated region
        $region41: #{feed_forward.1} parent=39 // pred_check
          %p3181 = pneg %p109
        $region42: #{feed_forward.1} parent=39 // pred_check_branch
          %3183 = sbr.rel (%p3181) target = $region44
        $region43: #{feed_forward.1} parent=39 // pred_region
          %s3184 = sand.u32 %s94, 1
          %s3185 = scalar_lea.sflag [#allocation3], %s3184
          %s3186 = sand.u32 %s94, 1
          %s3187 = smul.addr %s3186, 256
          %s3188 = scalar_lea.vmem [#allocation2], %s3187
          %3189 = dma.done %s3185, 4096
        $region44: #{feed_forward.1} parent=39 // pred_fallthru
          _
      $region40: #{feed_forward.1} parent=5 // pred_fallthru
        _
    $region6: #{feed_forward.1} parent=1 // loop_footer
      %s16 = sadd.s32 1, %s12
    $region7: #{feed_forward.1} parent=1 // loop_footer_branch
      %11 = sbr.rel target = $region3
    $region8: #{feed_forward.1} parent=1 // loop_exit
      _
    %3190 = vsyncpa [#allocation3], 1
    %s3191 = scalar_lea.sflag [#allocation3], 1
    %3192 = vsyncpa %s3191, 1

</llo_original>
